<compile_context>
chip_gen: v7x
topology: tpu7x:2x2x1
jax: 0.10.0
libtpu: 0.0.40
codegen_flags: <defaults>
</compile_context>

<pallas_src>
import jax
import jax.numpy as jnp
from jax.experimental import pallas as pl
from jax.experimental.pallas import tpu as pltpu

EPS = 1e-5

OFF3 = [(dy, dx) for dy in (-1, 0, 1) for dx in (-1, 0, 1)]
OFF5 = [(dy, dx) for dy in (-2, -1, 0, 1, 2) for dx in (-2, -1, 0, 1, 2)]


def _bn_scale_shift(gamma, beta, mean, var, eps=EPS):
    scale = gamma / jnp.sqrt(var + eps)
    return scale, beta - mean * scale


def _sigmoid(y):
    # exact sigmoid via one EUP tanh (no approximate reciprocal)
    return 0.5 * jnp.tanh(0.5 * y) + 0.5


def _make_kernel(H, W, Cin, Cout, has_shortcut, bt):
    HW = H * W
    F32 = jnp.float32
    HI = jax.lax.Precision.HIGHEST

    def kernel(*refs):
        if has_shortcut:
            (x_ref, row_ref, col_ref, s1_ref, b1_ref, w1_ref, wsc_ref,
             s2_ref, b2_ref, w2_ref, cw_ref, o_ref, p1_scr, p2_scr) = refs
        else:
            (x_ref, row_ref, col_ref, s1_ref, b1_ref, w1_ref,
             s2_ref, b2_ref, w2_ref, cw_ref, o_ref, p1_scr, p2_scr) = refs
            wsc_ref = None

        row = row_ref[...]                  # (1, HW) int32: p // W
        col = col_ref[...]                  # (1, HW) int32: p %  W

        def border_mask(dy, dx):
            # valid destination positions for a (dy, dx) shift (zero padding)
            return ((row >= -dy) & (row < H - dy) &
                    (col >= -dx) & (col < W - dx))

        def shifted(val, dy, dx, ok):
            # val: (C, HW) row-major over (H, W): lane roll of the flattened
            # image + border mask == spatial shift with zero padding.
            if dy == 0 and dx == 0:
                return val
            moved = jnp.roll(val, -(dy * W + dx), axis=1)
            return jnp.where(ok, moved, 0.0)

        masks3 = [border_mask(dy, dx) for dy, dx in OFF3]
        masks5 = [border_mask(dy, dx) for dy, dx in OFF5]

        def conv3x3(a, w_r, pscr):
            # a: (C, HW); w_r: (Cout, 9*C).  Materialize the shifted-patch
            # matrix once in VMEM, then ONE MXU matmul with K = 9*C.
            c = a.shape[0]
            for t, (dy, dx) in enumerate(OFF3):
                pscr[t * c:(t + 1) * c, :] = shifted(a, dy, dx, masks3[t])
            return jnp.dot(w_r, pscr[...], precision=HI,
                           preferred_element_type=F32)

        for b in range(bt):
            x2 = x_ref[b]                                        # (Cin, HW)

            # ---- BN1 + ReLU ----
            a1 = jnp.maximum(x2 * s1_ref[...] + b1_ref[...], 0.0)

            # ---- shortcut: 1x1 conv of relu(bn1(x)) (or identity) ----
            if has_shortcut:
                sc = jnp.dot(wsc_ref[...], a1, precision=HI,
                             preferred_element_type=F32)         # (Cout, HW)
            else:
                sc = x2                                          # Cin == Cout

            # ---- conv1 (3x3, pad 1) -> BN2 + ReLU -> conv2 (3x3, pad 1) ----
            c1 = conv3x3(a1, w1_ref[...], p1_scr)                # (Cout, HW)
            a2 = jnp.maximum(c1 * s2_ref[...] + b2_ref[...], 0.0)
            c2 = conv3x3(a2, w2_ref[...], p2_scr)                # (Cout, HW)

            # ---- CBAM spatial attention ----
            # channel max/mean (sublane reduce), 5x5 conv as 50 scalar FMAs on
            # lane-dense (1, HW) maps; CBAM-BN scale folded into the weights.
            mx = jnp.max(c2, axis=0, keepdims=True)              # (1, HW)
            mn = jnp.mean(c2, axis=0, keepdims=True)             # (1, HW)
            y = jnp.zeros((1, HW), F32)
            for t, (dy, dx) in enumerate(OFF5):
                y = y + cw_ref[t] * shifted(mx, dy, dx, masks5[t])
                y = y + cw_ref[25 + t] * shifted(mn, dy, dx, masks5[t])
            y = y + cw_ref[50]                                   # folded BN shift
            att = _sigmoid(_sigmoid(y))                          # sigmoid(sigmoid(y))

            # ---- attention * conv2 + residual: lane-dense store ----
            o_ref[b] = c2 * att + sc

    return kernel


def preact_block_forward(x_nchw, params, *, batch_block=1):
    n, cin, h, w = x_nchw.shape
    cout = params['w1'].shape[0]
    hw = h * w
    has_sc = 'w_sc' in params
    if not has_sc and cin != cout:
        raise ValueError("identity shortcut requires in_planes == planes")
    if n % batch_block != 0:
        raise ValueError("batch_block must divide the batch size")
    # TODO(synk): stride > 1 (spatial downsampling) path not implemented.

    # NCHW -> (N, C, H*W): channels on sublanes, spatial on lanes (pure reshape).
    x_flat = x_nchw.reshape(n, cin, hw)

    s1, b1 = _bn_scale_shift(*params['bn1'])
    s2, b2 = _bn_scale_shift(*params['bn2'])
    g_c, b_c = _bn_scale_shift(*params['bn_cbam'])

    # 3x3 conv weights as (Cout, 9*C): tap-major (ky, kx), channel-minor --
    # matches the (9*C, HW) patch matrix built in-kernel.
    w1r = jnp.transpose(params['w1'], (0, 2, 3, 1)).reshape(cout, 9 * cin)
    w2r = jnp.transpose(params['w2'], (0, 2, 3, 1)).reshape(cout, 9 * cout)

    # CBAM 5x5 weights with BN scale folded in, flattened 1-D for SMEM:
    # [0:25] max-map taps, [25:50] mean-map taps, [50] folded BN shift.
    wc = params['w_cbam'][0] * g_c[0]                            # (2, 5, 5)
    cw = jnp.concatenate([wc[0].reshape(25), wc[1].reshape(25),
                          b_c.reshape(1)]).astype(jnp.float32)   # (51,)

    # Per-lane spatial coordinates (row-major flattening) for the border masks.
    row = (jnp.arange(hw, dtype=jnp.int32) // w).reshape(1, hw)
    col = (jnp.arange(hw, dtype=jnp.int32) % w).reshape(1, hw)

    def rep(shape):
        return pl.BlockSpec(shape, lambda i: (0,) * len(shape))

    smem_spec = pl.BlockSpec(memory_space=pltpu.MemorySpace.SMEM)

    in_specs = [pl.BlockSpec((batch_block, cin, hw), lambda i: (i, 0, 0)),
                rep((1, hw)), rep((1, hw)),
                rep((cin, 1)), rep((cin, 1)), rep((cout, 9 * cin))]
    args = [x_flat, row, col,
            s1.reshape(cin, 1), b1.reshape(cin, 1), w1r]
    if has_sc:
        in_specs.append(rep((cout, cin)))
        args.append(params['w_sc'].reshape(cout, cin))
    in_specs += [rep((cout, 1)), rep((cout, 1)),
                 rep((cout, 9 * cout)), smem_spec]
    args += [s2.reshape(cout, 1), b2.reshape(cout, 1), w2r, cw]

    out = pl.pallas_call(
        _make_kernel(h, w, cin, cout, has_sc, batch_block),
        out_shape=jax.ShapeDtypeStruct((n, cout, hw), jnp.float32),
        grid=(n // batch_block,),
        in_specs=in_specs,
        out_specs=pl.BlockSpec((batch_block, cout, hw), lambda i: (i, 0, 0)),
        scratch_shapes=[
            pltpu.VMEM((9 * cin, hw), jnp.float32),    # conv1 patch matrix
            pltpu.VMEM((9 * cout, hw), jnp.float32),   # conv2 patch matrix
        ],
        compiler_params=pltpu.CompilerParams(
            dimension_semantics=("parallel",)),
    )(*args)

    return out.reshape(n, cout, h, w)


# ---------------- pure-JAX reference (for verification) ----------------

def reference_forward(x, params):
    def bn(z, gamma, beta, mean, var):
        scale = gamma / jnp.sqrt(var + EPS)
        shift = beta - mean * scale
        return z * scale[None, :, None, None] + shift[None, :, None, None]

    def conv(z, wt, pad):
        return jax.lax.conv_general_dilated(
            z, wt, (1, 1), [(pad, pad), (pad, pad)],
            dimension_numbers=('NCHW', 'OIHW', 'NCHW'),
            precision=jax.lax.Precision.HIGHEST)

    out = jax.nn.relu(bn(x, *params['bn1']))
    shortcut = conv(out, params['w_sc'], 0) if 'w_sc' in params else x
    out = conv(out, params['w1'], 1)
    out = conv(jax.nn.relu(bn(out, *params['bn2'])), params['w2'], 1)
    mx = jnp.max(out, axis=1, keepdims=True)
    mn = jnp.mean(out, axis=1, keepdims=True)
    y = conv(jnp.concatenate([mx, mn], axis=1), params['w_cbam'], 2)
    y = bn(y, *params['bn_cbam'])
    y = jax.nn.sigmoid(y)
    out = out * jax.nn.sigmoid(y)
    return out + shortcut


if __name__ == "__main__":
    key = jax.random.PRNGKey(0)
    n, in_planes, planes, h, w = 2, 4, 8, 16, 16      # stride = 1
    ks = jax.random.split(key, 20)

    def bn_params(kg, kb, km, kv, c):
        return (jax.random.uniform(kg, (c,), jnp.float32, 0.5, 1.5),
                0.1 * jax.random.normal(kb, (c,), jnp.float32),
                0.1 * jax.random.normal(km, (c,), jnp.float32),
                jax.random.uniform(kv, (c,), jnp.float32, 0.5, 1.5))

    params = {
        'bn1': bn_params(ks[0], ks[1], ks[2], ks[3], in_planes),
        'w1': 0.2 * jax.random.normal(ks[4], (planes, in_planes, 3, 3), jnp.float32),
        'bn2': bn_params(ks[5], ks[6], ks[7], ks[8], planes),
        'w2': 0.2 * jax.random.normal(ks[9], (planes, planes, 3, 3), jnp.float32),
        'w_cbam': 0.2 * jax.random.normal(ks[10], (1, 2, 5, 5), jnp.float32),
        'bn_cbam': bn_params(ks[11], ks[12], ks[13], ks[14], 1),
        # shortcut 1x1 conv exists because in_planes != expansion*planes
        'w_sc': 0.2 * jax.random.normal(ks[15], (planes, in_planes, 1, 1), jnp.float32),
    }

    x = jax.random.normal(ks[16], (n, in_planes, h, w), jnp.float32)

    # batch_block=1, N=2 -> two parallel grid steps (one per v7x TensorCore).
    out = preact_block_forward(x, params, batch_block=1)
    out = jax.block_until_ready(out)

    ref = reference_forward(x, params)
    assert out.shape == (n, planes, h, w)
    if not jnp.allclose(out, ref, atol=2e-3, rtol=2e-3):
        raise AssertionError(
            f"mismatch vs reference, max abs err = {jnp.max(jnp.abs(out - ref))}")
    print("KERNEL_OK")
</pallas_src>

<mosaic_0001>
module attributes {stable_mosaic.version = 11 : i64} {
  func.func @kernel(%arg0: i32, %arg1: memref<1x4x256xf32, #tpu.memory_space<vmem>>, %arg2: memref<1x256xi32, #tpu.memory_space<vmem>>, %arg3: memref<1x256xi32, #tpu.memory_space<vmem>>, %arg4: memref<4x1xf32, #tpu.memory_space<vmem>>, %arg5: memref<4x1xf32, #tpu.memory_space<vmem>>, %arg6: memref<8x36xf32, #tpu.memory_space<vmem>>, %arg7: memref<8x4xf32, #tpu.memory_space<vmem>>, %arg8: memref<8x1xf32, #tpu.memory_space<vmem>>, %arg9: memref<8x1xf32, #tpu.memory_space<vmem>>, %arg10: memref<8x72xf32, #tpu.memory_space<vmem>>, %arg11: memref<51xf32, #tpu.memory_space<smem>>, %arg12: memref<1x8x256xf32, #tpu.memory_space<vmem>>, %arg13: memref<36x256xf32, #tpu.memory_space<vmem>>, %arg14: memref<72x256xf32, #tpu.memory_space<vmem>>) attributes {dimension_semantics = [#tpu.dimension_semantics<parallel>], iteration_bounds = array<i64: 2>, scalar_prefetch = 0 : i64, scratch_operands = 2 : i64, tpu.core_type = #tpu.core_type<tc>, window_params = [{transform_indices = @transform_0, window_bounds = array<i64: 1, 4, 256>}, {pipeline_mode = #tpu.pipeline_mode<synchronous>, transform_indices = @transform_1, window_bounds = array<i64: 1, 256>}, {pipeline_mode = #tpu.pipeline_mode<synchronous>, transform_indices = @transform_2, window_bounds = array<i64: 1, 256>}, {pipeline_mode = #tpu.pipeline_mode<synchronous>, transform_indices = @transform_3, window_bounds = array<i64: 4, 1>}, {pipeline_mode = #tpu.pipeline_mode<synchronous>, transform_indices = @transform_4, window_bounds = array<i64: 4, 1>}, {pipeline_mode = #tpu.pipeline_mode<synchronous>, transform_indices = @transform_5, window_bounds = array<i64: 8, 36>}, {pipeline_mode = #tpu.pipeline_mode<synchronous>, transform_indices = @transform_6, window_bounds = array<i64: 8, 4>}, {pipeline_mode = #tpu.pipeline_mode<synchronous>, transform_indices = @transform_7, window_bounds = array<i64: 8, 1>}, {pipeline_mode = #tpu.pipeline_mode<synchronous>, transform_indices = @transform_8, window_bounds = array<i64: 8, 1>}, {pipeline_mode = #tpu.pipeline_mode<synchronous>, transform_indices = @transform_9, window_bounds = array<i64: 8, 72>}, {transform_indices = @transform_10, window_bounds = array<i64: 51>}, {transform_indices = @transform_11, window_bounds = array<i64: 1, 8, 256>}]} {
    %c0 = arith.constant 0 : index
    %c0_0 = arith.constant 0 : index
    %0 = vector.load %arg2[%c0, %c0_0] : memref<1x256xi32, #tpu.memory_space<vmem>>, vector<1x256xi32>
    %c0_1 = arith.constant 0 : index
    %c0_2 = arith.constant 0 : index
    %1 = vector.load %arg3[%c0_1, %c0_2] : memref<1x256xi32, #tpu.memory_space<vmem>>, vector<1x256xi32>
    %c1_i32 = arith.constant 1 : i32
    %2 = vector.broadcast %c1_i32 : i32 to vector<1x256xi32>
    %3 = arith.cmpi sge, %0, %2 : vector<1x256xi32>
    %c17_i32 = arith.constant 17 : i32
    %4 = vector.broadcast %c17_i32 : i32 to vector<1x256xi32>
    %5 = arith.cmpi slt, %0, %4 : vector<1x256xi32>
    %6 = arith.andi %3, %5 : vector<1x256xi1>
    %c1_i32_3 = arith.constant 1 : i32
    %7 = vector.broadcast %c1_i32_3 : i32 to vector<1x256xi32>
    %8 = arith.cmpi sge, %1, %7 : vector<1x256xi32>
    %9 = arith.andi %6, %8 : vector<1x256xi1>
    %c17_i32_4 = arith.constant 17 : i32
    %10 = vector.broadcast %c17_i32_4 : i32 to vector<1x256xi32>
    %11 = arith.cmpi slt, %1, %10 : vector<1x256xi32>
    %12 = arith.andi %9, %11 : vector<1x256xi1>
    %c1_i32_5 = arith.constant 1 : i32
    %13 = vector.broadcast %c1_i32_5 : i32 to vector<1x256xi32>
    %14 = arith.cmpi sge, %0, %13 : vector<1x256xi32>
    %c17_i32_6 = arith.constant 17 : i32
    %15 = vector.broadcast %c17_i32_6 : i32 to vector<1x256xi32>
    %16 = arith.cmpi slt, %0, %15 : vector<1x256xi32>
    %17 = arith.andi %14, %16 : vector<1x256xi1>
    %c0_i32 = arith.constant 0 : i32
    %18 = vector.broadcast %c0_i32 : i32 to vector<1x256xi32>
    %19 = arith.cmpi sge, %1, %18 : vector<1x256xi32>
    %20 = arith.andi %17, %19 : vector<1x256xi1>
    %c16_i32 = arith.constant 16 : i32
    %21 = vector.broadcast %c16_i32 : i32 to vector<1x256xi32>
    %22 = arith.cmpi slt, %1, %21 : vector<1x256xi32>
    %23 = arith.andi %20, %22 : vector<1x256xi1>
    %c1_i32_7 = arith.constant 1 : i32
    %24 = vector.broadcast %c1_i32_7 : i32 to vector<1x256xi32>
    %25 = arith.cmpi sge, %0, %24 : vector<1x256xi32>
    %c17_i32_8 = arith.constant 17 : i32
    %26 = vector.broadcast %c17_i32_8 : i32 to vector<1x256xi32>
    %27 = arith.cmpi slt, %0, %26 : vector<1x256xi32>
    %28 = arith.andi %25, %27 : vector<1x256xi1>
    %c-1_i32 = arith.constant -1 : i32
    %29 = vector.broadcast %c-1_i32 : i32 to vector<1x256xi32>
    %30 = arith.cmpi sge, %1, %29 : vector<1x256xi32>
    %31 = arith.andi %28, %30 : vector<1x256xi1>
    %c15_i32 = arith.constant 15 : i32
    %32 = vector.broadcast %c15_i32 : i32 to vector<1x256xi32>
    %33 = arith.cmpi slt, %1, %32 : vector<1x256xi32>
    %34 = arith.andi %31, %33 : vector<1x256xi1>
    %c0_i32_9 = arith.constant 0 : i32
    %35 = vector.broadcast %c0_i32_9 : i32 to vector<1x256xi32>
    %36 = arith.cmpi sge, %0, %35 : vector<1x256xi32>
    %c16_i32_10 = arith.constant 16 : i32
    %37 = vector.broadcast %c16_i32_10 : i32 to vector<1x256xi32>
    %38 = arith.cmpi slt, %0, %37 : vector<1x256xi32>
    %39 = arith.andi %36, %38 : vector<1x256xi1>
    %c1_i32_11 = arith.constant 1 : i32
    %40 = vector.broadcast %c1_i32_11 : i32 to vector<1x256xi32>
    %41 = arith.cmpi sge, %1, %40 : vector<1x256xi32>
    %42 = arith.andi %39, %41 : vector<1x256xi1>
    %c17_i32_12 = arith.constant 17 : i32
    %43 = vector.broadcast %c17_i32_12 : i32 to vector<1x256xi32>
    %44 = arith.cmpi slt, %1, %43 : vector<1x256xi32>
    %45 = arith.andi %42, %44 : vector<1x256xi1>
    %c0_i32_13 = arith.constant 0 : i32
    %46 = vector.broadcast %c0_i32_13 : i32 to vector<1x256xi32>
    %47 = arith.cmpi sge, %0, %46 : vector<1x256xi32>
    %c16_i32_14 = arith.constant 16 : i32
    %48 = vector.broadcast %c16_i32_14 : i32 to vector<1x256xi32>
    %49 = arith.cmpi slt, %0, %48 : vector<1x256xi32>
    %50 = arith.andi %47, %49 : vector<1x256xi1>
    %c-1_i32_15 = arith.constant -1 : i32
    %51 = vector.broadcast %c-1_i32_15 : i32 to vector<1x256xi32>
    %52 = arith.cmpi sge, %1, %51 : vector<1x256xi32>
    %53 = arith.andi %50, %52 : vector<1x256xi1>
    %c15_i32_16 = arith.constant 15 : i32
    %54 = vector.broadcast %c15_i32_16 : i32 to vector<1x256xi32>
    %55 = arith.cmpi slt, %1, %54 : vector<1x256xi32>
    %56 = arith.andi %53, %55 : vector<1x256xi1>
    %c-1_i32_17 = arith.constant -1 : i32
    %57 = vector.broadcast %c-1_i32_17 : i32 to vector<1x256xi32>
    %58 = arith.cmpi sge, %0, %57 : vector<1x256xi32>
    %c15_i32_18 = arith.constant 15 : i32
    %59 = vector.broadcast %c15_i32_18 : i32 to vector<1x256xi32>
    %60 = arith.cmpi slt, %0, %59 : vector<1x256xi32>
    %61 = arith.andi %58, %60 : vector<1x256xi1>
    %c1_i32_19 = arith.constant 1 : i32
    %62 = vector.broadcast %c1_i32_19 : i32 to vector<1x256xi32>
    %63 = arith.cmpi sge, %1, %62 : vector<1x256xi32>
    %64 = arith.andi %61, %63 : vector<1x256xi1>
    %c17_i32_20 = arith.constant 17 : i32
    %65 = vector.broadcast %c17_i32_20 : i32 to vector<1x256xi32>
    %66 = arith.cmpi slt, %1, %65 : vector<1x256xi32>
    %67 = arith.andi %64, %66 : vector<1x256xi1>
    %c-1_i32_21 = arith.constant -1 : i32
    %68 = vector.broadcast %c-1_i32_21 : i32 to vector<1x256xi32>
    %69 = arith.cmpi sge, %0, %68 : vector<1x256xi32>
    %c15_i32_22 = arith.constant 15 : i32
    %70 = vector.broadcast %c15_i32_22 : i32 to vector<1x256xi32>
    %71 = arith.cmpi slt, %0, %70 : vector<1x256xi32>
    %72 = arith.andi %69, %71 : vector<1x256xi1>
    %c0_i32_23 = arith.constant 0 : i32
    %73 = vector.broadcast %c0_i32_23 : i32 to vector<1x256xi32>
    %74 = arith.cmpi sge, %1, %73 : vector<1x256xi32>
    %75 = arith.andi %72, %74 : vector<1x256xi1>
    %c16_i32_24 = arith.constant 16 : i32
    %76 = vector.broadcast %c16_i32_24 : i32 to vector<1x256xi32>
    %77 = arith.cmpi slt, %1, %76 : vector<1x256xi32>
    %78 = arith.andi %75, %77 : vector<1x256xi1>
    %c-1_i32_25 = arith.constant -1 : i32
    %79 = vector.broadcast %c-1_i32_25 : i32 to vector<1x256xi32>
    %80 = arith.cmpi sge, %0, %79 : vector<1x256xi32>
    %c15_i32_26 = arith.constant 15 : i32
    %81 = vector.broadcast %c15_i32_26 : i32 to vector<1x256xi32>
    %82 = arith.cmpi slt, %0, %81 : vector<1x256xi32>
    %83 = arith.andi %80, %82 : vector<1x256xi1>
    %c-1_i32_27 = arith.constant -1 : i32
    %84 = vector.broadcast %c-1_i32_27 : i32 to vector<1x256xi32>
    %85 = arith.cmpi sge, %1, %84 : vector<1x256xi32>
    %86 = arith.andi %83, %85 : vector<1x256xi1>
    %c15_i32_28 = arith.constant 15 : i32
    %87 = vector.broadcast %c15_i32_28 : i32 to vector<1x256xi32>
    %88 = arith.cmpi slt, %1, %87 : vector<1x256xi32>
    %89 = arith.andi %86, %88 : vector<1x256xi1>
    %c2_i32 = arith.constant 2 : i32
    %90 = vector.broadcast %c2_i32 : i32 to vector<1x256xi32>
    %91 = arith.cmpi sge, %0, %90 : vector<1x256xi32>
    %c18_i32 = arith.constant 18 : i32
    %92 = vector.broadcast %c18_i32 : i32 to vector<1x256xi32>
    %93 = arith.cmpi slt, %0, %92 : vector<1x256xi32>
    %94 = arith.andi %91, %93 : vector<1x256xi1>
    %c2_i32_29 = arith.constant 2 : i32
    %95 = vector.broadcast %c2_i32_29 : i32 to vector<1x256xi32>
    %96 = arith.cmpi sge, %1, %95 : vector<1x256xi32>
    %97 = arith.andi %94, %96 : vector<1x256xi1>
    %c18_i32_30 = arith.constant 18 : i32
    %98 = vector.broadcast %c18_i32_30 : i32 to vector<1x256xi32>
    %99 = arith.cmpi slt, %1, %98 : vector<1x256xi32>
    %100 = arith.andi %97, %99 : vector<1x256xi1>
    %c2_i32_31 = arith.constant 2 : i32
    %101 = vector.broadcast %c2_i32_31 : i32 to vector<1x256xi32>
    %102 = arith.cmpi sge, %0, %101 : vector<1x256xi32>
    %c18_i32_32 = arith.constant 18 : i32
    %103 = vector.broadcast %c18_i32_32 : i32 to vector<1x256xi32>
    %104 = arith.cmpi slt, %0, %103 : vector<1x256xi32>
    %105 = arith.andi %102, %104 : vector<1x256xi1>
    %c1_i32_33 = arith.constant 1 : i32
    %106 = vector.broadcast %c1_i32_33 : i32 to vector<1x256xi32>
    %107 = arith.cmpi sge, %1, %106 : vector<1x256xi32>
    %108 = arith.andi %105, %107 : vector<1x256xi1>
    %c17_i32_34 = arith.constant 17 : i32
    %109 = vector.broadcast %c17_i32_34 : i32 to vector<1x256xi32>
    %110 = arith.cmpi slt, %1, %109 : vector<1x256xi32>
    %111 = arith.andi %108, %110 : vector<1x256xi1>
    %c2_i32_35 = arith.constant 2 : i32
    %112 = vector.broadcast %c2_i32_35 : i32 to vector<1x256xi32>
    %113 = arith.cmpi sge, %0, %112 : vector<1x256xi32>
    %c18_i32_36 = arith.constant 18 : i32
    %114 = vector.broadcast %c18_i32_36 : i32 to vector<1x256xi32>
    %115 = arith.cmpi slt, %0, %114 : vector<1x256xi32>
    %116 = arith.andi %113, %115 : vector<1x256xi1>
    %c0_i32_37 = arith.constant 0 : i32
    %117 = vector.broadcast %c0_i32_37 : i32 to vector<1x256xi32>
    %118 = arith.cmpi sge, %1, %117 : vector<1x256xi32>
    %119 = arith.andi %116, %118 : vector<1x256xi1>
    %c16_i32_38 = arith.constant 16 : i32
    %120 = vector.broadcast %c16_i32_38 : i32 to vector<1x256xi32>
    %121 = arith.cmpi slt, %1, %120 : vector<1x256xi32>
    %122 = arith.andi %119, %121 : vector<1x256xi1>
    %c2_i32_39 = arith.constant 2 : i32
    %123 = vector.broadcast %c2_i32_39 : i32 to vector<1x256xi32>
    %124 = arith.cmpi sge, %0, %123 : vector<1x256xi32>
    %c18_i32_40 = arith.constant 18 : i32
    %125 = vector.broadcast %c18_i32_40 : i32 to vector<1x256xi32>
    %126 = arith.cmpi slt, %0, %125 : vector<1x256xi32>
    %127 = arith.andi %124, %126 : vector<1x256xi1>
    %c-1_i32_41 = arith.constant -1 : i32
    %128 = vector.broadcast %c-1_i32_41 : i32 to vector<1x256xi32>
    %129 = arith.cmpi sge, %1, %128 : vector<1x256xi32>
    %130 = arith.andi %127, %129 : vector<1x256xi1>
    %c15_i32_42 = arith.constant 15 : i32
    %131 = vector.broadcast %c15_i32_42 : i32 to vector<1x256xi32>
    %132 = arith.cmpi slt, %1, %131 : vector<1x256xi32>
    %133 = arith.andi %130, %132 : vector<1x256xi1>
    %c2_i32_43 = arith.constant 2 : i32
    %134 = vector.broadcast %c2_i32_43 : i32 to vector<1x256xi32>
    %135 = arith.cmpi sge, %0, %134 : vector<1x256xi32>
    %c18_i32_44 = arith.constant 18 : i32
    %136 = vector.broadcast %c18_i32_44 : i32 to vector<1x256xi32>
    %137 = arith.cmpi slt, %0, %136 : vector<1x256xi32>
    %138 = arith.andi %135, %137 : vector<1x256xi1>
    %c-2_i32 = arith.constant -2 : i32
    %139 = vector.broadcast %c-2_i32 : i32 to vector<1x256xi32>
    %140 = arith.cmpi sge, %1, %139 : vector<1x256xi32>
    %141 = arith.andi %138, %140 : vector<1x256xi1>
    %c14_i32 = arith.constant 14 : i32
    %142 = vector.broadcast %c14_i32 : i32 to vector<1x256xi32>
    %143 = arith.cmpi slt, %1, %142 : vector<1x256xi32>
    %144 = arith.andi %141, %143 : vector<1x256xi1>
    %c1_i32_45 = arith.constant 1 : i32
    %145 = vector.broadcast %c1_i32_45 : i32 to vector<1x256xi32>
    %146 = arith.cmpi sge, %0, %145 : vector<1x256xi32>
    %c17_i32_46 = arith.constant 17 : i32
    %147 = vector.broadcast %c17_i32_46 : i32 to vector<1x256xi32>
    %148 = arith.cmpi slt, %0, %147 : vector<1x256xi32>
    %149 = arith.andi %146, %148 : vector<1x256xi1>
    %c2_i32_47 = arith.constant 2 : i32
    %150 = vector.broadcast %c2_i32_47 : i32 to vector<1x256xi32>
    %151 = arith.cmpi sge, %1, %150 : vector<1x256xi32>
    %152 = arith.andi %149, %151 : vector<1x256xi1>
    %c18_i32_48 = arith.constant 18 : i32
    %153 = vector.broadcast %c18_i32_48 : i32 to vector<1x256xi32>
    %154 = arith.cmpi slt, %1, %153 : vector<1x256xi32>
    %155 = arith.andi %152, %154 : vector<1x256xi1>
    %c1_i32_49 = arith.constant 1 : i32
    %156 = vector.broadcast %c1_i32_49 : i32 to vector<1x256xi32>
    %157 = arith.cmpi sge, %0, %156 : vector<1x256xi32>
    %c17_i32_50 = arith.constant 17 : i32
    %158 = vector.broadcast %c17_i32_50 : i32 to vector<1x256xi32>
    %159 = arith.cmpi slt, %0, %158 : vector<1x256xi32>
    %160 = arith.andi %157, %159 : vector<1x256xi1>
    %c1_i32_51 = arith.constant 1 : i32
    %161 = vector.broadcast %c1_i32_51 : i32 to vector<1x256xi32>
    %162 = arith.cmpi sge, %1, %161 : vector<1x256xi32>
    %163 = arith.andi %160, %162 : vector<1x256xi1>
    %c17_i32_52 = arith.constant 17 : i32
    %164 = vector.broadcast %c17_i32_52 : i32 to vector<1x256xi32>
    %165 = arith.cmpi slt, %1, %164 : vector<1x256xi32>
    %166 = arith.andi %163, %165 : vector<1x256xi1>
    %c1_i32_53 = arith.constant 1 : i32
    %167 = vector.broadcast %c1_i32_53 : i32 to vector<1x256xi32>
    %168 = arith.cmpi sge, %0, %167 : vector<1x256xi32>
    %c17_i32_54 = arith.constant 17 : i32
    %169 = vector.broadcast %c17_i32_54 : i32 to vector<1x256xi32>
    %170 = arith.cmpi slt, %0, %169 : vector<1x256xi32>
    %171 = arith.andi %168, %170 : vector<1x256xi1>
    %c0_i32_55 = arith.constant 0 : i32
    %172 = vector.broadcast %c0_i32_55 : i32 to vector<1x256xi32>
    %173 = arith.cmpi sge, %1, %172 : vector<1x256xi32>
    %174 = arith.andi %171, %173 : vector<1x256xi1>
    %c16_i32_56 = arith.constant 16 : i32
    %175 = vector.broadcast %c16_i32_56 : i32 to vector<1x256xi32>
    %176 = arith.cmpi slt, %1, %175 : vector<1x256xi32>
    %177 = arith.andi %174, %176 : vector<1x256xi1>
    %c1_i32_57 = arith.constant 1 : i32
    %178 = vector.broadcast %c1_i32_57 : i32 to vector<1x256xi32>
    %179 = arith.cmpi sge, %0, %178 : vector<1x256xi32>
    %c17_i32_58 = arith.constant 17 : i32
    %180 = vector.broadcast %c17_i32_58 : i32 to vector<1x256xi32>
    %181 = arith.cmpi slt, %0, %180 : vector<1x256xi32>
    %182 = arith.andi %179, %181 : vector<1x256xi1>
    %c-1_i32_59 = arith.constant -1 : i32
    %183 = vector.broadcast %c-1_i32_59 : i32 to vector<1x256xi32>
    %184 = arith.cmpi sge, %1, %183 : vector<1x256xi32>
    %185 = arith.andi %182, %184 : vector<1x256xi1>
    %c15_i32_60 = arith.constant 15 : i32
    %186 = vector.broadcast %c15_i32_60 : i32 to vector<1x256xi32>
    %187 = arith.cmpi slt, %1, %186 : vector<1x256xi32>
    %188 = arith.andi %185, %187 : vector<1x256xi1>
    %c1_i32_61 = arith.constant 1 : i32
    %189 = vector.broadcast %c1_i32_61 : i32 to vector<1x256xi32>
    %190 = arith.cmpi sge, %0, %189 : vector<1x256xi32>
    %c17_i32_62 = arith.constant 17 : i32
    %191 = vector.broadcast %c17_i32_62 : i32 to vector<1x256xi32>
    %192 = arith.cmpi slt, %0, %191 : vector<1x256xi32>
    %193 = arith.andi %190, %192 : vector<1x256xi1>
    %c-2_i32_63 = arith.constant -2 : i32
    %194 = vector.broadcast %c-2_i32_63 : i32 to vector<1x256xi32>
    %195 = arith.cmpi sge, %1, %194 : vector<1x256xi32>
    %196 = arith.andi %193, %195 : vector<1x256xi1>
    %c14_i32_64 = arith.constant 14 : i32
    %197 = vector.broadcast %c14_i32_64 : i32 to vector<1x256xi32>
    %198 = arith.cmpi slt, %1, %197 : vector<1x256xi32>
    %199 = arith.andi %196, %198 : vector<1x256xi1>
    %c0_i32_65 = arith.constant 0 : i32
    %200 = vector.broadcast %c0_i32_65 : i32 to vector<1x256xi32>
    %201 = arith.cmpi sge, %0, %200 : vector<1x256xi32>
    %c16_i32_66 = arith.constant 16 : i32
    %202 = vector.broadcast %c16_i32_66 : i32 to vector<1x256xi32>
    %203 = arith.cmpi slt, %0, %202 : vector<1x256xi32>
    %204 = arith.andi %201, %203 : vector<1x256xi1>
    %c2_i32_67 = arith.constant 2 : i32
    %205 = vector.broadcast %c2_i32_67 : i32 to vector<1x256xi32>
    %206 = arith.cmpi sge, %1, %205 : vector<1x256xi32>
    %207 = arith.andi %204, %206 : vector<1x256xi1>
    %c18_i32_68 = arith.constant 18 : i32
    %208 = vector.broadcast %c18_i32_68 : i32 to vector<1x256xi32>
    %209 = arith.cmpi slt, %1, %208 : vector<1x256xi32>
    %210 = arith.andi %207, %209 : vector<1x256xi1>
    %c0_i32_69 = arith.constant 0 : i32
    %211 = vector.broadcast %c0_i32_69 : i32 to vector<1x256xi32>
    %212 = arith.cmpi sge, %0, %211 : vector<1x256xi32>
    %c16_i32_70 = arith.constant 16 : i32
    %213 = vector.broadcast %c16_i32_70 : i32 to vector<1x256xi32>
    %214 = arith.cmpi slt, %0, %213 : vector<1x256xi32>
    %215 = arith.andi %212, %214 : vector<1x256xi1>
    %c1_i32_71 = arith.constant 1 : i32
    %216 = vector.broadcast %c1_i32_71 : i32 to vector<1x256xi32>
    %217 = arith.cmpi sge, %1, %216 : vector<1x256xi32>
    %218 = arith.andi %215, %217 : vector<1x256xi1>
    %c17_i32_72 = arith.constant 17 : i32
    %219 = vector.broadcast %c17_i32_72 : i32 to vector<1x256xi32>
    %220 = arith.cmpi slt, %1, %219 : vector<1x256xi32>
    %221 = arith.andi %218, %220 : vector<1x256xi1>
    %c0_i32_73 = arith.constant 0 : i32
    %222 = vector.broadcast %c0_i32_73 : i32 to vector<1x256xi32>
    %223 = arith.cmpi sge, %0, %222 : vector<1x256xi32>
    %c16_i32_74 = arith.constant 16 : i32
    %224 = vector.broadcast %c16_i32_74 : i32 to vector<1x256xi32>
    %225 = arith.cmpi slt, %0, %224 : vector<1x256xi32>
    %226 = arith.andi %223, %225 : vector<1x256xi1>
    %c-1_i32_75 = arith.constant -1 : i32
    %227 = vector.broadcast %c-1_i32_75 : i32 to vector<1x256xi32>
    %228 = arith.cmpi sge, %1, %227 : vector<1x256xi32>
    %229 = arith.andi %226, %228 : vector<1x256xi1>
    %c15_i32_76 = arith.constant 15 : i32
    %230 = vector.broadcast %c15_i32_76 : i32 to vector<1x256xi32>
    %231 = arith.cmpi slt, %1, %230 : vector<1x256xi32>
    %232 = arith.andi %229, %231 : vector<1x256xi1>
    %c0_i32_77 = arith.constant 0 : i32
    %233 = vector.broadcast %c0_i32_77 : i32 to vector<1x256xi32>
    %234 = arith.cmpi sge, %0, %233 : vector<1x256xi32>
    %c16_i32_78 = arith.constant 16 : i32
    %235 = vector.broadcast %c16_i32_78 : i32 to vector<1x256xi32>
    %236 = arith.cmpi slt, %0, %235 : vector<1x256xi32>
    %237 = arith.andi %234, %236 : vector<1x256xi1>
    %c-2_i32_79 = arith.constant -2 : i32
    %238 = vector.broadcast %c-2_i32_79 : i32 to vector<1x256xi32>
    %239 = arith.cmpi sge, %1, %238 : vector<1x256xi32>
    %240 = arith.andi %237, %239 : vector<1x256xi1>
    %c14_i32_80 = arith.constant 14 : i32
    %241 = vector.broadcast %c14_i32_80 : i32 to vector<1x256xi32>
    %242 = arith.cmpi slt, %1, %241 : vector<1x256xi32>
    %243 = arith.andi %240, %242 : vector<1x256xi1>
    %c-1_i32_81 = arith.constant -1 : i32
    %244 = vector.broadcast %c-1_i32_81 : i32 to vector<1x256xi32>
    %245 = arith.cmpi sge, %0, %244 : vector<1x256xi32>
    %c15_i32_82 = arith.constant 15 : i32
    %246 = vector.broadcast %c15_i32_82 : i32 to vector<1x256xi32>
    %247 = arith.cmpi slt, %0, %246 : vector<1x256xi32>
    %248 = arith.andi %245, %247 : vector<1x256xi1>
    %c2_i32_83 = arith.constant 2 : i32
    %249 = vector.broadcast %c2_i32_83 : i32 to vector<1x256xi32>
    %250 = arith.cmpi sge, %1, %249 : vector<1x256xi32>
    %251 = arith.andi %248, %250 : vector<1x256xi1>
    %c18_i32_84 = arith.constant 18 : i32
    %252 = vector.broadcast %c18_i32_84 : i32 to vector<1x256xi32>
    %253 = arith.cmpi slt, %1, %252 : vector<1x256xi32>
    %254 = arith.andi %251, %253 : vector<1x256xi1>
    %c-1_i32_85 = arith.constant -1 : i32
    %255 = vector.broadcast %c-1_i32_85 : i32 to vector<1x256xi32>
    %256 = arith.cmpi sge, %0, %255 : vector<1x256xi32>
    %c15_i32_86 = arith.constant 15 : i32
    %257 = vector.broadcast %c15_i32_86 : i32 to vector<1x256xi32>
    %258 = arith.cmpi slt, %0, %257 : vector<1x256xi32>
    %259 = arith.andi %256, %258 : vector<1x256xi1>
    %c1_i32_87 = arith.constant 1 : i32
    %260 = vector.broadcast %c1_i32_87 : i32 to vector<1x256xi32>
    %261 = arith.cmpi sge, %1, %260 : vector<1x256xi32>
    %262 = arith.andi %259, %261 : vector<1x256xi1>
    %c17_i32_88 = arith.constant 17 : i32
    %263 = vector.broadcast %c17_i32_88 : i32 to vector<1x256xi32>
    %264 = arith.cmpi slt, %1, %263 : vector<1x256xi32>
    %265 = arith.andi %262, %264 : vector<1x256xi1>
    %c-1_i32_89 = arith.constant -1 : i32
    %266 = vector.broadcast %c-1_i32_89 : i32 to vector<1x256xi32>
    %267 = arith.cmpi sge, %0, %266 : vector<1x256xi32>
    %c15_i32_90 = arith.constant 15 : i32
    %268 = vector.broadcast %c15_i32_90 : i32 to vector<1x256xi32>
    %269 = arith.cmpi slt, %0, %268 : vector<1x256xi32>
    %270 = arith.andi %267, %269 : vector<1x256xi1>
    %c0_i32_91 = arith.constant 0 : i32
    %271 = vector.broadcast %c0_i32_91 : i32 to vector<1x256xi32>
    %272 = arith.cmpi sge, %1, %271 : vector<1x256xi32>
    %273 = arith.andi %270, %272 : vector<1x256xi1>
    %c16_i32_92 = arith.constant 16 : i32
    %274 = vector.broadcast %c16_i32_92 : i32 to vector<1x256xi32>
    %275 = arith.cmpi slt, %1, %274 : vector<1x256xi32>
    %276 = arith.andi %273, %275 : vector<1x256xi1>
    %c-1_i32_93 = arith.constant -1 : i32
    %277 = vector.broadcast %c-1_i32_93 : i32 to vector<1x256xi32>
    %278 = arith.cmpi sge, %0, %277 : vector<1x256xi32>
    %c15_i32_94 = arith.constant 15 : i32
    %279 = vector.broadcast %c15_i32_94 : i32 to vector<1x256xi32>
    %280 = arith.cmpi slt, %0, %279 : vector<1x256xi32>
    %281 = arith.andi %278, %280 : vector<1x256xi1>
    %c-1_i32_95 = arith.constant -1 : i32
    %282 = vector.broadcast %c-1_i32_95 : i32 to vector<1x256xi32>
    %283 = arith.cmpi sge, %1, %282 : vector<1x256xi32>
    %284 = arith.andi %281, %283 : vector<1x256xi1>
    %c15_i32_96 = arith.constant 15 : i32
    %285 = vector.broadcast %c15_i32_96 : i32 to vector<1x256xi32>
    %286 = arith.cmpi slt, %1, %285 : vector<1x256xi32>
    %287 = arith.andi %284, %286 : vector<1x256xi1>
    %c-1_i32_97 = arith.constant -1 : i32
    %288 = vector.broadcast %c-1_i32_97 : i32 to vector<1x256xi32>
    %289 = arith.cmpi sge, %0, %288 : vector<1x256xi32>
    %c15_i32_98 = arith.constant 15 : i32
    %290 = vector.broadcast %c15_i32_98 : i32 to vector<1x256xi32>
    %291 = arith.cmpi slt, %0, %290 : vector<1x256xi32>
    %292 = arith.andi %289, %291 : vector<1x256xi1>
    %c-2_i32_99 = arith.constant -2 : i32
    %293 = vector.broadcast %c-2_i32_99 : i32 to vector<1x256xi32>
    %294 = arith.cmpi sge, %1, %293 : vector<1x256xi32>
    %295 = arith.andi %292, %294 : vector<1x256xi1>
    %c14_i32_100 = arith.constant 14 : i32
    %296 = vector.broadcast %c14_i32_100 : i32 to vector<1x256xi32>
    %297 = arith.cmpi slt, %1, %296 : vector<1x256xi32>
    %298 = arith.andi %295, %297 : vector<1x256xi1>
    %c-2_i32_101 = arith.constant -2 : i32
    %299 = vector.broadcast %c-2_i32_101 : i32 to vector<1x256xi32>
    %300 = arith.cmpi sge, %0, %299 : vector<1x256xi32>
    %c14_i32_102 = arith.constant 14 : i32
    %301 = vector.broadcast %c14_i32_102 : i32 to vector<1x256xi32>
    %302 = arith.cmpi slt, %0, %301 : vector<1x256xi32>
    %303 = arith.andi %300, %302 : vector<1x256xi1>
    %c2_i32_103 = arith.constant 2 : i32
    %304 = vector.broadcast %c2_i32_103 : i32 to vector<1x256xi32>
    %305 = arith.cmpi sge, %1, %304 : vector<1x256xi32>
    %306 = arith.andi %303, %305 : vector<1x256xi1>
    %c18_i32_104 = arith.constant 18 : i32
    %307 = vector.broadcast %c18_i32_104 : i32 to vector<1x256xi32>
    %308 = arith.cmpi slt, %1, %307 : vector<1x256xi32>
    %309 = arith.andi %306, %308 : vector<1x256xi1>
    %c-2_i32_105 = arith.constant -2 : i32
    %310 = vector.broadcast %c-2_i32_105 : i32 to vector<1x256xi32>
    %311 = arith.cmpi sge, %0, %310 : vector<1x256xi32>
    %c14_i32_106 = arith.constant 14 : i32
    %312 = vector.broadcast %c14_i32_106 : i32 to vector<1x256xi32>
    %313 = arith.cmpi slt, %0, %312 : vector<1x256xi32>
    %314 = arith.andi %311, %313 : vector<1x256xi1>
    %c1_i32_107 = arith.constant 1 : i32
    %315 = vector.broadcast %c1_i32_107 : i32 to vector<1x256xi32>
    %316 = arith.cmpi sge, %1, %315 : vector<1x256xi32>
    %317 = arith.andi %314, %316 : vector<1x256xi1>
    %c17_i32_108 = arith.constant 17 : i32
    %318 = vector.broadcast %c17_i32_108 : i32 to vector<1x256xi32>
    %319 = arith.cmpi slt, %1, %318 : vector<1x256xi32>
    %320 = arith.andi %317, %319 : vector<1x256xi1>
    %c-2_i32_109 = arith.constant -2 : i32
    %321 = vector.broadcast %c-2_i32_109 : i32 to vector<1x256xi32>
    %322 = arith.cmpi sge, %0, %321 : vector<1x256xi32>
    %c14_i32_110 = arith.constant 14 : i32
    %323 = vector.broadcast %c14_i32_110 : i32 to vector<1x256xi32>
    %324 = arith.cmpi slt, %0, %323 : vector<1x256xi32>
    %325 = arith.andi %322, %324 : vector<1x256xi1>
    %c0_i32_111 = arith.constant 0 : i32
    %326 = vector.broadcast %c0_i32_111 : i32 to vector<1x256xi32>
    %327 = arith.cmpi sge, %1, %326 : vector<1x256xi32>
    %328 = arith.andi %325, %327 : vector<1x256xi1>
    %c16_i32_112 = arith.constant 16 : i32
    %329 = vector.broadcast %c16_i32_112 : i32 to vector<1x256xi32>
    %330 = arith.cmpi slt, %1, %329 : vector<1x256xi32>
    %331 = arith.andi %328, %330 : vector<1x256xi1>
    %c-2_i32_113 = arith.constant -2 : i32
    %332 = vector.broadcast %c-2_i32_113 : i32 to vector<1x256xi32>
    %333 = arith.cmpi sge, %0, %332 : vector<1x256xi32>
    %c14_i32_114 = arith.constant 14 : i32
    %334 = vector.broadcast %c14_i32_114 : i32 to vector<1x256xi32>
    %335 = arith.cmpi slt, %0, %334 : vector<1x256xi32>
    %336 = arith.andi %333, %335 : vector<1x256xi1>
    %c-1_i32_115 = arith.constant -1 : i32
    %337 = vector.broadcast %c-1_i32_115 : i32 to vector<1x256xi32>
    %338 = arith.cmpi sge, %1, %337 : vector<1x256xi32>
    %339 = arith.andi %336, %338 : vector<1x256xi1>
    %c15_i32_116 = arith.constant 15 : i32
    %340 = vector.broadcast %c15_i32_116 : i32 to vector<1x256xi32>
    %341 = arith.cmpi slt, %1, %340 : vector<1x256xi32>
    %342 = arith.andi %339, %341 : vector<1x256xi1>
    %c-2_i32_117 = arith.constant -2 : i32
    %343 = vector.broadcast %c-2_i32_117 : i32 to vector<1x256xi32>
    %344 = arith.cmpi sge, %0, %343 : vector<1x256xi32>
    %c14_i32_118 = arith.constant 14 : i32
    %345 = vector.broadcast %c14_i32_118 : i32 to vector<1x256xi32>
    %346 = arith.cmpi slt, %0, %345 : vector<1x256xi32>
    %347 = arith.andi %344, %346 : vector<1x256xi1>
    %c-2_i32_119 = arith.constant -2 : i32
    %348 = vector.broadcast %c-2_i32_119 : i32 to vector<1x256xi32>
    %349 = arith.cmpi sge, %1, %348 : vector<1x256xi32>
    %350 = arith.andi %347, %349 : vector<1x256xi1>
    %c14_i32_120 = arith.constant 14 : i32
    %351 = vector.broadcast %c14_i32_120 : i32 to vector<1x256xi32>
    %352 = arith.cmpi slt, %1, %351 : vector<1x256xi32>
    %353 = arith.andi %350, %352 : vector<1x256xi1>
    %c0_121 = arith.constant 0 : index
    %c0_122 = arith.constant 0 : index
    %c0_123 = arith.constant 0 : index
    %354 = vector.load %arg1[%c0_121, %c0_122, %c0_123] : memref<1x4x256xf32, #tpu.memory_space<vmem>>, vector<1x4x256xf32>
    %355 = vector.shape_cast %354 : vector<1x4x256xf32> to vector<4x256xf32>
    %c0_124 = arith.constant 0 : index
    %c0_125 = arith.constant 0 : index
    %356 = vector.load %arg4[%c0_124, %c0_125] : memref<4x1xf32, #tpu.memory_space<vmem>>, vector<4x1xf32>
    %357 = vector.broadcast %356 : vector<4x1xf32> to vector<4x256xf32>
    %358 = arith.mulf %355, %357 : vector<4x256xf32>
    %c0_126 = arith.constant 0 : index
    %c0_127 = arith.constant 0 : index
    %359 = vector.load %arg5[%c0_126, %c0_127] : memref<4x1xf32, #tpu.memory_space<vmem>>, vector<4x1xf32>
    %360 = vector.broadcast %359 : vector<4x1xf32> to vector<4x256xf32>
    %361 = arith.addf %358, %360 : vector<4x256xf32>
    %cst = arith.constant 0.000000e+00 : f32
    %362 = vector.broadcast %cst : f32 to vector<4x256xf32>
    %363 = arith.maximumf %361, %362 : vector<4x256xf32>
    %c0_128 = arith.constant 0 : index
    %c0_129 = arith.constant 0 : index
    %364 = vector.load %arg7[%c0_128, %c0_129] : memref<8x4xf32, #tpu.memory_space<vmem>>, vector<8x4xf32>
    %cst_130 = arith.constant dense<0.000000e+00> : vector<8x256xf32>
    %365 = tpu.matmul %364, %363, %cst_130 {dimension_numbers = #tpu.dot_dimension_numbers<[1], [0], [0], [1], [0, 0, 1, 1], [], []>, precision = #tpu.contract_precision<fp32>} : vector<8x4xf32>, vector<4x256xf32>, vector<8x256xf32> -> vector<8x256xf32>
    %c0_131 = arith.constant 0 : index
    %c0_132 = arith.constant 0 : index
    %366 = vector.load %arg6[%c0_131, %c0_132] : memref<8x36xf32, #tpu.memory_space<vmem>>, vector<8x36xf32>
    %367 = vector.extract_strided_slice %363 {offsets = [0, 239], sizes = [4, 17], strides = [1, 1]} : vector<4x256xf32> to vector<4x17xf32>
    %368 = vector.extract_strided_slice %363 {offsets = [0, 0], sizes = [4, 239], strides = [1, 1]} : vector<4x256xf32> to vector<4x239xf32>
    %369 = tpu.concatenate %367, %368 in 1 : vector<4x17xf32>, vector<4x239xf32> -> vector<4x256xf32>
    %cst_133 = arith.constant 0.000000e+00 : f32
    %370 = vector.shape_cast %12 : vector<1x256xi1> to vector<1x256xi1>
    %371 = vector.broadcast %370 : vector<1x256xi1> to vector<4x256xi1>
    %372 = vector.broadcast %cst_133 : f32 to vector<4x256xf32>
    %373 = arith.select %371, %369, %372 : vector<4x256xi1>, vector<4x256xf32>
    %c0_134 = arith.constant 0 : index
    %c0_135 = arith.constant 0 : index
    %374 = vector.load %arg13[%c0_134, %c0_135] : memref<36x256xf32, #tpu.memory_space<vmem>>, vector<4x256xf32>
    tpu.vector_store %arg13[%c0_134, %c0_135], %373 {strides = array<i32>} : memref<36x256xf32, #tpu.memory_space<vmem>>, vector<4x256xf32>,
    %375 = vector.extract_strided_slice %363 {offsets = [0, 240], sizes = [4, 16], strides = [1, 1]} : vector<4x256xf32> to vector<4x16xf32>
    %376 = vector.extract_strided_slice %363 {offsets = [0, 0], sizes = [4, 240], strides = [1, 1]} : vector<4x256xf32> to vector<4x240xf32>
    %377 = tpu.concatenate %375, %376 in 1 : vector<4x16xf32>, vector<4x240xf32> -> vector<4x256xf32>
    %cst_136 = arith.constant 0.000000e+00 : f32
    %378 = vector.shape_cast %23 : vector<1x256xi1> to vector<1x256xi1>
    %379 = vector.broadcast %378 : vector<1x256xi1> to vector<4x256xi1>
    %380 = vector.broadcast %cst_136 : f32 to vector<4x256xf32>
    %381 = arith.select %379, %377, %380 : vector<4x256xi1>, vector<4x256xf32>
    %c4 = arith.constant 4 : index
    %c0_137 = arith.constant 0 : index
    %382 = vector.load %arg13[%c4, %c0_137] : memref<36x256xf32, #tpu.memory_space<vmem>>, vector<4x256xf32>
    tpu.vector_store %arg13[%c4, %c0_137], %381 {strides = array<i32>} : memref<36x256xf32, #tpu.memory_space<vmem>>, vector<4x256xf32>,
    %383 = vector.extract_strided_slice %363 {offsets = [0, 241], sizes = [4, 15], strides = [1, 1]} : vector<4x256xf32> to vector<4x15xf32>
    %384 = vector.extract_strided_slice %363 {offsets = [0, 0], sizes = [4, 241], strides = [1, 1]} : vector<4x256xf32> to vector<4x241xf32>
    %385 = tpu.concatenate %383, %384 in 1 : vector<4x15xf32>, vector<4x241xf32> -> vector<4x256xf32>
    %cst_138 = arith.constant 0.000000e+00 : f32
    %386 = vector.shape_cast %34 : vector<1x256xi1> to vector<1x256xi1>
    %387 = vector.broadcast %386 : vector<1x256xi1> to vector<4x256xi1>
    %388 = vector.broadcast %cst_138 : f32 to vector<4x256xf32>
    %389 = arith.select %387, %385, %388 : vector<4x256xi1>, vector<4x256xf32>
    %c8 = arith.constant 8 : index
    %c0_139 = arith.constant 0 : index
    %390 = vector.load %arg13[%c8, %c0_139] : memref<36x256xf32, #tpu.memory_space<vmem>>, vector<4x256xf32>
    tpu.vector_store %arg13[%c8, %c0_139], %389 {strides = array<i32>} : memref<36x256xf32, #tpu.memory_space<vmem>>, vector<4x256xf32>,
    %391 = vector.extract_strided_slice %363 {offsets = [0, 255], sizes = [4, 1], strides = [1, 1]} : vector<4x256xf32> to vector<4x1xf32>
    %392 = vector.extract_strided_slice %363 {offsets = [0, 0], sizes = [4, 255], strides = [1, 1]} : vector<4x256xf32> to vector<4x255xf32>
    %393 = tpu.concatenate %391, %392 in 1 : vector<4x1xf32>, vector<4x255xf32> -> vector<4x256xf32>
    %cst_140 = arith.constant 0.000000e+00 : f32
    %394 = vector.shape_cast %45 : vector<1x256xi1> to vector<1x256xi1>
    %395 = vector.broadcast %394 : vector<1x256xi1> to vector<4x256xi1>
    %396 = vector.broadcast %cst_140 : f32 to vector<4x256xf32>
    %397 = arith.select %395, %393, %396 : vector<4x256xi1>, vector<4x256xf32>
    %c12 = arith.constant 12 : index
    %c0_141 = arith.constant 0 : index
    %398 = vector.load %arg13[%c12, %c0_141] : memref<36x256xf32, #tpu.memory_space<vmem>>, vector<4x256xf32>
    tpu.vector_store %arg13[%c12, %c0_141], %397 {strides = array<i32>} : memref<36x256xf32, #tpu.memory_space<vmem>>, vector<4x256xf32>,
    %c16 = arith.constant 16 : index
    %c0_142 = arith.constant 0 : index
    %399 = vector.load %arg13[%c16, %c0_142] : memref<36x256xf32, #tpu.memory_space<vmem>>, vector<4x256xf32>
    tpu.vector_store %arg13[%c16, %c0_142], %363 {strides = array<i32>} : memref<36x256xf32, #tpu.memory_space<vmem>>, vector<4x256xf32>,
    %400 = vector.extract_strided_slice %363 {offsets = [0, 1], sizes = [4, 255], strides = [1, 1]} : vector<4x256xf32> to vector<4x255xf32>
    %401 = vector.extract_strided_slice %363 {offsets = [0, 0], sizes = [4, 1], strides = [1, 1]} : vector<4x256xf32> to vector<4x1xf32>
    %402 = tpu.concatenate %400, %401 in 1 : vector<4x255xf32>, vector<4x1xf32> -> vector<4x256xf32>
    %cst_143 = arith.constant 0.000000e+00 : f32
    %403 = vector.shape_cast %56 : vector<1x256xi1> to vector<1x256xi1>
    %404 = vector.broadcast %403 : vector<1x256xi1> to vector<4x256xi1>
    %405 = vector.broadcast %cst_143 : f32 to vector<4x256xf32>
    %406 = arith.select %404, %402, %405 : vector<4x256xi1>, vector<4x256xf32>
    %c20 = arith.constant 20 : index
    %c0_144 = arith.constant 0 : index
    %407 = vector.load %arg13[%c20, %c0_144] : memref<36x256xf32, #tpu.memory_space<vmem>>, vector<4x256xf32>
    tpu.vector_store %arg13[%c20, %c0_144], %406 {strides = array<i32>} : memref<36x256xf32, #tpu.memory_space<vmem>>, vector<4x256xf32>,
    %408 = vector.extract_strided_slice %363 {offsets = [0, 15], sizes = [4, 241], strides = [1, 1]} : vector<4x256xf32> to vector<4x241xf32>
    %409 = vector.extract_strided_slice %363 {offsets = [0, 0], sizes = [4, 15], strides = [1, 1]} : vector<4x256xf32> to vector<4x15xf32>
    %410 = tpu.concatenate %408, %409 in 1 : vector<4x241xf32>, vector<4x15xf32> -> vector<4x256xf32>
    %cst_145 = arith.constant 0.000000e+00 : f32
    %411 = vector.shape_cast %67 : vector<1x256xi1> to vector<1x256xi1>
    %412 = vector.broadcast %411 : vector<1x256xi1> to vector<4x256xi1>
    %413 = vector.broadcast %cst_145 : f32 to vector<4x256xf32>
    %414 = arith.select %412, %410, %413 : vector<4x256xi1>, vector<4x256xf32>
    %c24 = arith.constant 24 : index
    %c0_146 = arith.constant 0 : index
    %415 = vector.load %arg13[%c24, %c0_146] : memref<36x256xf32, #tpu.memory_space<vmem>>, vector<4x256xf32>
    tpu.vector_store %arg13[%c24, %c0_146], %414 {strides = array<i32>} : memref<36x256xf32, #tpu.memory_space<vmem>>, vector<4x256xf32>,
    %416 = vector.extract_strided_slice %363 {offsets = [0, 16], sizes = [4, 240], strides = [1, 1]} : vector<4x256xf32> to vector<4x240xf32>
    %417 = vector.extract_strided_slice %363 {offsets = [0, 0], sizes = [4, 16], strides = [1, 1]} : vector<4x256xf32> to vector<4x16xf32>
    %418 = tpu.concatenate %416, %417 in 1 : vector<4x240xf32>, vector<4x16xf32> -> vector<4x256xf32>
    %cst_147 = arith.constant 0.000000e+00 : f32
    %419 = vector.shape_cast %78 : vector<1x256xi1> to vector<1x256xi1>
    %420 = vector.broadcast %419 : vector<1x256xi1> to vector<4x256xi1>
    %421 = vector.broadcast %cst_147 : f32 to vector<4x256xf32>
    %422 = arith.select %420, %418, %421 : vector<4x256xi1>, vector<4x256xf32>
    %c28 = arith.constant 28 : index
    %c0_148 = arith.constant 0 : index
    %423 = vector.load %arg13[%c28, %c0_148] : memref<36x256xf32, #tpu.memory_space<vmem>>, vector<4x256xf32>
    tpu.vector_store %arg13[%c28, %c0_148], %422 {strides = array<i32>} : memref<36x256xf32, #tpu.memory_space<vmem>>, vector<4x256xf32>,
    %424 = vector.extract_strided_slice %363 {offsets = [0, 17], sizes = [4, 239], strides = [1, 1]} : vector<4x256xf32> to vector<4x239xf32>
    %425 = vector.extract_strided_slice %363 {offsets = [0, 0], sizes = [4, 17], strides = [1, 1]} : vector<4x256xf32> to vector<4x17xf32>
    %426 = tpu.concatenate %424, %425 in 1 : vector<4x239xf32>, vector<4x17xf32> -> vector<4x256xf32>
    %cst_149 = arith.constant 0.000000e+00 : f32
    %427 = vector.shape_cast %89 : vector<1x256xi1> to vector<1x256xi1>
    %428 = vector.broadcast %427 : vector<1x256xi1> to vector<4x256xi1>
    %429 = vector.broadcast %cst_149 : f32 to vector<4x256xf32>
    %430 = arith.select %428, %426, %429 : vector<4x256xi1>, vector<4x256xf32>
    %c32 = arith.constant 32 : index
    %c0_150 = arith.constant 0 : index
    %431 = vector.load %arg13[%c32, %c0_150] : memref<36x256xf32, #tpu.memory_space<vmem>>, vector<4x256xf32>
    tpu.vector_store %arg13[%c32, %c0_150], %430 {strides = array<i32>} : memref<36x256xf32, #tpu.memory_space<vmem>>, vector<4x256xf32>,
    %c0_151 = arith.constant 0 : index
    %c0_152 = arith.constant 0 : index
    %432 = vector.load %arg13[%c0_151, %c0_152] : memref<36x256xf32, #tpu.memory_space<vmem>>, vector<36x256xf32>
    %cst_153 = arith.constant dense<0.000000e+00> : vector<8x256xf32>
    %433 = tpu.matmul %366, %432, %cst_153 {dimension_numbers = #tpu.dot_dimension_numbers<[1], [0], [0], [1], [0, 0, 1, 1], [], []>, precision = #tpu.contract_precision<fp32>} : vector<8x36xf32>, vector<36x256xf32>, vector<8x256xf32> -> vector<8x256xf32>
    %c0_154 = arith.constant 0 : index
    %c0_155 = arith.constant 0 : index
    %434 = vector.load %arg8[%c0_154, %c0_155] : memref<8x1xf32, #tpu.memory_space<vmem>>, vector<8x1xf32>
    %435 = vector.broadcast %434 : vector<8x1xf32> to vector<8x256xf32>
    %436 = arith.mulf %433, %435 : vector<8x256xf32>
    %c0_156 = arith.constant 0 : index
    %c0_157 = arith.constant 0 : index
    %437 = vector.load %arg9[%c0_156, %c0_157] : memref<8x1xf32, #tpu.memory_space<vmem>>, vector<8x1xf32>
    %438 = vector.broadcast %437 : vector<8x1xf32> to vector<8x256xf32>
    %439 = arith.addf %436, %438 : vector<8x256xf32>
    %cst_158 = arith.constant 0.000000e+00 : f32
    %440 = vector.broadcast %cst_158 : f32 to vector<8x256xf32>
    %441 = arith.maximumf %439, %440 : vector<8x256xf32>
    %c0_159 = arith.constant 0 : index
    %c0_160 = arith.constant 0 : index
    %442 = vector.load %arg10[%c0_159, %c0_160] : memref<8x72xf32, #tpu.memory_space<vmem>>, vector<8x72xf32>
    %443 = vector.extract_strided_slice %441 {offsets = [0, 239], sizes = [8, 17], strides = [1, 1]} : vector<8x256xf32> to vector<8x17xf32>
    %444 = vector.extract_strided_slice %441 {offsets = [0, 0], sizes = [8, 239], strides = [1, 1]} : vector<8x256xf32> to vector<8x239xf32>
    %445 = tpu.concatenate %443, %444 in 1 : vector<8x17xf32>, vector<8x239xf32> -> vector<8x256xf32>
    %cst_161 = arith.constant 0.000000e+00 : f32
    %446 = vector.shape_cast %12 : vector<1x256xi1> to vector<1x256xi1>
    %447 = vector.broadcast %446 : vector<1x256xi1> to vector<8x256xi1>
    %448 = vector.broadcast %cst_161 : f32 to vector<8x256xf32>
    %449 = arith.select %447, %445, %448 : vector<8x256xi1>, vector<8x256xf32>
    %c0_162 = arith.constant 0 : index
    %c0_163 = arith.constant 0 : index
    %450 = vector.load %arg14[%c0_162, %c0_163] : memref<72x256xf32, #tpu.memory_space<vmem>>, vector<8x256xf32>
    tpu.vector_store %arg14[%c0_162, %c0_163], %449 {strides = array<i32>} : memref<72x256xf32, #tpu.memory_space<vmem>>, vector<8x256xf32>,
    %451 = vector.extract_strided_slice %441 {offsets = [0, 240], sizes = [8, 16], strides = [1, 1]} : vector<8x256xf32> to vector<8x16xf32>
    %452 = vector.extract_strided_slice %441 {offsets = [0, 0], sizes = [8, 240], strides = [1, 1]} : vector<8x256xf32> to vector<8x240xf32>
    %453 = tpu.concatenate %451, %452 in 1 : vector<8x16xf32>, vector<8x240xf32> -> vector<8x256xf32>
    %cst_164 = arith.constant 0.000000e+00 : f32
    %454 = vector.shape_cast %23 : vector<1x256xi1> to vector<1x256xi1>
    %455 = vector.broadcast %454 : vector<1x256xi1> to vector<8x256xi1>
    %456 = vector.broadcast %cst_164 : f32 to vector<8x256xf32>
    %457 = arith.select %455, %453, %456 : vector<8x256xi1>, vector<8x256xf32>
    %c8_165 = arith.constant 8 : index
    %c0_166 = arith.constant 0 : index
    %458 = vector.load %arg14[%c8_165, %c0_166] : memref<72x256xf32, #tpu.memory_space<vmem>>, vector<8x256xf32>
    tpu.vector_store %arg14[%c8_165, %c0_166], %457 {strides = array<i32>} : memref<72x256xf32, #tpu.memory_space<vmem>>, vector<8x256xf32>,
    %459 = vector.extract_strided_slice %441 {offsets = [0, 241], sizes = [8, 15], strides = [1, 1]} : vector<8x256xf32> to vector<8x15xf32>
    %460 = vector.extract_strided_slice %441 {offsets = [0, 0], sizes = [8, 241], strides = [1, 1]} : vector<8x256xf32> to vector<8x241xf32>
    %461 = tpu.concatenate %459, %460 in 1 : vector<8x15xf32>, vector<8x241xf32> -> vector<8x256xf32>
    %cst_167 = arith.constant 0.000000e+00 : f32
    %462 = vector.shape_cast %34 : vector<1x256xi1> to vector<1x256xi1>
    %463 = vector.broadcast %462 : vector<1x256xi1> to vector<8x256xi1>
    %464 = vector.broadcast %cst_167 : f32 to vector<8x256xf32>
    %465 = arith.select %463, %461, %464 : vector<8x256xi1>, vector<8x256xf32>
    %c16_168 = arith.constant 16 : index
    %c0_169 = arith.constant 0 : index
    %466 = vector.load %arg14[%c16_168, %c0_169] : memref<72x256xf32, #tpu.memory_space<vmem>>, vector<8x256xf32>
    tpu.vector_store %arg14[%c16_168, %c0_169], %465 {strides = array<i32>} : memref<72x256xf32, #tpu.memory_space<vmem>>, vector<8x256xf32>,
    %467 = vector.extract_strided_slice %441 {offsets = [0, 255], sizes = [8, 1], strides = [1, 1]} : vector<8x256xf32> to vector<8x1xf32>
    %468 = vector.extract_strided_slice %441 {offsets = [0, 0], sizes = [8, 255], strides = [1, 1]} : vector<8x256xf32> to vector<8x255xf32>
    %469 = tpu.concatenate %467, %468 in 1 : vector<8x1xf32>, vector<8x255xf32> -> vector<8x256xf32>
    %cst_170 = arith.constant 0.000000e+00 : f32
    %470 = vector.shape_cast %45 : vector<1x256xi1> to vector<1x256xi1>
    %471 = vector.broadcast %470 : vector<1x256xi1> to vector<8x256xi1>
    %472 = vector.broadcast %cst_170 : f32 to vector<8x256xf32>
    %473 = arith.select %471, %469, %472 : vector<8x256xi1>, vector<8x256xf32>
    %c24_171 = arith.constant 24 : index
    %c0_172 = arith.constant 0 : index
    %474 = vector.load %arg14[%c24_171, %c0_172] : memref<72x256xf32, #tpu.memory_space<vmem>>, vector<8x256xf32>
    tpu.vector_store %arg14[%c24_171, %c0_172], %473 {strides = array<i32>} : memref<72x256xf32, #tpu.memory_space<vmem>>, vector<8x256xf32>,
    %c32_173 = arith.constant 32 : index
    %c0_174 = arith.constant 0 : index
    %475 = vector.load %arg14[%c32_173, %c0_174] : memref<72x256xf32, #tpu.memory_space<vmem>>, vector<8x256xf32>
    tpu.vector_store %arg14[%c32_173, %c0_174], %441 {strides = array<i32>} : memref<72x256xf32, #tpu.memory_space<vmem>>, vector<8x256xf32>,
    %476 = vector.extract_strided_slice %441 {offsets = [0, 1], sizes = [8, 255], strides = [1, 1]} : vector<8x256xf32> to vector<8x255xf32>
    %477 = vector.extract_strided_slice %441 {offsets = [0, 0], sizes = [8, 1], strides = [1, 1]} : vector<8x256xf32> to vector<8x1xf32>
    %478 = tpu.concatenate %476, %477 in 1 : vector<8x255xf32>, vector<8x1xf32> -> vector<8x256xf32>
    %cst_175 = arith.constant 0.000000e+00 : f32
    %479 = vector.shape_cast %56 : vector<1x256xi1> to vector<1x256xi1>
    %480 = vector.broadcast %479 : vector<1x256xi1> to vector<8x256xi1>
    %481 = vector.broadcast %cst_175 : f32 to vector<8x256xf32>
    %482 = arith.select %480, %478, %481 : vector<8x256xi1>, vector<8x256xf32>
    %c40 = arith.constant 40 : index
    %c0_176 = arith.constant 0 : index
    %483 = vector.load %arg14[%c40, %c0_176] : memref<72x256xf32, #tpu.memory_space<vmem>>, vector<8x256xf32>
    tpu.vector_store %arg14[%c40, %c0_176], %482 {strides = array<i32>} : memref<72x256xf32, #tpu.memory_space<vmem>>, vector<8x256xf32>,
    %484 = vector.extract_strided_slice %441 {offsets = [0, 15], sizes = [8, 241], strides = [1, 1]} : vector<8x256xf32> to vector<8x241xf32>
    %485 = vector.extract_strided_slice %441 {offsets = [0, 0], sizes = [8, 15], strides = [1, 1]} : vector<8x256xf32> to vector<8x15xf32>
    %486 = tpu.concatenate %484, %485 in 1 : vector<8x241xf32>, vector<8x15xf32> -> vector<8x256xf32>
    %cst_177 = arith.constant 0.000000e+00 : f32
    %487 = vector.shape_cast %67 : vector<1x256xi1> to vector<1x256xi1>
    %488 = vector.broadcast %487 : vector<1x256xi1> to vector<8x256xi1>
    %489 = vector.broadcast %cst_177 : f32 to vector<8x256xf32>
    %490 = arith.select %488, %486, %489 : vector<8x256xi1>, vector<8x256xf32>
    %c48 = arith.constant 48 : index
    %c0_178 = arith.constant 0 : index
    %491 = vector.load %arg14[%c48, %c0_178] : memref<72x256xf32, #tpu.memory_space<vmem>>, vector<8x256xf32>
    tpu.vector_store %arg14[%c48, %c0_178], %490 {strides = array<i32>} : memref<72x256xf32, #tpu.memory_space<vmem>>, vector<8x256xf32>,
    %492 = vector.extract_strided_slice %441 {offsets = [0, 16], sizes = [8, 240], strides = [1, 1]} : vector<8x256xf32> to vector<8x240xf32>
    %493 = vector.extract_strided_slice %441 {offsets = [0, 0], sizes = [8, 16], strides = [1, 1]} : vector<8x256xf32> to vector<8x16xf32>
    %494 = tpu.concatenate %492, %493 in 1 : vector<8x240xf32>, vector<8x16xf32> -> vector<8x256xf32>
    %cst_179 = arith.constant 0.000000e+00 : f32
    %495 = vector.shape_cast %78 : vector<1x256xi1> to vector<1x256xi1>
    %496 = vector.broadcast %495 : vector<1x256xi1> to vector<8x256xi1>
    %497 = vector.broadcast %cst_179 : f32 to vector<8x256xf32>
    %498 = arith.select %496, %494, %497 : vector<8x256xi1>, vector<8x256xf32>
    %c56 = arith.constant 56 : index
    %c0_180 = arith.constant 0 : index
    %499 = vector.load %arg14[%c56, %c0_180] : memref<72x256xf32, #tpu.memory_space<vmem>>, vector<8x256xf32>
    tpu.vector_store %arg14[%c56, %c0_180], %498 {strides = array<i32>} : memref<72x256xf32, #tpu.memory_space<vmem>>, vector<8x256xf32>,
    %500 = vector.extract_strided_slice %441 {offsets = [0, 17], sizes = [8, 239], strides = [1, 1]} : vector<8x256xf32> to vector<8x239xf32>
    %501 = vector.extract_strided_slice %441 {offsets = [0, 0], sizes = [8, 17], strides = [1, 1]} : vector<8x256xf32> to vector<8x17xf32>
    %502 = tpu.concatenate %500, %501 in 1 : vector<8x239xf32>, vector<8x17xf32> -> vector<8x256xf32>
    %cst_181 = arith.constant 0.000000e+00 : f32
    %503 = vector.shape_cast %89 : vector<1x256xi1> to vector<1x256xi1>
    %504 = vector.broadcast %503 : vector<1x256xi1> to vector<8x256xi1>
    %505 = vector.broadcast %cst_181 : f32 to vector<8x256xf32>
    %506 = arith.select %504, %502, %505 : vector<8x256xi1>, vector<8x256xf32>
    %c64 = arith.constant 64 : index
    %c0_182 = arith.constant 0 : index
    %507 = vector.load %arg14[%c64, %c0_182] : memref<72x256xf32, #tpu.memory_space<vmem>>, vector<8x256xf32>
    tpu.vector_store %arg14[%c64, %c0_182], %506 {strides = array<i32>} : memref<72x256xf32, #tpu.memory_space<vmem>>, vector<8x256xf32>,
    %c0_183 = arith.constant 0 : index
    %c0_184 = arith.constant 0 : index
    %508 = vector.load %arg14[%c0_183, %c0_184] : memref<72x256xf32, #tpu.memory_space<vmem>>, vector<72x256xf32>
    %cst_185 = arith.constant dense<0.000000e+00> : vector<8x256xf32>
    %509 = tpu.matmul %442, %508, %cst_185 {dimension_numbers = #tpu.dot_dimension_numbers<[1], [0], [0], [1], [0, 0, 1, 1], [], []>, precision = #tpu.contract_precision<fp32>} : vector<8x72xf32>, vector<72x256xf32>, vector<8x256xf32> -> vector<8x256xf32>
    %cst_186 = arith.constant dense<0xFF800000> : vector<256xf32>
    %510 = vector.multi_reduction <maximumf>, %509, %cst_186 [0] : vector<8x256xf32> to vector<256xf32>
    %511 = vector.shape_cast %510 : vector<256xf32> to vector<1x256xf32>
    %cst_187 = arith.constant dense<0.000000e+00> : vector<256xf32>
    %512 = vector.multi_reduction <add>, %509, %cst_187 [0] : vector<8x256xf32> to vector<256xf32>
    %513 = vector.shape_cast %512 : vector<256xf32> to vector<1x256xf32>
    %cst_188 = arith.constant 8.000000e+00 : f32
    %514 = vector.broadcast %cst_188 : f32 to vector<1x256xf32>
    %515 = arith.divf %513, %514 : vector<1x256xf32>
    %cst_189 = arith.constant 0.000000e+00 : f32
    %516 = vector.broadcast %cst_189 : f32 to vector<1x256xf32>
    %c0_190 = arith.constant 0 : index
    %517 = memref.load %arg11[%c0_190] : memref<51xf32, #tpu.memory_space<smem>>
    %518 = vector.extract_strided_slice %511 {offsets = [0, 222], sizes = [1, 34], strides = [1, 1]} : vector<1x256xf32> to vector<1x34xf32>
    %519 = vector.extract_strided_slice %511 {offsets = [0, 0], sizes = [1, 222], strides = [1, 1]} : vector<1x256xf32> to vector<1x222xf32>
    %520 = tpu.concatenate %518, %519 in 1 : vector<1x34xf32>, vector<1x222xf32> -> vector<1x256xf32>
    %cst_191 = arith.constant 0.000000e+00 : f32
    %521 = vector.broadcast %cst_191 : f32 to vector<1x256xf32>
    %522 = arith.select %100, %520, %521 : vector<1x256xi1>, vector<1x256xf32>
    %523 = vector.broadcast %517 : f32 to vector<1x256xf32>
    %524 = arith.mulf %523, %522 : vector<1x256xf32>
    %525 = arith.addf %516, %524 : vector<1x256xf32>
    %c25 = arith.constant 25 : index
    %526 = memref.load %arg11[%c25] : memref<51xf32, #tpu.memory_space<smem>>
    %527 = vector.extract_strided_slice %515 {offsets = [0, 222], sizes = [1, 34], strides = [1, 1]} : vector<1x256xf32> to vector<1x34xf32>
    %528 = vector.extract_strided_slice %515 {offsets = [0, 0], sizes = [1, 222], strides = [1, 1]} : vector<1x256xf32> to vector<1x222xf32>
    %529 = tpu.concatenate %527, %528 in 1 : vector<1x34xf32>, vector<1x222xf32> -> vector<1x256xf32>
    %cst_192 = arith.constant 0.000000e+00 : f32
    %530 = vector.broadcast %cst_192 : f32 to vector<1x256xf32>
    %531 = arith.select %100, %529, %530 : vector<1x256xi1>, vector<1x256xf32>
    %532 = vector.broadcast %526 : f32 to vector<1x256xf32>
    %533 = arith.mulf %532, %531 : vector<1x256xf32>
    %534 = arith.addf %525, %533 : vector<1x256xf32>
    %c1 = arith.constant 1 : index
    %535 = memref.load %arg11[%c1] : memref<51xf32, #tpu.memory_space<smem>>
    %536 = vector.extract_strided_slice %511 {offsets = [0, 223], sizes = [1, 33], strides = [1, 1]} : vector<1x256xf32> to vector<1x33xf32>
    %537 = vector.extract_strided_slice %511 {offsets = [0, 0], sizes = [1, 223], strides = [1, 1]} : vector<1x256xf32> to vector<1x223xf32>
    %538 = tpu.concatenate %536, %537 in 1 : vector<1x33xf32>, vector<1x223xf32> -> vector<1x256xf32>
    %cst_193 = arith.constant 0.000000e+00 : f32
    %539 = vector.broadcast %cst_193 : f32 to vector<1x256xf32>
    %540 = arith.select %111, %538, %539 : vector<1x256xi1>, vector<1x256xf32>
    %541 = vector.broadcast %535 : f32 to vector<1x256xf32>
    %542 = arith.mulf %541, %540 : vector<1x256xf32>
    %543 = arith.addf %534, %542 : vector<1x256xf32>
    %c26 = arith.constant 26 : index
    %544 = memref.load %arg11[%c26] : memref<51xf32, #tpu.memory_space<smem>>
    %545 = vector.extract_strided_slice %515 {offsets = [0, 223], sizes = [1, 33], strides = [1, 1]} : vector<1x256xf32> to vector<1x33xf32>
    %546 = vector.extract_strided_slice %515 {offsets = [0, 0], sizes = [1, 223], strides = [1, 1]} : vector<1x256xf32> to vector<1x223xf32>
    %547 = tpu.concatenate %545, %546 in 1 : vector<1x33xf32>, vector<1x223xf32> -> vector<1x256xf32>
    %cst_194 = arith.constant 0.000000e+00 : f32
    %548 = vector.broadcast %cst_194 : f32 to vector<1x256xf32>
    %549 = arith.select %111, %547, %548 : vector<1x256xi1>, vector<1x256xf32>
    %550 = vector.broadcast %544 : f32 to vector<1x256xf32>
    %551 = arith.mulf %550, %549 : vector<1x256xf32>
    %552 = arith.addf %543, %551 : vector<1x256xf32>
    %c2 = arith.constant 2 : index
    %553 = memref.load %arg11[%c2] : memref<51xf32, #tpu.memory_space<smem>>
    %554 = vector.extract_strided_slice %511 {offsets = [0, 224], sizes = [1, 32], strides = [1, 1]} : vector<1x256xf32> to vector<1x32xf32>
    %555 = vector.extract_strided_slice %511 {offsets = [0, 0], sizes = [1, 224], strides = [1, 1]} : vector<1x256xf32> to vector<1x224xf32>
    %556 = tpu.concatenate %554, %555 in 1 : vector<1x32xf32>, vector<1x224xf32> -> vector<1x256xf32>
    %cst_195 = arith.constant 0.000000e+00 : f32
    %557 = vector.broadcast %cst_195 : f32 to vector<1x256xf32>
    %558 = arith.select %122, %556, %557 : vector<1x256xi1>, vector<1x256xf32>
    %559 = vector.broadcast %553 : f32 to vector<1x256xf32>
    %560 = arith.mulf %559, %558 : vector<1x256xf32>
    %561 = arith.addf %552, %560 : vector<1x256xf32>
    %c27 = arith.constant 27 : index
    %562 = memref.load %arg11[%c27] : memref<51xf32, #tpu.memory_space<smem>>
    %563 = vector.extract_strided_slice %515 {offsets = [0, 224], sizes = [1, 32], strides = [1, 1]} : vector<1x256xf32> to vector<1x32xf32>
    %564 = vector.extract_strided_slice %515 {offsets = [0, 0], sizes = [1, 224], strides = [1, 1]} : vector<1x256xf32> to vector<1x224xf32>
    %565 = tpu.concatenate %563, %564 in 1 : vector<1x32xf32>, vector<1x224xf32> -> vector<1x256xf32>
    %cst_196 = arith.constant 0.000000e+00 : f32
    %566 = vector.broadcast %cst_196 : f32 to vector<1x256xf32>
    %567 = arith.select %122, %565, %566 : vector<1x256xi1>, vector<1x256xf32>
    %568 = vector.broadcast %562 : f32 to vector<1x256xf32>
    %569 = arith.mulf %568, %567 : vector<1x256xf32>
    %570 = arith.addf %561, %569 : vector<1x256xf32>
    %c3 = arith.constant 3 : index
    %571 = memref.load %arg11[%c3] : memref<51xf32, #tpu.memory_space<smem>>
    %572 = vector.extract_strided_slice %511 {offsets = [0, 225], sizes = [1, 31], strides = [1, 1]} : vector<1x256xf32> to vector<1x31xf32>
    %573 = vector.extract_strided_slice %511 {offsets = [0, 0], sizes = [1, 225], strides = [1, 1]} : vector<1x256xf32> to vector<1x225xf32>
    %574 = tpu.concatenate %572, %573 in 1 : vector<1x31xf32>, vector<1x225xf32> -> vector<1x256xf32>
    %cst_197 = arith.constant 0.000000e+00 : f32
    %575 = vector.broadcast %cst_197 : f32 to vector<1x256xf32>
    %576 = arith.select %133, %574, %575 : vector<1x256xi1>, vector<1x256xf32>
    %577 = vector.broadcast %571 : f32 to vector<1x256xf32>
    %578 = arith.mulf %577, %576 : vector<1x256xf32>
    %579 = arith.addf %570, %578 : vector<1x256xf32>
    %c28_198 = arith.constant 28 : index
    %580 = memref.load %arg11[%c28_198] : memref<51xf32, #tpu.memory_space<smem>>
    %581 = vector.extract_strided_slice %515 {offsets = [0, 225], sizes = [1, 31], strides = [1, 1]} : vector<1x256xf32> to vector<1x31xf32>
    %582 = vector.extract_strided_slice %515 {offsets = [0, 0], sizes = [1, 225], strides = [1, 1]} : vector<1x256xf32> to vector<1x225xf32>
    %583 = tpu.concatenate %581, %582 in 1 : vector<1x31xf32>, vector<1x225xf32> -> vector<1x256xf32>
    %cst_199 = arith.constant 0.000000e+00 : f32
    %584 = vector.broadcast %cst_199 : f32 to vector<1x256xf32>
    %585 = arith.select %133, %583, %584 : vector<1x256xi1>, vector<1x256xf32>
    %586 = vector.broadcast %580 : f32 to vector<1x256xf32>
    %587 = arith.mulf %586, %585 : vector<1x256xf32>
    %588 = arith.addf %579, %587 : vector<1x256xf32>
    %c4_200 = arith.constant 4 : index
    %589 = memref.load %arg11[%c4_200] : memref<51xf32, #tpu.memory_space<smem>>
    %590 = vector.extract_strided_slice %511 {offsets = [0, 226], sizes = [1, 30], strides = [1, 1]} : vector<1x256xf32> to vector<1x30xf32>
    %591 = vector.extract_strided_slice %511 {offsets = [0, 0], sizes = [1, 226], strides = [1, 1]} : vector<1x256xf32> to vector<1x226xf32>
    %592 = tpu.concatenate %590, %591 in 1 : vector<1x30xf32>, vector<1x226xf32> -> vector<1x256xf32>
    %cst_201 = arith.constant 0.000000e+00 : f32
    %593 = vector.broadcast %cst_201 : f32 to vector<1x256xf32>
    %594 = arith.select %144, %592, %593 : vector<1x256xi1>, vector<1x256xf32>
    %595 = vector.broadcast %589 : f32 to vector<1x256xf32>
    %596 = arith.mulf %595, %594 : vector<1x256xf32>
    %597 = arith.addf %588, %596 : vector<1x256xf32>
    %c29 = arith.constant 29 : index
    %598 = memref.load %arg11[%c29] : memref<51xf32, #tpu.memory_space<smem>>
    %599 = vector.extract_strided_slice %515 {offsets = [0, 226], sizes = [1, 30], strides = [1, 1]} : vector<1x256xf32> to vector<1x30xf32>
    %600 = vector.extract_strided_slice %515 {offsets = [0, 0], sizes = [1, 226], strides = [1, 1]} : vector<1x256xf32> to vector<1x226xf32>
    %601 = tpu.concatenate %599, %600 in 1 : vector<1x30xf32>, vector<1x226xf32> -> vector<1x256xf32>
    %cst_202 = arith.constant 0.000000e+00 : f32
    %602 = vector.broadcast %cst_202 : f32 to vector<1x256xf32>
    %603 = arith.select %144, %601, %602 : vector<1x256xi1>, vector<1x256xf32>
    %604 = vector.broadcast %598 : f32 to vector<1x256xf32>
    %605 = arith.mulf %604, %603 : vector<1x256xf32>
    %606 = arith.addf %597, %605 : vector<1x256xf32>
    %c5 = arith.constant 5 : index
    %607 = memref.load %arg11[%c5] : memref<51xf32, #tpu.memory_space<smem>>
    %608 = vector.extract_strided_slice %511 {offsets = [0, 238], sizes = [1, 18], strides = [1, 1]} : vector<1x256xf32> to vector<1x18xf32>
    %609 = vector.extract_strided_slice %511 {offsets = [0, 0], sizes = [1, 238], strides = [1, 1]} : vector<1x256xf32> to vector<1x238xf32>
    %610 = tpu.concatenate %608, %609 in 1 : vector<1x18xf32>, vector<1x238xf32> -> vector<1x256xf32>
    %cst_203 = arith.constant 0.000000e+00 : f32
    %611 = vector.broadcast %cst_203 : f32 to vector<1x256xf32>
    %612 = arith.select %155, %610, %611 : vector<1x256xi1>, vector<1x256xf32>
    %613 = vector.broadcast %607 : f32 to vector<1x256xf32>
    %614 = arith.mulf %613, %612 : vector<1x256xf32>
    %615 = arith.addf %606, %614 : vector<1x256xf32>
    %c30 = arith.constant 30 : index
    %616 = memref.load %arg11[%c30] : memref<51xf32, #tpu.memory_space<smem>>
    %617 = vector.extract_strided_slice %515 {offsets = [0, 238], sizes = [1, 18], strides = [1, 1]} : vector<1x256xf32> to vector<1x18xf32>
    %618 = vector.extract_strided_slice %515 {offsets = [0, 0], sizes = [1, 238], strides = [1, 1]} : vector<1x256xf32> to vector<1x238xf32>
    %619 = tpu.concatenate %617, %618 in 1 : vector<1x18xf32>, vector<1x238xf32> -> vector<1x256xf32>
    %cst_204 = arith.constant 0.000000e+00 : f32
    %620 = vector.broadcast %cst_204 : f32 to vector<1x256xf32>
    %621 = arith.select %155, %619, %620 : vector<1x256xi1>, vector<1x256xf32>
    %622 = vector.broadcast %616 : f32 to vector<1x256xf32>
    %623 = arith.mulf %622, %621 : vector<1x256xf32>
    %624 = arith.addf %615, %623 : vector<1x256xf32>
    %c6 = arith.constant 6 : index
    %625 = memref.load %arg11[%c6] : memref<51xf32, #tpu.memory_space<smem>>
    %626 = vector.extract_strided_slice %511 {offsets = [0, 239], sizes = [1, 17], strides = [1, 1]} : vector<1x256xf32> to vector<1x17xf32>
    %627 = vector.extract_strided_slice %511 {offsets = [0, 0], sizes = [1, 239], strides = [1, 1]} : vector<1x256xf32> to vector<1x239xf32>
    %628 = tpu.concatenate %626, %627 in 1 : vector<1x17xf32>, vector<1x239xf32> -> vector<1x256xf32>
    %cst_205 = arith.constant 0.000000e+00 : f32
    %629 = vector.broadcast %cst_205 : f32 to vector<1x256xf32>
    %630 = arith.select %166, %628, %629 : vector<1x256xi1>, vector<1x256xf32>
    %631 = vector.broadcast %625 : f32 to vector<1x256xf32>
    %632 = arith.mulf %631, %630 : vector<1x256xf32>
    %633 = arith.addf %624, %632 : vector<1x256xf32>
    %c31 = arith.constant 31 : index
    %634 = memref.load %arg11[%c31] : memref<51xf32, #tpu.memory_space<smem>>
    %635 = vector.extract_strided_slice %515 {offsets = [0, 239], sizes = [1, 17], strides = [1, 1]} : vector<1x256xf32> to vector<1x17xf32>
    %636 = vector.extract_strided_slice %515 {offsets = [0, 0], sizes = [1, 239], strides = [1, 1]} : vector<1x256xf32> to vector<1x239xf32>
    %637 = tpu.concatenate %635, %636 in 1 : vector<1x17xf32>, vector<1x239xf32> -> vector<1x256xf32>
    %cst_206 = arith.constant 0.000000e+00 : f32
    %638 = vector.broadcast %cst_206 : f32 to vector<1x256xf32>
    %639 = arith.select %166, %637, %638 : vector<1x256xi1>, vector<1x256xf32>
    %640 = vector.broadcast %634 : f32 to vector<1x256xf32>
    %641 = arith.mulf %640, %639 : vector<1x256xf32>
    %642 = arith.addf %633, %641 : vector<1x256xf32>
    %c7 = arith.constant 7 : index
    %643 = memref.load %arg11[%c7] : memref<51xf32, #tpu.memory_space<smem>>
    %644 = vector.extract_strided_slice %511 {offsets = [0, 240], sizes = [1, 16], strides = [1, 1]} : vector<1x256xf32> to vector<1x16xf32>
    %645 = vector.extract_strided_slice %511 {offsets = [0, 0], sizes = [1, 240], strides = [1, 1]} : vector<1x256xf32> to vector<1x240xf32>
    %646 = tpu.concatenate %644, %645 in 1 : vector<1x16xf32>, vector<1x240xf32> -> vector<1x256xf32>
    %cst_207 = arith.constant 0.000000e+00 : f32
    %647 = vector.broadcast %cst_207 : f32 to vector<1x256xf32>
    %648 = arith.select %177, %646, %647 : vector<1x256xi1>, vector<1x256xf32>
    %649 = vector.broadcast %643 : f32 to vector<1x256xf32>
    %650 = arith.mulf %649, %648 : vector<1x256xf32>
    %651 = arith.addf %642, %650 : vector<1x256xf32>
    %c32_208 = arith.constant 32 : index
    %652 = memref.load %arg11[%c32_208] : memref<51xf32, #tpu.memory_space<smem>>
    %653 = vector.extract_strided_slice %515 {offsets = [0, 240], sizes = [1, 16], strides = [1, 1]} : vector<1x256xf32> to vector<1x16xf32>
    %654 = vector.extract_strided_slice %515 {offsets = [0, 0], sizes = [1, 240], strides = [1, 1]} : vector<1x256xf32> to vector<1x240xf32>
    %655 = tpu.concatenate %653, %654 in 1 : vector<1x16xf32>, vector<1x240xf32> -> vector<1x256xf32>
    %cst_209 = arith.constant 0.000000e+00 : f32
    %656 = vector.broadcast %cst_209 : f32 to vector<1x256xf32>
    %657 = arith.select %177, %655, %656 : vector<1x256xi1>, vector<1x256xf32>
    %658 = vector.broadcast %652 : f32 to vector<1x256xf32>
    %659 = arith.mulf %658, %657 : vector<1x256xf32>
    %660 = arith.addf %651, %659 : vector<1x256xf32>
    %c8_210 = arith.constant 8 : index
    %661 = memref.load %arg11[%c8_210] : memref<51xf32, #tpu.memory_space<smem>>
    %662 = vector.extract_strided_slice %511 {offsets = [0, 241], sizes = [1, 15], strides = [1, 1]} : vector<1x256xf32> to vector<1x15xf32>
    %663 = vector.extract_strided_slice %511 {offsets = [0, 0], sizes = [1, 241], strides = [1, 1]} : vector<1x256xf32> to vector<1x241xf32>
    %664 = tpu.concatenate %662, %663 in 1 : vector<1x15xf32>, vector<1x241xf32> -> vector<1x256xf32>
    %cst_211 = arith.constant 0.000000e+00 : f32
    %665 = vector.broadcast %cst_211 : f32 to vector<1x256xf32>
    %666 = arith.select %188, %664, %665 : vector<1x256xi1>, vector<1x256xf32>
    %667 = vector.broadcast %661 : f32 to vector<1x256xf32>
    %668 = arith.mulf %667, %666 : vector<1x256xf32>
    %669 = arith.addf %660, %668 : vector<1x256xf32>
    %c33 = arith.constant 33 : index
    %670 = memref.load %arg11[%c33] : memref<51xf32, #tpu.memory_space<smem>>
    %671 = vector.extract_strided_slice %515 {offsets = [0, 241], sizes = [1, 15], strides = [1, 1]} : vector<1x256xf32> to vector<1x15xf32>
    %672 = vector.extract_strided_slice %515 {offsets = [0, 0], sizes = [1, 241], strides = [1, 1]} : vector<1x256xf32> to vector<1x241xf32>
    %673 = tpu.concatenate %671, %672 in 1 : vector<1x15xf32>, vector<1x241xf32> -> vector<1x256xf32>
    %cst_212 = arith.constant 0.000000e+00 : f32
    %674 = vector.broadcast %cst_212 : f32 to vector<1x256xf32>
    %675 = arith.select %188, %673, %674 : vector<1x256xi1>, vector<1x256xf32>
    %676 = vector.broadcast %670 : f32 to vector<1x256xf32>
    %677 = arith.mulf %676, %675 : vector<1x256xf32>
    %678 = arith.addf %669, %677 : vector<1x256xf32>
    %c9 = arith.constant 9 : index
    %679 = memref.load %arg11[%c9] : memref<51xf32, #tpu.memory_space<smem>>
    %680 = vector.extract_strided_slice %511 {offsets = [0, 242], sizes = [1, 14], strides = [1, 1]} : vector<1x256xf32> to vector<1x14xf32>
    %681 = vector.extract_strided_slice %511 {offsets = [0, 0], sizes = [1, 242], strides = [1, 1]} : vector<1x256xf32> to vector<1x242xf32>
    %682 = tpu.concatenate %680, %681 in 1 : vector<1x14xf32>, vector<1x242xf32> -> vector<1x256xf32>
    %cst_213 = arith.constant 0.000000e+00 : f32
    %683 = vector.broadcast %cst_213 : f32 to vector<1x256xf32>
    %684 = arith.select %199, %682, %683 : vector<1x256xi1>, vector<1x256xf32>
    %685 = vector.broadcast %679 : f32 to vector<1x256xf32>
    %686 = arith.mulf %685, %684 : vector<1x256xf32>
    %687 = arith.addf %678, %686 : vector<1x256xf32>
    %c34 = arith.constant 34 : index
    %688 = memref.load %arg11[%c34] : memref<51xf32, #tpu.memory_space<smem>>
    %689 = vector.extract_strided_slice %515 {offsets = [0, 242], sizes = [1, 14], strides = [1, 1]} : vector<1x256xf32> to vector<1x14xf32>
    %690 = vector.extract_strided_slice %515 {offsets = [0, 0], sizes = [1, 242], strides = [1, 1]} : vector<1x256xf32> to vector<1x242xf32>
    %691 = tpu.concatenate %689, %690 in 1 : vector<1x14xf32>, vector<1x242xf32> -> vector<1x256xf32>
    %cst_214 = arith.constant 0.000000e+00 : f32
    %692 = vector.broadcast %cst_214 : f32 to vector<1x256xf32>
    %693 = arith.select %199, %691, %692 : vector<1x256xi1>, vector<1x256xf32>
    %694 = vector.broadcast %688 : f32 to vector<1x256xf32>
    %695 = arith.mulf %694, %693 : vector<1x256xf32>
    %696 = arith.addf %687, %695 : vector<1x256xf32>
    %c10 = arith.constant 10 : index
    %697 = memref.load %arg11[%c10] : memref<51xf32, #tpu.memory_space<smem>>
    %698 = vector.extract_strided_slice %511 {offsets = [0, 254], sizes = [1, 2], strides = [1, 1]} : vector<1x256xf32> to vector<1x2xf32>
    %699 = vector.extract_strided_slice %511 {offsets = [0, 0], sizes = [1, 254], strides = [1, 1]} : vector<1x256xf32> to vector<1x254xf32>
    %700 = tpu.concatenate %698, %699 in 1 : vector<1x2xf32>, vector<1x254xf32> -> vector<1x256xf32>
    %cst_215 = arith.constant 0.000000e+00 : f32
    %701 = vector.broadcast %cst_215 : f32 to vector<1x256xf32>
    %702 = arith.select %210, %700, %701 : vector<1x256xi1>, vector<1x256xf32>
    %703 = vector.broadcast %697 : f32 to vector<1x256xf32>
    %704 = arith.mulf %703, %702 : vector<1x256xf32>
    %705 = arith.addf %696, %704 : vector<1x256xf32>
    %c35 = arith.constant 35 : index
    %706 = memref.load %arg11[%c35] : memref<51xf32, #tpu.memory_space<smem>>
    %707 = vector.extract_strided_slice %515 {offsets = [0, 254], sizes = [1, 2], strides = [1, 1]} : vector<1x256xf32> to vector<1x2xf32>
    %708 = vector.extract_strided_slice %515 {offsets = [0, 0], sizes = [1, 254], strides = [1, 1]} : vector<1x256xf32> to vector<1x254xf32>
    %709 = tpu.concatenate %707, %708 in 1 : vector<1x2xf32>, vector<1x254xf32> -> vector<1x256xf32>
    %cst_216 = arith.constant 0.000000e+00 : f32
    %710 = vector.broadcast %cst_216 : f32 to vector<1x256xf32>
    %711 = arith.select %210, %709, %710 : vector<1x256xi1>, vector<1x256xf32>
    %712 = vector.broadcast %706 : f32 to vector<1x256xf32>
    %713 = arith.mulf %712, %711 : vector<1x256xf32>
    %714 = arith.addf %705, %713 : vector<1x256xf32>
    %c11 = arith.constant 11 : index
    %715 = memref.load %arg11[%c11] : memref<51xf32, #tpu.memory_space<smem>>
    %716 = vector.extract_strided_slice %511 {offsets = [0, 255], sizes = [1, 1], strides = [1, 1]} : vector<1x256xf32> to vector<1x1xf32>
    %717 = vector.extract_strided_slice %511 {offsets = [0, 0], sizes = [1, 255], strides = [1, 1]} : vector<1x256xf32> to vector<1x255xf32>
    %718 = tpu.concatenate %716, %717 in 1 : vector<1x1xf32>, vector<1x255xf32> -> vector<1x256xf32>
    %cst_217 = arith.constant 0.000000e+00 : f32
    %719 = vector.broadcast %cst_217 : f32 to vector<1x256xf32>
    %720 = arith.select %221, %718, %719 : vector<1x256xi1>, vector<1x256xf32>
    %721 = vector.broadcast %715 : f32 to vector<1x256xf32>
    %722 = arith.mulf %721, %720 : vector<1x256xf32>
    %723 = arith.addf %714, %722 : vector<1x256xf32>
    %c36 = arith.constant 36 : index
    %724 = memref.load %arg11[%c36] : memref<51xf32, #tpu.memory_space<smem>>
    %725 = vector.extract_strided_slice %515 {offsets = [0, 255], sizes = [1, 1], strides = [1, 1]} : vector<1x256xf32> to vector<1x1xf32>
    %726 = vector.extract_strided_slice %515 {offsets = [0, 0], sizes = [1, 255], strides = [1, 1]} : vector<1x256xf32> to vector<1x255xf32>
    %727 = tpu.concatenate %725, %726 in 1 : vector<1x1xf32>, vector<1x255xf32> -> vector<1x256xf32>
    %cst_218 = arith.constant 0.000000e+00 : f32
    %728 = vector.broadcast %cst_218 : f32 to vector<1x256xf32>
    %729 = arith.select %221, %727, %728 : vector<1x256xi1>, vector<1x256xf32>
    %730 = vector.broadcast %724 : f32 to vector<1x256xf32>
    %731 = arith.mulf %730, %729 : vector<1x256xf32>
    %732 = arith.addf %723, %731 : vector<1x256xf32>
    %c12_219 = arith.constant 12 : index
    %733 = memref.load %arg11[%c12_219] : memref<51xf32, #tpu.memory_space<smem>>
    %734 = vector.broadcast %733 : f32 to vector<1x256xf32>
    %735 = arith.mulf %734, %511 : vector<1x256xf32>
    %736 = arith.addf %732, %735 : vector<1x256xf32>
    %c37 = arith.constant 37 : index
    %737 = memref.load %arg11[%c37] : memref<51xf32, #tpu.memory_space<smem>>
    %738 = vector.broadcast %737 : f32 to vector<1x256xf32>
    %739 = arith.mulf %738, %515 : vector<1x256xf32>
    %740 = arith.addf %736, %739 : vector<1x256xf32>
    %c13 = arith.constant 13 : index
    %741 = memref.load %arg11[%c13] : memref<51xf32, #tpu.memory_space<smem>>
    %742 = vector.extract_strided_slice %511 {offsets = [0, 1], sizes = [1, 255], strides = [1, 1]} : vector<1x256xf32> to vector<1x255xf32>
    %743 = vector.extract_strided_slice %511 {offsets = [0, 0], sizes = [1, 1], strides = [1, 1]} : vector<1x256xf32> to vector<1x1xf32>
    %744 = tpu.concatenate %742, %743 in 1 : vector<1x255xf32>, vector<1x1xf32> -> vector<1x256xf32>
    %cst_220 = arith.constant 0.000000e+00 : f32
    %745 = vector.broadcast %cst_220 : f32 to vector<1x256xf32>
    %746 = arith.select %232, %744, %745 : vector<1x256xi1>, vector<1x256xf32>
    %747 = vector.broadcast %741 : f32 to vector<1x256xf32>
    %748 = arith.mulf %747, %746 : vector<1x256xf32>
    %749 = arith.addf %740, %748 : vector<1x256xf32>
    %c38 = arith.constant 38 : index
    %750 = memref.load %arg11[%c38] : memref<51xf32, #tpu.memory_space<smem>>
    %751 = vector.extract_strided_slice %515 {offsets = [0, 1], sizes = [1, 255], strides = [1, 1]} : vector<1x256xf32> to vector<1x255xf32>
    %752 = vector.extract_strided_slice %515 {offsets = [0, 0], sizes = [1, 1], strides = [1, 1]} : vector<1x256xf32> to vector<1x1xf32>
    %753 = tpu.concatenate %751, %752 in 1 : vector<1x255xf32>, vector<1x1xf32> -> vector<1x256xf32>
    %cst_221 = arith.constant 0.000000e+00 : f32
    %754 = vector.broadcast %cst_221 : f32 to vector<1x256xf32>
    %755 = arith.select %232, %753, %754 : vector<1x256xi1>, vector<1x256xf32>
    %756 = vector.broadcast %750 : f32 to vector<1x256xf32>
    %757 = arith.mulf %756, %755 : vector<1x256xf32>
    %758 = arith.addf %749, %757 : vector<1x256xf32>
    %c14 = arith.constant 14 : index
    %759 = memref.load %arg11[%c14] : memref<51xf32, #tpu.memory_space<smem>>
    %760 = vector.extract_strided_slice %511 {offsets = [0, 2], sizes = [1, 254], strides = [1, 1]} : vector<1x256xf32> to vector<1x254xf32>
    %761 = vector.extract_strided_slice %511 {offsets = [0, 0], sizes = [1, 2], strides = [1, 1]} : vector<1x256xf32> to vector<1x2xf32>
    %762 = tpu.concatenate %760, %761 in 1 : vector<1x254xf32>, vector<1x2xf32> -> vector<1x256xf32>
    %cst_222 = arith.constant 0.000000e+00 : f32
    %763 = vector.broadcast %cst_222 : f32 to vector<1x256xf32>
    %764 = arith.select %243, %762, %763 : vector<1x256xi1>, vector<1x256xf32>
    %765 = vector.broadcast %759 : f32 to vector<1x256xf32>
    %766 = arith.mulf %765, %764 : vector<1x256xf32>
    %767 = arith.addf %758, %766 : vector<1x256xf32>
    %c39 = arith.constant 39 : index
    %768 = memref.load %arg11[%c39] : memref<51xf32, #tpu.memory_space<smem>>
    %769 = vector.extract_strided_slice %515 {offsets = [0, 2], sizes = [1, 254], strides = [1, 1]} : vector<1x256xf32> to vector<1x254xf32>
    %770 = vector.extract_strided_slice %515 {offsets = [0, 0], sizes = [1, 2], strides = [1, 1]} : vector<1x256xf32> to vector<1x2xf32>
    %771 = tpu.concatenate %769, %770 in 1 : vector<1x254xf32>, vector<1x2xf32> -> vector<1x256xf32>
    %cst_223 = arith.constant 0.000000e+00 : f32
    %772 = vector.broadcast %cst_223 : f32 to vector<1x256xf32>
    %773 = arith.select %243, %771, %772 : vector<1x256xi1>, vector<1x256xf32>
    %774 = vector.broadcast %768 : f32 to vector<1x256xf32>
    %775 = arith.mulf %774, %773 : vector<1x256xf32>
    %776 = arith.addf %767, %775 : vector<1x256xf32>
    %c15 = arith.constant 15 : index
    %777 = memref.load %arg11[%c15] : memref<51xf32, #tpu.memory_space<smem>>
    %778 = vector.extract_strided_slice %511 {offsets = [0, 14], sizes = [1, 242], strides = [1, 1]} : vector<1x256xf32> to vector<1x242xf32>
    %779 = vector.extract_strided_slice %511 {offsets = [0, 0], sizes = [1, 14], strides = [1, 1]} : vector<1x256xf32> to vector<1x14xf32>
    %780 = tpu.concatenate %778, %779 in 1 : vector<1x242xf32>, vector<1x14xf32> -> vector<1x256xf32>
    %cst_224 = arith.constant 0.000000e+00 : f32
    %781 = vector.broadcast %cst_224 : f32 to vector<1x256xf32>
    %782 = arith.select %254, %780, %781 : vector<1x256xi1>, vector<1x256xf32>
    %783 = vector.broadcast %777 : f32 to vector<1x256xf32>
    %784 = arith.mulf %783, %782 : vector<1x256xf32>
    %785 = arith.addf %776, %784 : vector<1x256xf32>
    %c40_225 = arith.constant 40 : index
    %786 = memref.load %arg11[%c40_225] : memref<51xf32, #tpu.memory_space<smem>>
    %787 = vector.extract_strided_slice %515 {offsets = [0, 14], sizes = [1, 242], strides = [1, 1]} : vector<1x256xf32> to vector<1x242xf32>
    %788 = vector.extract_strided_slice %515 {offsets = [0, 0], sizes = [1, 14], strides = [1, 1]} : vector<1x256xf32> to vector<1x14xf32>
    %789 = tpu.concatenate %787, %788 in 1 : vector<1x242xf32>, vector<1x14xf32> -> vector<1x256xf32>
    %cst_226 = arith.constant 0.000000e+00 : f32
    %790 = vector.broadcast %cst_226 : f32 to vector<1x256xf32>
    %791 = arith.select %254, %789, %790 : vector<1x256xi1>, vector<1x256xf32>
    %792 = vector.broadcast %786 : f32 to vector<1x256xf32>
    %793 = arith.mulf %792, %791 : vector<1x256xf32>
    %794 = arith.addf %785, %793 : vector<1x256xf32>
    %c16_227 = arith.constant 16 : index
    %795 = memref.load %arg11[%c16_227] : memref<51xf32, #tpu.memory_space<smem>>
    %796 = vector.extract_strided_slice %511 {offsets = [0, 15], sizes = [1, 241], strides = [1, 1]} : vector<1x256xf32> to vector<1x241xf32>
    %797 = vector.extract_strided_slice %511 {offsets = [0, 0], sizes = [1, 15], strides = [1, 1]} : vector<1x256xf32> to vector<1x15xf32>
    %798 = tpu.concatenate %796, %797 in 1 : vector<1x241xf32>, vector<1x15xf32> -> vector<1x256xf32>
    %cst_228 = arith.constant 0.000000e+00 : f32
    %799 = vector.broadcast %cst_228 : f32 to vector<1x256xf32>
    %800 = arith.select %265, %798, %799 : vector<1x256xi1>, vector<1x256xf32>
    %801 = vector.broadcast %795 : f32 to vector<1x256xf32>
    %802 = arith.mulf %801, %800 : vector<1x256xf32>
    %803 = arith.addf %794, %802 : vector<1x256xf32>
    %c41 = arith.constant 41 : index
    %804 = memref.load %arg11[%c41] : memref<51xf32, #tpu.memory_space<smem>>
    %805 = vector.extract_strided_slice %515 {offsets = [0, 15], sizes = [1, 241], strides = [1, 1]} : vector<1x256xf32> to vector<1x241xf32>
    %806 = vector.extract_strided_slice %515 {offsets = [0, 0], sizes = [1, 15], strides = [1, 1]} : vector<1x256xf32> to vector<1x15xf32>
    %807 = tpu.concatenate %805, %806 in 1 : vector<1x241xf32>, vector<1x15xf32> -> vector<1x256xf32>
    %cst_229 = arith.constant 0.000000e+00 : f32
    %808 = vector.broadcast %cst_229 : f32 to vector<1x256xf32>
    %809 = arith.select %265, %807, %808 : vector<1x256xi1>, vector<1x256xf32>
    %810 = vector.broadcast %804 : f32 to vector<1x256xf32>
    %811 = arith.mulf %810, %809 : vector<1x256xf32>
    %812 = arith.addf %803, %811 : vector<1x256xf32>
    %c17 = arith.constant 17 : index
    %813 = memref.load %arg11[%c17] : memref<51xf32, #tpu.memory_space<smem>>
    %814 = vector.extract_strided_slice %511 {offsets = [0, 16], sizes = [1, 240], strides = [1, 1]} : vector<1x256xf32> to vector<1x240xf32>
    %815 = vector.extract_strided_slice %511 {offsets = [0, 0], sizes = [1, 16], strides = [1, 1]} : vector<1x256xf32> to vector<1x16xf32>
    %816 = tpu.concatenate %814, %815 in 1 : vector<1x240xf32>, vector<1x16xf32> -> vector<1x256xf32>
    %cst_230 = arith.constant 0.000000e+00 : f32
    %817 = vector.broadcast %cst_230 : f32 to vector<1x256xf32>
    %818 = arith.select %276, %816, %817 : vector<1x256xi1>, vector<1x256xf32>
    %819 = vector.broadcast %813 : f32 to vector<1x256xf32>
    %820 = arith.mulf %819, %818 : vector<1x256xf32>
    %821 = arith.addf %812, %820 : vector<1x256xf32>
    %c42 = arith.constant 42 : index
    %822 = memref.load %arg11[%c42] : memref<51xf32, #tpu.memory_space<smem>>
    %823 = vector.extract_strided_slice %515 {offsets = [0, 16], sizes = [1, 240], strides = [1, 1]} : vector<1x256xf32> to vector<1x240xf32>
    %824 = vector.extract_strided_slice %515 {offsets = [0, 0], sizes = [1, 16], strides = [1, 1]} : vector<1x256xf32> to vector<1x16xf32>
    %825 = tpu.concatenate %823, %824 in 1 : vector<1x240xf32>, vector<1x16xf32> -> vector<1x256xf32>
    %cst_231 = arith.constant 0.000000e+00 : f32
    %826 = vector.broadcast %cst_231 : f32 to vector<1x256xf32>
    %827 = arith.select %276, %825, %826 : vector<1x256xi1>, vector<1x256xf32>
    %828 = vector.broadcast %822 : f32 to vector<1x256xf32>
    %829 = arith.mulf %828, %827 : vector<1x256xf32>
    %830 = arith.addf %821, %829 : vector<1x256xf32>
    %c18 = arith.constant 18 : index
    %831 = memref.load %arg11[%c18] : memref<51xf32, #tpu.memory_space<smem>>
    %832 = vector.extract_strided_slice %511 {offsets = [0, 17], sizes = [1, 239], strides = [1, 1]} : vector<1x256xf32> to vector<1x239xf32>
    %833 = vector.extract_strided_slice %511 {offsets = [0, 0], sizes = [1, 17], strides = [1, 1]} : vector<1x256xf32> to vector<1x17xf32>
    %834 = tpu.concatenate %832, %833 in 1 : vector<1x239xf32>, vector<1x17xf32> -> vector<1x256xf32>
    %cst_232 = arith.constant 0.000000e+00 : f32
    %835 = vector.broadcast %cst_232 : f32 to vector<1x256xf32>
    %836 = arith.select %287, %834, %835 : vector<1x256xi1>, vector<1x256xf32>
    %837 = vector.broadcast %831 : f32 to vector<1x256xf32>
    %838 = arith.mulf %837, %836 : vector<1x256xf32>
    %839 = arith.addf %830, %838 : vector<1x256xf32>
    %c43 = arith.constant 43 : index
    %840 = memref.load %arg11[%c43] : memref<51xf32, #tpu.memory_space<smem>>
    %841 = vector.extract_strided_slice %515 {offsets = [0, 17], sizes = [1, 239], strides = [1, 1]} : vector<1x256xf32> to vector<1x239xf32>
    %842 = vector.extract_strided_slice %515 {offsets = [0, 0], sizes = [1, 17], strides = [1, 1]} : vector<1x256xf32> to vector<1x17xf32>
    %843 = tpu.concatenate %841, %842 in 1 : vector<1x239xf32>, vector<1x17xf32> -> vector<1x256xf32>
    %cst_233 = arith.constant 0.000000e+00 : f32
    %844 = vector.broadcast %cst_233 : f32 to vector<1x256xf32>
    %845 = arith.select %287, %843, %844 : vector<1x256xi1>, vector<1x256xf32>
    %846 = vector.broadcast %840 : f32 to vector<1x256xf32>
    %847 = arith.mulf %846, %845 : vector<1x256xf32>
    %848 = arith.addf %839, %847 : vector<1x256xf32>
    %c19 = arith.constant 19 : index
    %849 = memref.load %arg11[%c19] : memref<51xf32, #tpu.memory_space<smem>>
    %850 = vector.extract_strided_slice %511 {offsets = [0, 18], sizes = [1, 238], strides = [1, 1]} : vector<1x256xf32> to vector<1x238xf32>
    %851 = vector.extract_strided_slice %511 {offsets = [0, 0], sizes = [1, 18], strides = [1, 1]} : vector<1x256xf32> to vector<1x18xf32>
    %852 = tpu.concatenate %850, %851 in 1 : vector<1x238xf32>, vector<1x18xf32> -> vector<1x256xf32>
    %cst_234 = arith.constant 0.000000e+00 : f32
    %853 = vector.broadcast %cst_234 : f32 to vector<1x256xf32>
    %854 = arith.select %298, %852, %853 : vector<1x256xi1>, vector<1x256xf32>
    %855 = vector.broadcast %849 : f32 to vector<1x256xf32>
    %856 = arith.mulf %855, %854 : vector<1x256xf32>
    %857 = arith.addf %848, %856 : vector<1x256xf32>
    %c44 = arith.constant 44 : index
    %858 = memref.load %arg11[%c44] : memref<51xf32, #tpu.memory_space<smem>>
    %859 = vector.extract_strided_slice %515 {offsets = [0, 18], sizes = [1, 238], strides = [1, 1]} : vector<1x256xf32> to vector<1x238xf32>
    %860 = vector.extract_strided_slice %515 {offsets = [0, 0], sizes = [1, 18], strides = [1, 1]} : vector<1x256xf32> to vector<1x18xf32>
    %861 = tpu.concatenate %859, %860 in 1 : vector<1x238xf32>, vector<1x18xf32> -> vector<1x256xf32>
    %cst_235 = arith.constant 0.000000e+00 : f32
    %862 = vector.broadcast %cst_235 : f32 to vector<1x256xf32>
    %863 = arith.select %298, %861, %862 : vector<1x256xi1>, vector<1x256xf32>
    %864 = vector.broadcast %858 : f32 to vector<1x256xf32>
    %865 = arith.mulf %864, %863 : vector<1x256xf32>
    %866 = arith.addf %857, %865 : vector<1x256xf32>
    %c20_236 = arith.constant 20 : index
    %867 = memref.load %arg11[%c20_236] : memref<51xf32, #tpu.memory_space<smem>>
    %868 = vector.extract_strided_slice %511 {offsets = [0, 30], sizes = [1, 226], strides = [1, 1]} : vector<1x256xf32> to vector<1x226xf32>
    %869 = vector.extract_strided_slice %511 {offsets = [0, 0], sizes = [1, 30], strides = [1, 1]} : vector<1x256xf32> to vector<1x30xf32>
    %870 = tpu.concatenate %868, %869 in 1 : vector<1x226xf32>, vector<1x30xf32> -> vector<1x256xf32>
    %cst_237 = arith.constant 0.000000e+00 : f32
    %871 = vector.broadcast %cst_237 : f32 to vector<1x256xf32>
    %872 = arith.select %309, %870, %871 : vector<1x256xi1>, vector<1x256xf32>
    %873 = vector.broadcast %867 : f32 to vector<1x256xf32>
    %874 = arith.mulf %873, %872 : vector<1x256xf32>
    %875 = arith.addf %866, %874 : vector<1x256xf32>
    %c45 = arith.constant 45 : index
    %876 = memref.load %arg11[%c45] : memref<51xf32, #tpu.memory_space<smem>>
    %877 = vector.extract_strided_slice %515 {offsets = [0, 30], sizes = [1, 226], strides = [1, 1]} : vector<1x256xf32> to vector<1x226xf32>
    %878 = vector.extract_strided_slice %515 {offsets = [0, 0], sizes = [1, 30], strides = [1, 1]} : vector<1x256xf32> to vector<1x30xf32>
    %879 = tpu.concatenate %877, %878 in 1 : vector<1x226xf32>, vector<1x30xf32> -> vector<1x256xf32>
    %cst_238 = arith.constant 0.000000e+00 : f32
    %880 = vector.broadcast %cst_238 : f32 to vector<1x256xf32>
    %881 = arith.select %309, %879, %880 : vector<1x256xi1>, vector<1x256xf32>
    %882 = vector.broadcast %876 : f32 to vector<1x256xf32>
    %883 = arith.mulf %882, %881 : vector<1x256xf32>
    %884 = arith.addf %875, %883 : vector<1x256xf32>
    %c21 = arith.constant 21 : index
    %885 = memref.load %arg11[%c21] : memref<51xf32, #tpu.memory_space<smem>>
    %886 = vector.extract_strided_slice %511 {offsets = [0, 31], sizes = [1, 225], strides = [1, 1]} : vector<1x256xf32> to vector<1x225xf32>
    %887 = vector.extract_strided_slice %511 {offsets = [0, 0], sizes = [1, 31], strides = [1, 1]} : vector<1x256xf32> to vector<1x31xf32>
    %888 = tpu.concatenate %886, %887 in 1 : vector<1x225xf32>, vector<1x31xf32> -> vector<1x256xf32>
    %cst_239 = arith.constant 0.000000e+00 : f32
    %889 = vector.broadcast %cst_239 : f32 to vector<1x256xf32>
    %890 = arith.select %320, %888, %889 : vector<1x256xi1>, vector<1x256xf32>
    %891 = vector.broadcast %885 : f32 to vector<1x256xf32>
    %892 = arith.mulf %891, %890 : vector<1x256xf32>
    %893 = arith.addf %884, %892 : vector<1x256xf32>
    %c46 = arith.constant 46 : index
    %894 = memref.load %arg11[%c46] : memref<51xf32, #tpu.memory_space<smem>>
    %895 = vector.extract_strided_slice %515 {offsets = [0, 31], sizes = [1, 225], strides = [1, 1]} : vector<1x256xf32> to vector<1x225xf32>
    %896 = vector.extract_strided_slice %515 {offsets = [0, 0], sizes = [1, 31], strides = [1, 1]} : vector<1x256xf32> to vector<1x31xf32>
    %897 = tpu.concatenate %895, %896 in 1 : vector<1x225xf32>, vector<1x31xf32> -> vector<1x256xf32>
    %cst_240 = arith.constant 0.000000e+00 : f32
    %898 = vector.broadcast %cst_240 : f32 to vector<1x256xf32>
    %899 = arith.select %320, %897, %898 : vector<1x256xi1>, vector<1x256xf32>
    %900 = vector.broadcast %894 : f32 to vector<1x256xf32>
    %901 = arith.mulf %900, %899 : vector<1x256xf32>
    %902 = arith.addf %893, %901 : vector<1x256xf32>
    %c22 = arith.constant 22 : index
    %903 = memref.load %arg11[%c22] : memref<51xf32, #tpu.memory_space<smem>>
    %904 = vector.extract_strided_slice %511 {offsets = [0, 32], sizes = [1, 224], strides = [1, 1]} : vector<1x256xf32> to vector<1x224xf32>
    %905 = vector.extract_strided_slice %511 {offsets = [0, 0], sizes = [1, 32], strides = [1, 1]} : vector<1x256xf32> to vector<1x32xf32>
    %906 = tpu.concatenate %904, %905 in 1 : vector<1x224xf32>, vector<1x32xf32> -> vector<1x256xf32>
    %cst_241 = arith.constant 0.000000e+00 : f32
    %907 = vector.broadcast %cst_241 : f32 to vector<1x256xf32>
    %908 = arith.select %331, %906, %907 : vector<1x256xi1>, vector<1x256xf32>
    %909 = vector.broadcast %903 : f32 to vector<1x256xf32>
    %910 = arith.mulf %909, %908 : vector<1x256xf32>
    %911 = arith.addf %902, %910 : vector<1x256xf32>
    %c47 = arith.constant 47 : index
    %912 = memref.load %arg11[%c47] : memref<51xf32, #tpu.memory_space<smem>>
    %913 = vector.extract_strided_slice %515 {offsets = [0, 32], sizes = [1, 224], strides = [1, 1]} : vector<1x256xf32> to vector<1x224xf32>
    %914 = vector.extract_strided_slice %515 {offsets = [0, 0], sizes = [1, 32], strides = [1, 1]} : vector<1x256xf32> to vector<1x32xf32>
    %915 = tpu.concatenate %913, %914 in 1 : vector<1x224xf32>, vector<1x32xf32> -> vector<1x256xf32>
    %cst_242 = arith.constant 0.000000e+00 : f32
    %916 = vector.broadcast %cst_242 : f32 to vector<1x256xf32>
    %917 = arith.select %331, %915, %916 : vector<1x256xi1>, vector<1x256xf32>
    %918 = vector.broadcast %912 : f32 to vector<1x256xf32>
    %919 = arith.mulf %918, %917 : vector<1x256xf32>
    %920 = arith.addf %911, %919 : vector<1x256xf32>
    %c23 = arith.constant 23 : index
    %921 = memref.load %arg11[%c23] : memref<51xf32, #tpu.memory_space<smem>>
    %922 = vector.extract_strided_slice %511 {offsets = [0, 33], sizes = [1, 223], strides = [1, 1]} : vector<1x256xf32> to vector<1x223xf32>
    %923 = vector.extract_strided_slice %511 {offsets = [0, 0], sizes = [1, 33], strides = [1, 1]} : vector<1x256xf32> to vector<1x33xf32>
    %924 = tpu.concatenate %922, %923 in 1 : vector<1x223xf32>, vector<1x33xf32> -> vector<1x256xf32>
    %cst_243 = arith.constant 0.000000e+00 : f32
    %925 = vector.broadcast %cst_243 : f32 to vector<1x256xf32>
    %926 = arith.select %342, %924, %925 : vector<1x256xi1>, vector<1x256xf32>
    %927 = vector.broadcast %921 : f32 to vector<1x256xf32>
    %928 = arith.mulf %927, %926 : vector<1x256xf32>
    %929 = arith.addf %920, %928 : vector<1x256xf32>
    %c48_244 = arith.constant 48 : index
    %930 = memref.load %arg11[%c48_244] : memref<51xf32, #tpu.memory_space<smem>>
    %931 = vector.extract_strided_slice %515 {offsets = [0, 33], sizes = [1, 223], strides = [1, 1]} : vector<1x256xf32> to vector<1x223xf32>
    %932 = vector.extract_strided_slice %515 {offsets = [0, 0], sizes = [1, 33], strides = [1, 1]} : vector<1x256xf32> to vector<1x33xf32>
    %933 = tpu.concatenate %931, %932 in 1 : vector<1x223xf32>, vector<1x33xf32> -> vector<1x256xf32>
    %cst_245 = arith.constant 0.000000e+00 : f32
    %934 = vector.broadcast %cst_245 : f32 to vector<1x256xf32>
    %935 = arith.select %342, %933, %934 : vector<1x256xi1>, vector<1x256xf32>
    %936 = vector.broadcast %930 : f32 to vector<1x256xf32>
    %937 = arith.mulf %936, %935 : vector<1x256xf32>
    %938 = arith.addf %929, %937 : vector<1x256xf32>
    %c24_246 = arith.constant 24 : index
    %939 = memref.load %arg11[%c24_246] : memref<51xf32, #tpu.memory_space<smem>>
    %940 = vector.extract_strided_slice %511 {offsets = [0, 34], sizes = [1, 222], strides = [1, 1]} : vector<1x256xf32> to vector<1x222xf32>
    %941 = vector.extract_strided_slice %511 {offsets = [0, 0], sizes = [1, 34], strides = [1, 1]} : vector<1x256xf32> to vector<1x34xf32>
    %942 = tpu.concatenate %940, %941 in 1 : vector<1x222xf32>, vector<1x34xf32> -> vector<1x256xf32>
    %cst_247 = arith.constant 0.000000e+00 : f32
    %943 = vector.broadcast %cst_247 : f32 to vector<1x256xf32>
    %944 = arith.select %353, %942, %943 : vector<1x256xi1>, vector<1x256xf32>
    %945 = vector.broadcast %939 : f32 to vector<1x256xf32>
    %946 = arith.mulf %945, %944 : vector<1x256xf32>
    %947 = arith.addf %938, %946 : vector<1x256xf32>
    %c49 = arith.constant 49 : index
    %948 = memref.load %arg11[%c49] : memref<51xf32, #tpu.memory_space<smem>>
    %949 = vector.extract_strided_slice %515 {offsets = [0, 34], sizes = [1, 222], strides = [1, 1]} : vector<1x256xf32> to vector<1x222xf32>
    %950 = vector.extract_strided_slice %515 {offsets = [0, 0], sizes = [1, 34], strides = [1, 1]} : vector<1x256xf32> to vector<1x34xf32>
    %951 = tpu.concatenate %949, %950 in 1 : vector<1x222xf32>, vector<1x34xf32> -> vector<1x256xf32>
    %cst_248 = arith.constant 0.000000e+00 : f32
    %952 = vector.broadcast %cst_248 : f32 to vector<1x256xf32>
    %953 = arith.select %353, %951, %952 : vector<1x256xi1>, vector<1x256xf32>
    %954 = vector.broadcast %948 : f32 to vector<1x256xf32>
    %955 = arith.mulf %954, %953 : vector<1x256xf32>
    %956 = arith.addf %947, %955 : vector<1x256xf32>
    %c50 = arith.constant 50 : index
    %957 = memref.load %arg11[%c50] : memref<51xf32, #tpu.memory_space<smem>>
    %958 = vector.broadcast %957 : f32 to vector<1x256xf32>
    %959 = arith.addf %956, %958 : vector<1x256xf32>
    %cst_249 = arith.constant 5.000000e-01 : f32
    %960 = vector.broadcast %cst_249 : f32 to vector<1x256xf32>
    %961 = arith.mulf %960, %959 : vector<1x256xf32>
    %962 = math.tanh %961 : vector<1x256xf32>
    %cst_250 = arith.constant 5.000000e-01 : f32
    %963 = vector.broadcast %cst_250 : f32 to vector<1x256xf32>
    %964 = arith.mulf %963, %962 : vector<1x256xf32>
    %cst_251 = arith.constant 5.000000e-01 : f32
    %965 = vector.broadcast %cst_251 : f32 to vector<1x256xf32>
    %966 = arith.addf %964, %965 : vector<1x256xf32>
    %cst_252 = arith.constant 5.000000e-01 : f32
    %967 = vector.broadcast %cst_252 : f32 to vector<1x256xf32>
    %968 = arith.mulf %967, %966 : vector<1x256xf32>
    %969 = math.tanh %968 : vector<1x256xf32>
    %cst_253 = arith.constant 5.000000e-01 : f32
    %970 = vector.broadcast %cst_253 : f32 to vector<1x256xf32>
    %971 = arith.mulf %970, %969 : vector<1x256xf32>
    %cst_254 = arith.constant 5.000000e-01 : f32
    %972 = vector.broadcast %cst_254 : f32 to vector<1x256xf32>
    %973 = arith.addf %971, %972 : vector<1x256xf32>
    %974 = vector.broadcast %973 : vector<1x256xf32> to vector<8x256xf32>
    %975 = arith.mulf %509, %974 : vector<8x256xf32>
    %976 = arith.addf %975, %365 : vector<8x256xf32>
    %c0_255 = arith.constant 0 : index
    %c0_256 = arith.constant 0 : index
    %c0_257 = arith.constant 0 : index
    %977 = vector.load %arg12[%c0_255, %c0_256, %c0_257] : memref<1x8x256xf32, #tpu.memory_space<vmem>>, vector<1x8x256xf32>
    %978 = vector.shape_cast %977 : vector<1x8x256xf32> to vector<8x256xf32>
    %979 = vector.shape_cast %976 : vector<8x256xf32> to vector<1x8x256xf32>
    tpu.vector_store %arg12[%c0_255, %c0_256, %c0_257], %979 {strides = array<i32>} : memref<1x8x256xf32, #tpu.memory_space<vmem>>, vector<1x8x256xf32>,
    return
  }
  func.func @transform_0(%arg0: i32) -> (i32, i32, i32) {
    %c0_i32 = arith.constant 0 : i32
    %c0_i32_0 = arith.constant 0 : i32
    %c0_i32_1 = arith.constant 0 : i32
    return %arg0, %c0_i32, %c0_i32_0 : i32, i32, i32
  }
  func.func @transform_1(%arg0: i32) -> (i32, i32) {
    %c0_i32 = arith.constant 0 : i32
    %c0_i32_0 = arith.constant 0 : i32
    %c0_i32_1 = arith.constant 0 : i32
    return %c0_i32, %c0_i32_0 : i32, i32
  }
  func.func @transform_2(%arg0: i32) -> (i32, i32) {
    %c0_i32 = arith.constant 0 : i32
    %c0_i32_0 = arith.constant 0 : i32
    %c0_i32_1 = arith.constant 0 : i32
    return %c0_i32, %c0_i32_0 : i32, i32
  }
  func.func @transform_3(%arg0: i32) -> (i32, i32) {
    %c0_i32 = arith.constant 0 : i32
    %c0_i32_0 = arith.constant 0 : i32
    %c0_i32_1 = arith.constant 0 : i32
    return %c0_i32, %c0_i32_0 : i32, i32
  }
  func.func @transform_4(%arg0: i32) -> (i32, i32) {
    %c0_i32 = arith.constant 0 : i32
    %c0_i32_0 = arith.constant 0 : i32
    %c0_i32_1 = arith.constant 0 : i32
    return %c0_i32, %c0_i32_0 : i32, i32
  }
  func.func @transform_5(%arg0: i32) -> (i32, i32) {
    %c0_i32 = arith.constant 0 : i32
    %c0_i32_0 = arith.constant 0 : i32
    %c0_i32_1 = arith.constant 0 : i32
    return %c0_i32, %c0_i32_0 : i32, i32
  }
  func.func @transform_6(%arg0: i32) -> (i32, i32) {
    %c0_i32 = arith.constant 0 : i32
    %c0_i32_0 = arith.constant 0 : i32
    %c0_i32_1 = arith.constant 0 : i32
    return %c0_i32, %c0_i32_0 : i32, i32
  }
  func.func @transform_7(%arg0: i32) -> (i32, i32) {
    %c0_i32 = arith.constant 0 : i32
    %c0_i32_0 = arith.constant 0 : i32
    %c0_i32_1 = arith.constant 0 : i32
    return %c0_i32, %c0_i32_0 : i32, i32
  }
  func.func @transform_8(%arg0: i32) -> (i32, i32) {
    %c0_i32 = arith.constant 0 : i32
    %c0_i32_0 = arith.constant 0 : i32
    %c0_i32_1 = arith.constant 0 : i32
    return %c0_i32, %c0_i32_0 : i32, i32
  }
  func.func @transform_9(%arg0: i32) -> (i32, i32) {
    %c0_i32 = arith.constant 0 : i32
    %c0_i32_0 = arith.constant 0 : i32
    %c0_i32_1 = arith.constant 0 : i32
    return %c0_i32, %c0_i32_0 : i32, i32
  }
  func.func @transform_10(%arg0: i32) -> i32 {
    %c0_i32 = arith.constant 0 : i32
    %c0_i32_0 = arith.constant 0 : i32
    return %c0_i32 : i32
  }
  func.func @transform_11(%arg0: i32) -> (i32, i32, i32) {
    %c0_i32 = arith.constant 0 : i32
    %c0_i32_0 = arith.constant 0 : i32
    %c0_i32_1 = arith.constant 0 : i32
    return %arg0, %c0_i32, %c0_i32_0 : i32, i32, i32
  }
}

</mosaic_0001>

<llo_original>
// kernel: tpu_custom_call.1
$region0: #{tpu_custom_call.1}
  #allocation0 [shape = 'u32[]', space=smem, size = 0x4, offset = 0x4, fixed_abs, tag = 'smem constant byte address 0x4 - core index']
  #allocation1 [shape = 'u32[144,128]{1,0:T(1,128)}', space=vmem, size = 0x12000, scoped, tag = 'internal scratch']
  #allocation2 [shape = 'f32[36,256]{1,0:T(8,128)}', space=vmem, size = 0xa000, scoped, tag = 'scratch operand']
  #allocation3 [shape = 'f32[72,256]{1,0:T(8,128)}', space=vmem, size = 0x12000, scoped, tag = 'scratch operand']
  %s0 = inlined_call_operand.vmem [shape: f32[2,4,256], index: 0, kind: input, shape index: {}]
  %s1 = inlined_call_operand.vmem [shape: s32[1,256], index: 1, kind: input, shape index: {}]
  %s2 = inlined_call_operand.vmem [shape: s32[1,256], index: 2, kind: input, shape index: {}]
  %s3 = inlined_call_operand.vmem [shape: f32[4,1], index: 3, kind: input, shape index: {}]
  %s4 = inlined_call_operand.vmem [shape: f32[4,1], index: 4, kind: input, shape index: {}]
  %s5 = inlined_call_operand.vmem [shape: f32[8,36], index: 5, kind: input, shape index: {}]
  %s6 = inlined_call_operand.vmem [shape: f32[8,4], index: 6, kind: input, shape index: {}]
  %s7 = inlined_call_operand.vmem [shape: f32[8,1], index: 7, kind: input, shape index: {}]
  %s8 = inlined_call_operand.vmem [shape: f32[8,1], index: 8, kind: input, shape index: {}]
  %s9 = inlined_call_operand.vmem [shape: f32[8,72], index: 9, kind: input, shape index: {}]
  %s10 = inlined_call_operand.vmem [shape: f32[51], index: 10, kind: input, shape index: {}]
  %s11 = inlined_call_operand.hbm [shape: f32[2,8,256], index: 11, kind: output, shape index: {}]
  %s12 = sld [smem:[#allocation0]]
  $region81: #{tpu_custom_call.1} parent=0
    _
  %s14 = ssub.s32 1, %s12
  %s15 = scalar_select 0, %s14, %s12
  $region1: #{tpu_custom_call.1} parent=0
    #allocation4 [shape = 'u8[512]{0}', space=smem, size = 0x200, scoped, tag = 'input window, operand 10, single buffered']
    #allocation5 [shape = 's32[2]{0}', space=sflag, size = 0x8, scoped, tag = 'scoped memory for tpu_custom_call.1']
    #allocation6 [shape = 's32[2]{0}', space=sflag, size = 0x8, scoped, tag = 'scoped memory for tpu_custom_call.1']
    #allocation7 [shape = 'u8[16384]{0}', space=vmem, size = 0x4000, scoped, tag = 'output window, operand 0']
    %16 = vsyncpa [#allocation6], 0
    %17 = vsyncpa [#allocation5], 0
    %s18 = scalar_lea.sflag [#allocation5], 1
    %19 = vsyncpa %s18, 0
    loop: start=0, step=1, limit=4
    $region2: #{tpu_custom_call.1} parent=1 // loop_pre_header
      _
    $region3: #{tpu_custom_call.1} parent=1 // loop_header
      %s21 = sphi 0, %s25
      %p22 = scmp.ge.s32.totalorder %s21, 4
      %s31 = sphi 0, %s33
      %s34 = sphi 0, %s31
      %s35 = sphi 0, %s34
      %s51 = sphi 0, %s35
      %s55 = sphi 0, %s55
      %s57 = sphi 0, %s55
      %s58 = sphi 0, %s57
      %s72 = sphi 0, %s58
      %s76 = sphi 0, %s76
      %s78 = sphi 0, %s76
      %s79 = sphi 0, %s78
      %s93 = sphi 0, %s79
      %s97 = sphi 0, %s97
      %s99 = sphi 0, %s97
      %s100 = sphi 0, %s99
      %s114 = sphi 0, %s100
      %s118 = sphi 0, %s118
      %s120 = sphi 0, %s118
      %s121 = sphi 0, %s120
      %s135 = sphi 0, %s121
      %s139 = sphi 0, %s139
      %s141 = sphi 0, %s139
      %s142 = sphi 0, %s141
      %s156 = sphi 0, %s142
      %s160 = sphi 0, %s160
      %s162 = sphi 0, %s160
      %s163 = sphi 0, %s162
      %s177 = sphi 0, %s163
      %s181 = sphi 0, %s181
      %s183 = sphi 0, %s181
      %s184 = sphi 0, %s183
      %s198 = sphi 0, %s184
      %s202 = sphi 0, %s202
      %s204 = sphi 0, %s202
      %s205 = sphi 0, %s204
      %s219 = sphi 0, %s205
      %s223 = sphi 0, %s223
      %s225 = sphi 0, %s223
      %s226 = sphi 0, %s225
      %s240 = sphi 0, %s226
      %s244 = sphi 0, %s244
      %s246 = sphi 0, %s244
      %s247 = sphi 0, %s246
      %s261 = sphi 0, %s247
      %s267 = sphi 0, %s269
      %s270 = sphi 0, %s267
      %s271 = sphi 0, %s270
      %s287 = sphi 0, %s271
    $region4: #{tpu_custom_call.1} parent=1 // loop_header_branch
      %24 = sbr.rel (%p22) target = $region8
    $region5: #{tpu_custom_call.1} parent=1 // loop_body
      %s26 = ssub.s32 %s21, 1
      %s27 = ssub.s32 %s21, 2
      %s28 = sadd.s32 %s21, 1
      %s29 = ssub.s32 %s21, %s28
      %p30 = scmp.eq.s32.totalorder %s29, 0
      %s32 = sadd.s32 %s31, 1
      %s33 = scalar_select %p30, %s31, %s32
      %p36 = pneg %p30
      %p37 = scmp.eq.s32.totalorder %s21, 1
      %p38 = por %p36, %p37
      %p39 = scmp.ne.s32.totalorder %s31, %s34
      %p40 = scmp.eq.s32.totalorder %s21, 0
      %p41 = por %p39, %p40
      %p42 = scmp.ne.s32.totalorder %s31, %s34
      %p43 = scmp.eq.s32.totalorder %s26, 1
      %p44 = por %p42, %p43
      %p45 = scmp.ne.s32.totalorder %s34, %s35
      %p46 = scmp.eq.s32.totalorder %s26, 0
      %p47 = por %p45, %p46
      %p48 = scmp.ne.s32.totalorder %s34, %s35
      %p49 = scmp.eq.s32.totalorder %s27, 1
      %p50 = por %p48, %p49
      %p52 = scmp.ne.s32.totalorder %s35, %s51
      %p53 = scmp.eq.s32.totalorder %s27, 0
      %p54 = por %p52, %p53
      %s56 = sadd.s32 %s55, 1
      %p59 = scmp.eq.s32.totalorder %s21, 1
      %p60 = scmp.ne.s32.totalorder %s55, %s57
      %p61 = scmp.eq.s32.totalorder %s21, 0
      %p62 = por %p60, %p61
      %p63 = scmp.ne.s32.totalorder %s55, %s57
      %p64 = scmp.eq.s32.totalorder %s26, 1
      %p65 = por %p63, %p64
      %p66 = scmp.ne.s32.totalorder %s57, %s58
      %p67 = scmp.eq.s32.totalorder %s26, 0
      %p68 = por %p66, %p67
      %p69 = scmp.ne.s32.totalorder %s57, %s58
      %p70 = scmp.eq.s32.totalorder %s27, 1
      %p71 = por %p69, %p70
      %p73 = scmp.ne.s32.totalorder %s58, %s72
      %p74 = scmp.eq.s32.totalorder %s27, 0
      %p75 = por %p73, %p74
      %s77 = sadd.s32 %s76, 1
      %p80 = scmp.eq.s32.totalorder %s21, 1
      %p81 = scmp.ne.s32.totalorder %s76, %s78
      %p82 = scmp.eq.s32.totalorder %s21, 0
      %p83 = por %p81, %p82
      %p84 = scmp.ne.s32.totalorder %s76, %s78
      %p85 = scmp.eq.s32.totalorder %s26, 1
      %p86 = por %p84, %p85
      %p87 = scmp.ne.s32.totalorder %s78, %s79
      %p88 = scmp.eq.s32.totalorder %s26, 0
      %p89 = por %p87, %p88
      %p90 = scmp.ne.s32.totalorder %s78, %s79
      %p91 = scmp.eq.s32.totalorder %s27, 1
      %p92 = por %p90, %p91
      %p94 = scmp.ne.s32.totalorder %s79, %s93
      %p95 = scmp.eq.s32.totalorder %s27, 0
      %p96 = por %p94, %p95
      %s98 = sadd.s32 %s97, 1
      %p101 = scmp.eq.s32.totalorder %s21, 1
      %p102 = scmp.ne.s32.totalorder %s97, %s99
      %p103 = scmp.eq.s32.totalorder %s21, 0
      %p104 = por %p102, %p103
      %p105 = scmp.ne.s32.totalorder %s97, %s99
      %p106 = scmp.eq.s32.totalorder %s26, 1
      %p107 = por %p105, %p106
      %p108 = scmp.ne.s32.totalorder %s99, %s100
      %p109 = scmp.eq.s32.totalorder %s26, 0
      %p110 = por %p108, %p109
      %p111 = scmp.ne.s32.totalorder %s99, %s100
      %p112 = scmp.eq.s32.totalorder %s27, 1
      %p113 = por %p111, %p112
      %p115 = scmp.ne.s32.totalorder %s100, %s114
      %p116 = scmp.eq.s32.totalorder %s27, 0
      %p117 = por %p115, %p116
      %s119 = sadd.s32 %s118, 1
      %p122 = scmp.eq.s32.totalorder %s21, 1
      %p123 = scmp.ne.s32.totalorder %s118, %s120
      %p124 = scmp.eq.s32.totalorder %s21, 0
      %p125 = por %p123, %p124
      %p126 = scmp.ne.s32.totalorder %s118, %s120
      %p127 = scmp.eq.s32.totalorder %s26, 1
      %p128 = por %p126, %p127
      %p129 = scmp.ne.s32.totalorder %s120, %s121
      %p130 = scmp.eq.s32.totalorder %s26, 0
      %p131 = por %p129, %p130
      %p132 = scmp.ne.s32.totalorder %s120, %s121
      %p133 = scmp.eq.s32.totalorder %s27, 1
      %p134 = por %p132, %p133
      %p136 = scmp.ne.s32.totalorder %s121, %s135
      %p137 = scmp.eq.s32.totalorder %s27, 0
      %p138 = por %p136, %p137
      %s140 = sadd.s32 %s139, 1
      %p143 = scmp.eq.s32.totalorder %s21, 1
      %p144 = scmp.ne.s32.totalorder %s139, %s141
      %p145 = scmp.eq.s32.totalorder %s21, 0
      %p146 = por %p144, %p145
      %p147 = scmp.ne.s32.totalorder %s139, %s141
      %p148 = scmp.eq.s32.totalorder %s26, 1
      %p149 = por %p147, %p148
      %p150 = scmp.ne.s32.totalorder %s141, %s142
      %p151 = scmp.eq.s32.totalorder %s26, 0
      %p152 = por %p150, %p151
      %p153 = scmp.ne.s32.totalorder %s141, %s142
      %p154 = scmp.eq.s32.totalorder %s27, 1
      %p155 = por %p153, %p154
      %p157 = scmp.ne.s32.totalorder %s142, %s156
      %p158 = scmp.eq.s32.totalorder %s27, 0
      %p159 = por %p157, %p158
      %s161 = sadd.s32 %s160, 1
      %p164 = scmp.eq.s32.totalorder %s21, 1
      %p165 = scmp.ne.s32.totalorder %s160, %s162
      %p166 = scmp.eq.s32.totalorder %s21, 0
      %p167 = por %p165, %p166
      %p168 = scmp.ne.s32.totalorder %s160, %s162
      %p169 = scmp.eq.s32.totalorder %s26, 1
      %p170 = por %p168, %p169
      %p171 = scmp.ne.s32.totalorder %s162, %s163
      %p172 = scmp.eq.s32.totalorder %s26, 0
      %p173 = por %p171, %p172
      %p174 = scmp.ne.s32.totalorder %s162, %s163
      %p175 = scmp.eq.s32.totalorder %s27, 1
      %p176 = por %p174, %p175
      %p178 = scmp.ne.s32.totalorder %s163, %s177
      %p179 = scmp.eq.s32.totalorder %s27, 0
      %p180 = por %p178, %p179
      %s182 = sadd.s32 %s181, 1
      %p185 = scmp.eq.s32.totalorder %s21, 1
      %p186 = scmp.ne.s32.totalorder %s181, %s183
      %p187 = scmp.eq.s32.totalorder %s21, 0
      %p188 = por %p186, %p187
      %p189 = scmp.ne.s32.totalorder %s181, %s183
      %p190 = scmp.eq.s32.totalorder %s26, 1
      %p191 = por %p189, %p190
      %p192 = scmp.ne.s32.totalorder %s183, %s184
      %p193 = scmp.eq.s32.totalorder %s26, 0
      %p194 = por %p192, %p193
      %p195 = scmp.ne.s32.totalorder %s183, %s184
      %p196 = scmp.eq.s32.totalorder %s27, 1
      %p197 = por %p195, %p196
      %p199 = scmp.ne.s32.totalorder %s184, %s198
      %p200 = scmp.eq.s32.totalorder %s27, 0
      %p201 = por %p199, %p200
      %s203 = sadd.s32 %s202, 1
      %p206 = scmp.eq.s32.totalorder %s21, 1
      %p207 = scmp.ne.s32.totalorder %s202, %s204
      %p208 = scmp.eq.s32.totalorder %s21, 0
      %p209 = por %p207, %p208
      %p210 = scmp.ne.s32.totalorder %s202, %s204
      %p211 = scmp.eq.s32.totalorder %s26, 1
      %p212 = por %p210, %p211
      %p213 = scmp.ne.s32.totalorder %s204, %s205
      %p214 = scmp.eq.s32.totalorder %s26, 0
      %p215 = por %p213, %p214
      %p216 = scmp.ne.s32.totalorder %s204, %s205
      %p217 = scmp.eq.s32.totalorder %s27, 1
      %p218 = por %p216, %p217
      %p220 = scmp.ne.s32.totalorder %s205, %s219
      %p221 = scmp.eq.s32.totalorder %s27, 0
      %p222 = por %p220, %p221
      %s224 = sadd.s32 %s223, 1
      %p227 = scmp.eq.s32.totalorder %s21, 1
      %p228 = scmp.ne.s32.totalorder %s223, %s225
      %p229 = scmp.eq.s32.totalorder %s21, 0
      %p230 = por %p228, %p229
      %p231 = scmp.ne.s32.totalorder %s223, %s225
      %p232 = scmp.eq.s32.totalorder %s26, 1
      %p233 = por %p231, %p232
      %p234 = scmp.ne.s32.totalorder %s225, %s226
      %p235 = scmp.eq.s32.totalorder %s26, 0
      %p236 = por %p234, %p235
      %p237 = scmp.ne.s32.totalorder %s225, %s226
      %p238 = scmp.eq.s32.totalorder %s27, 1
      %p239 = por %p237, %p238
      %p241 = scmp.ne.s32.totalorder %s226, %s240
      %p242 = scmp.eq.s32.totalorder %s27, 0
      %p243 = por %p241, %p242
      %s245 = sadd.s32 %s244, 1
      %p248 = scmp.eq.s32.totalorder %s21, 1
      %p249 = scmp.ne.s32.totalorder %s244, %s246
      %p250 = scmp.eq.s32.totalorder %s21, 0
      %p251 = por %p249, %p250
      %p252 = scmp.ne.s32.totalorder %s244, %s246
      %p253 = scmp.eq.s32.totalorder %s26, 1
      %p254 = por %p252, %p253
      %p255 = scmp.ne.s32.totalorder %s246, %s247
      %p256 = scmp.eq.s32.totalorder %s26, 0
      %p257 = por %p255, %p256
      %p258 = scmp.ne.s32.totalorder %s246, %s247
      %p259 = scmp.eq.s32.totalorder %s27, 1
      %p260 = por %p258, %p259
      %p262 = scmp.ne.s32.totalorder %s247, %s261
      %p263 = scmp.eq.s32.totalorder %s27, 0
      %p264 = por %p262, %p263
      %s265 = ssub.s32 %s21, %s28
      %p266 = scmp.eq.s32.totalorder %s265, 0
      %s268 = sadd.s32 %s267, 1
      %s269 = scalar_select %p266, %s267, %s268
      %p272 = pneg %p266
      %p273 = scmp.eq.s32.totalorder %s21, 1
      %p274 = por %p272, %p273
      %p275 = scmp.ne.s32.totalorder %s267, %s270
      %p276 = scmp.eq.s32.totalorder %s21, 0
      %p277 = por %p275, %p276
      %p278 = scmp.ne.s32.totalorder %s267, %s270
      %p279 = scmp.eq.s32.totalorder %s26, 1
      %p280 = por %p278, %p279
      %p281 = scmp.ne.s32.totalorder %s270, %s271
      %p282 = scmp.eq.s32.totalorder %s26, 0
      %p283 = por %p281, %p282
      %p284 = scmp.ne.s32.totalorder %s270, %s271
      %p285 = scmp.eq.s32.totalorder %s27, 1
      %p286 = por %p284, %p285
      %p288 = scmp.ne.s32.totalorder %s271, %s287
      %p289 = scmp.eq.s32.totalorder %s27, 0
      %p290 = por %p288, %p289
      %p291 = scmp.le.s32.totalorder 1, %s21
      %p292 = scmp.lt.s32.totalorder %s21, 3
      %p293 = pnand %p291, %p292
      %p294 = pneg %p293
      // Predicated region
      $region9: #{tpu_custom_call.1} parent=5 // pred_check
        _
      $region10: #{tpu_custom_call.1} parent=5 // pred_check_branch
        %296 = sbr.rel (%p293) target = $region12
      $region11: #{tpu_custom_call.1} parent=5 // pred_region
        %s297 = ssub.s32 %s21, 1
        // Predicated region
        $region13: #{tpu_custom_call.1} parent=11 // pred_check
          %p298 = pneg %p68
        $region14: #{tpu_custom_call.1} parent=11 // pred_check_branch
          %300 = sbr.rel (%p298) target = $region16
        $region15: #{tpu_custom_call.1} parent=11 // pred_region
          _
        $region16: #{tpu_custom_call.1} parent=11 // pred_fallthru
          _
        // Predicated region
        $region17: #{tpu_custom_call.1} parent=11 // pred_check
          %p301 = pneg %p89
        $region18: #{tpu_custom_call.1} parent=11 // pred_check_branch
          %303 = sbr.rel (%p301) target = $region20
        $region19: #{tpu_custom_call.1} parent=11 // pred_region
          _
        $region20: #{tpu_custom_call.1} parent=11 // pred_fallthru
          _
        // Predicated region
        $region21: #{tpu_custom_call.1} parent=11 // pred_check
          %p304 = pneg %p110
        $region22: #{tpu_custom_call.1} parent=11 // pred_check_branch
          %306 = sbr.rel (%p304) target = $region24
        $region23: #{tpu_custom_call.1} parent=11 // pred_region
          _
        $region24: #{tpu_custom_call.1} parent=11 // pred_fallthru
          _
        // Predicated region
        $region25: #{tpu_custom_call.1} parent=11 // pred_check
          %p307 = pneg %p131
        $region26: #{tpu_custom_call.1} parent=11 // pred_check_branch
          %309 = sbr.rel (%p307) target = $region28
        $region27: #{tpu_custom_call.1} parent=11 // pred_region
          _
        $region28: #{tpu_custom_call.1} parent=11 // pred_fallthru
          _
        // Predicated region
        $region29: #{tpu_custom_call.1} parent=11 // pred_check
          %p310 = pneg %p152
        $region30: #{tpu_custom_call.1} parent=11 // pred_check_branch
          %312 = sbr.rel (%p310) target = $region32
        $region31: #{tpu_custom_call.1} parent=11 // pred_region
          _
        $region32: #{tpu_custom_call.1} parent=11 // pred_fallthru
          _
        // Predicated region
        $region33: #{tpu_custom_call.1} parent=11 // pred_check
          %p313 = pneg %p173
        $region34: #{tpu_custom_call.1} parent=11 // pred_check_branch
          %315 = sbr.rel (%p313) target = $region36
        $region35: #{tpu_custom_call.1} parent=11 // pred_region
          _
        $region36: #{tpu_custom_call.1} parent=11 // pred_fallthru
          _
        // Predicated region
        $region37: #{tpu_custom_call.1} parent=11 // pred_check
          %p316 = pneg %p194
        $region38: #{tpu_custom_call.1} parent=11 // pred_check_branch
          %318 = sbr.rel (%p316) target = $region40
        $region39: #{tpu_custom_call.1} parent=11 // pred_region
          _
        $region40: #{tpu_custom_call.1} parent=11 // pred_fallthru
          _
        // Predicated region
        $region41: #{tpu_custom_call.1} parent=11 // pred_check
          %p319 = pneg %p215
        $region42: #{tpu_custom_call.1} parent=11 // pred_check_branch
          %321 = sbr.rel (%p319) target = $region44
        $region43: #{tpu_custom_call.1} parent=11 // pred_region
          _
        $region44: #{tpu_custom_call.1} parent=11 // pred_fallthru
          _
        // Predicated region
        $region45: #{tpu_custom_call.1} parent=11 // pred_check
          %p322 = pneg %p236
        $region46: #{tpu_custom_call.1} parent=11 // pred_check_branch
          %324 = sbr.rel (%p322) target = $region48
        $region47: #{tpu_custom_call.1} parent=11 // pred_region
          _
        $region48: #{tpu_custom_call.1} parent=11 // pred_fallthru
          _
        // Predicated region
        $region49: #{tpu_custom_call.1} parent=11 // pred_check
          %p325 = pneg %p257
        $region50: #{tpu_custom_call.1} parent=11 // pred_check_branch
          %327 = sbr.rel (%p325) target = $region52
        $region51: #{tpu_custom_call.1} parent=11 // pred_region
          %s329 = ssub.s32 16, 16
          %330 = vsyncadd [#allocation6], %s329
          %s332 = sshll.u32 %s10, 4
          %s333 = int_to_ptr.vmem [resolvable:$true] %s332
          %335 = dma.vmem_to_smem %s333, 16, [#allocation4], [#allocation6]
        $region52: #{tpu_custom_call.1} parent=11 // pred_fallthru
          _
      $region12: #{tpu_custom_call.1} parent=5 // pred_fallthru
        _
      %p336 = scmp.lt.s32.totalorder %s21, 2
      // Predicated region
      $region53: #{tpu_custom_call.1} parent=5 // pred_check
        %p337 = pneg %p336
      $region54: #{tpu_custom_call.1} parent=5 // pred_check_branch
        %339 = sbr.rel (%p337) target = $region56
      $region55: #{tpu_custom_call.1} parent=5 // pred_region
        // Predicated region
        $region57: #{tpu_custom_call.1} parent=55 // pred_check
          %p340 = pneg %p41
        $region58: #{tpu_custom_call.1} parent=55 // pred_check_branch
          %342 = sbr.rel (%p340) target = $region60
        $region59: #{tpu_custom_call.1} parent=55 // pred_region
          %p343 = scmp.lt.s32.totalorder %s21, 1
          %s344 = scalar_select %p343, %s21, 1
          %s345 = smul.addr %s344, 2
          %s346 = smul.addr %s345, 4
          %s347 = scalar_lea.vmem %s0, %s346
        $region60: #{tpu_custom_call.1} parent=55 // pred_fallthru
          _
      $region56: #{tpu_custom_call.1} parent=5 // pred_fallthru
        _
      %p348 = scmp.le.s32.totalorder 1, %s21
      %p349 = scmp.lt.s32.totalorder %s21, 3
      %p350 = pnand %p348, %p349
      %p351 = pneg %p350
      // Predicated region
      $region61: #{tpu_custom_call.1} parent=5 // pred_check
        _
      $region62: #{tpu_custom_call.1} parent=5 // pred_check_branch
        %353 = sbr.rel (%p350) target = $region64
      $region63: #{tpu_custom_call.1} parent=5 // pred_region
        %s354 = ssub.s32 %s21, 1
        // Predicated region
        $region65: #{tpu_custom_call.1} parent=63 // pred_check
          %p355 = pneg %p257
        $region66: #{tpu_custom_call.1} parent=63 // pred_check_branch
          %357 = sbr.rel (%p355) target = $region68
        $region67: #{tpu_custom_call.1} parent=63 // pred_region
          %358 = dma.done [#allocation6], 16
        $region68: #{tpu_custom_call.1} parent=63 // pred_fallthru
          _
        %359 = sfence
        %p360 = scmp.lt.s32.totalorder %s26, 1
        %s361 = scalar_select %p360, %s26, 1
        %s362 = smul.addr %s361, 2
        %s363 = smul.addr %s362, 4
        %s364 = scalar_lea.vmem %s0, %s363
        %p365 = pneg %p47
        %p366 = pneg %p44
        %p367 = pneg %p68
        %p368 = pneg %p65
        %p369 = pneg %p89
        %p370 = pneg %p86
        %p371 = pneg %p110
        %p372 = pneg %p107
        %p373 = pneg %p131
        %p374 = pneg %p128
        %p375 = pneg %p152
        %p376 = pneg %p149
        %p377 = pneg %p173
        %p378 = pneg %p170
        %p379 = pneg %p194
        %p380 = pneg %p191
        %p381 = pneg %p215
        %p382 = pneg %p212
        %p383 = pneg %p236
        %p384 = pneg %p233
        %p385 = pneg %p257
        %p386 = pneg %p254
        %p387 = pneg %p283
        %p388 = pneg %p280
        %s389 = sand.u32 %s270, 1
        %s390 = scalar_lea.sflag [#allocation5], %s389
        %s391 = sand.u32 %s270, 1
        %s392 = smul.addr %s391, 16
        %s393 = scalar_lea.vmem [#allocation7], %s392
        %p394 = scmp.lt.s32.totalorder %s26, 1
        %s395 = scalar_select %p394, %s26, 1
        %s396 = smul.addr %s395, 2
        %s397 = smul.addr %s396, 4
        %s398 = scalar_lea.vmem %s0, %s397
        %v399 = vld [vmem:[%s1] sm:$0x3]
        %v400 = vld [vmem:[%s2] sm:$0x3]
        %vm401 = vcmp.ge.s32.totalorder %v399, 1
        %vm402 = vcmp.lt.s32.totalorder %v399, 17
        %vm403 = vmand %vm401, %vm402
        %vm404 = vcmp.ge.s32.totalorder %v400, 1
        %vm405 = vmand %vm403, %vm404
        %vm406 = vcmp.lt.s32.totalorder %v400, 17
        %vm407 = vmand %vm405, %vm406
        %vm408 = vcmp.ge.s32.totalorder %v400, 0
        %vm409 = vmand %vm403, %vm408
        %vm410 = vcmp.lt.s32.totalorder %v400, 16
        %vm411 = vmand %vm409, %vm410
        %vm412 = vcmp.ge.s32.totalorder %v400, 4294967295
        %vm413 = vmand %vm403, %vm412
        %vm414 = vcmp.lt.s32.totalorder %v400, 15
        %vm415 = vmand %vm413, %vm414
        %vm416 = vcmp.ge.s32.totalorder %v399, 0
        %vm417 = vcmp.lt.s32.totalorder %v399, 16
        %vm418 = vmand %vm416, %vm417
        %vm419 = vmand %vm418, %vm404
        %vm420 = vmand %vm419, %vm406
        %vm421 = vmand %vm418, %vm412
        %vm422 = vmand %vm421, %vm414
        %vm423 = vcmp.ge.s32.totalorder %v399, 4294967295
        %vm424 = vcmp.lt.s32.totalorder %v399, 15
        %vm425 = vmand %vm423, %vm424
        %vm426 = vmand %vm425, %vm404
        %vm427 = vmand %vm426, %vm406
        %vm428 = vmand %vm425, %vm408
        %vm429 = vmand %vm428, %vm410
        %vm430 = vmand %vm425, %vm412
        %vm431 = vmand %vm430, %vm414
        %vm432 = vcmp.ge.s32.totalorder %v399, 2
        %vm433 = vcmp.lt.s32.totalorder %v399, 18
        %vm434 = vmand %vm432, %vm433
        %vm435 = vcmp.ge.s32.totalorder %v400, 2
        %vm436 = vmand %vm434, %vm435
        %vm437 = vcmp.lt.s32.totalorder %v400, 18
        %vm438 = vmand %vm436, %vm437
        %vm439 = vmand %vm434, %vm404
        %vm440 = vmand %vm439, %vm406
        %vm441 = vmand %vm434, %vm408
        %vm442 = vmand %vm441, %vm410
        %vm443 = vmand %vm434, %vm412
        %vm444 = vmand %vm443, %vm414
        %vm445 = vcmp.ge.s32.totalorder %v400, 4294967294
        %vm446 = vmand %vm434, %vm445
        %vm447 = vcmp.lt.s32.totalorder %v400, 14
        %vm448 = vmand %vm446, %vm447
        %vm449 = vmand %vm403, %vm435
        %vm450 = vmand %vm449, %vm437
        %vm451 = vmand %vm403, %vm445
        %vm452 = vmand %vm451, %vm447
        %vm453 = vmand %vm418, %vm435
        %vm454 = vmand %vm453, %vm437
        %vm455 = vmand %vm418, %vm445
        %vm456 = vmand %vm455, %vm447
        %vm457 = vmand %vm425, %vm435
        %vm458 = vmand %vm457, %vm437
        %vm459 = vmand %vm425, %vm445
        %vm460 = vmand %vm459, %vm447
        %vm461 = vcmp.ge.s32.totalorder %v399, 4294967294
        %vm462 = vcmp.lt.s32.totalorder %v399, 14
        %vm463 = vmand %vm461, %vm462
        %vm464 = vmand %vm463, %vm435
        %vm465 = vmand %vm464, %vm437
        %vm466 = vmand %vm463, %vm404
        %vm467 = vmand %vm466, %vm406
        %vm468 = vmand %vm463, %vm408
        %vm469 = vmand %vm468, %vm410
        %vm470 = vmand %vm463, %vm412
        %vm471 = vmand %vm470, %vm414
        %vm472 = vmand %vm463, %vm445
        %vm473 = vmand %vm472, %vm447
        %v474 = vld [vmem:[%s398] sm:$0xff]
        %v475 = vld [vmem:[%s3] sm:$0xf]
        %477 = vset.pattern.permute.xlu0 0
        %478 = vperm.xlu0 %477, %v475
        %v479 = vpop.permute.xlu0 %478
        %v481 = vunpack.c.l.s4 839922192
        %v482 = vunpack.c.0.s8 %v481
        %v483 = vlaneseq
        %v484 = vshrl.u32 %v483, 7
        %v485 = vsub.s32 %v482, %v484
        %v486 = vrot.slane %v479, %v485
        %v488 = vmul.f32 %v474, %v486
        %v489 = vld [vmem:[%s4] sm:$0xf]
        %491 = vset.pattern.permute.xlu0 0
        %492 = vperm.xlu0 %491, %v489
        %v493 = vpop.permute.xlu0 %492
        %v495 = vunpack.c.l.s4 839922192
        %v496 = vunpack.c.0.s8 %v495
        %v497 = vlaneseq
        %v498 = vshrl.u32 %v497, 7
        %v499 = vsub.s32 %v496, %v498
        %v500 = vrot.slane %v493, %v499
        %v502 = vadd.f32 %v488, %v500
        %v503 = vmax.f32 %v502, 0.0
        %v504 = vld [vmem:[%s6] sm:$0xff]
        %v506 = vcombine.high %v503, %v503
        %vm507 = vcmask 31744
        %v509 = vsel %vm507, %v504, 0
        %vm511 = vcmask 1043456
        %v512 = vsel %vm511, %v503, 0
        %v514 = vsel %vm511, %v506, 0
        %v516 = vand.u32 %v514, 4294901760
        %517 = vmatprep.subr.mxu0 %v516
        %v518 = vand.u32 %v512, 4294901760
        %519 = vmatpush1.msra.mxu0 %v518
        %520 = vmatprep.subr.mxu0 0.0
        %521 = vmatpush1.msra.mxu0 0.0
        %522 = vmatprep.subr.mxu0 0.0
        %523 = vmatpush1.msra.mxu0 0.0
        %524 = vmatprep.subr.mxu0 0.0
        %525 = vmatpush1.msra.mxu0 0.0
        %526 = vmatprep.subr.mxu0 0.0
        %527 = vmatpush1.msra.mxu0 0.0
        %528 = vmatprep.subr.mxu0 0.0
        %529 = vmatpush1.msra.mxu0 0.0
        %530 = vmatprep.subr.mxu0 0.0
        %531 = vmatpush1.msra.mxu0 0.0
        %532 = vmatprep.subr.mxu0 0.0
        %533 = vmatpush1.msra.mxu0 0.0
        %534 = vmatprep.subr.mxu0 0.0
        %535 = vmatpush1.msra.mxu0 0.0
        %536 = vmatprep.subr.mxu0 0.0
        %537 = vmatpush1.msra.mxu0 0.0
        %538 = vmatprep.subr.mxu0 0.0
        %539 = vmatpush1.msra.mxu0 0.0
        %540 = vmatprep.subr.mxu0 0.0
        %541 = vmatpush1.msra.mxu0 0.0
        %542 = vmatprep.subr.mxu0 0.0
        %543 = vmatpush1.msra.mxu0 0.0
        %544 = vmatprep.subr.mxu0 0.0
        %545 = vmatpush1.msra.mxu0 0.0
        %546 = vmatprep.subr.mxu0 0.0
        %547 = vmatpush1.msra.mxu0 0.0
        %548 = vmatprep.subr.mxu0 0.0
        %549 = vmatpush1.msra.mxu0 0.0
        %550 = vmatprep.subr.mxu0 0.0
        %551 = vmatpush1.msra.mxu0 0.0
        %552 = vmatprep.subr.mxu0 0.0
        %553 = vmatpush1.msra.mxu0 0.0
        %554 = vmatprep.subr.mxu0 0.0
        %555 = vmatpush1.msra.mxu0 0.0
        %556 = vmatprep.subr.mxu0 0.0
        %557 = vmatpush1.msra.mxu0 0.0
        %558 = vmatprep.subr.mxu0 0.0
        %559 = vmatpush1.msra.mxu0 0.0
        %560 = vmatprep.subr.mxu0 0.0
        %561 = vmatpush1.msra.mxu0 0.0
        %562 = vmatprep.subr.mxu0 0.0
        %563 = vmatpush1.msra.mxu0 0.0
        %564 = vmatprep.subr.mxu0 0.0
        %565 = vmatpush1.msra.mxu0 0.0
        %566 = vmatprep.subr.mxu0 0.0
        %567 = vmatpush1.msra.mxu0 0.0
        %568 = vmatprep.subr.mxu0 0.0
        %569 = vmatpush1.msra.mxu0 0.0
        %570 = vmatprep.subr.mxu0 0.0
        %571 = vmatpush1.msra.mxu0 0.0
        %572 = vmatprep.subr.mxu0 0.0
        %573 = vmatpush1.msra.mxu0 0.0
        %574 = vmatprep.subr.mxu0 0.0
        %575 = vmatpush1.msra.mxu0 0.0
        %576 = vmatprep.subr.mxu0 0.0
        %577 = vmatpush1.msra.mxu0 0.0
        %578 = vmatprep.subr.mxu0 0.0
        %579 = vmatpush1.msra.mxu0 0.0
        %580 = vmatprep.subr.mxu0 0.0
        %581 = vmatpush1.msra.mxu0 0.0
        %582 = vmatprep.mubr.f32.mxu0 0.0
        %v583 = vand.u32 %v509, 4294901760
        %v584 = vsub.f32 %v509, %v583
        %v585 = vand.u32 %v584, 4294901760
        %v586 = vsub.f32 %v584, %v585
        %v587 = vand.u32 %v586, 4294901760
        %588 = vmatmul.mubr.f32.gmra.mrb[0].mxu0 %v587
        %v589 = vpop.f32.mrb[0].mxu0
        %v590 = vadd.f32 0.0, %v589
        %v591 = vpop.f32.mrb[0].mxu0
        %v592 = vadd.f32 0.0, %v591
        %593 = vdwg.mxu0
        %v594 = vand.u32 %v514, 4294901760
        %v595 = vsub.f32 %v514, %v594
        %v596 = vand.u32 %v595, 4294901760
        %v597 = vsub.f32 %v595, %v596
        %v598 = vand.u32 %v597, 4294901760
        %599 = vmatprep.subr.mxu0 %v598
        %v600 = vand.u32 %v512, 4294901760
        %v601 = vsub.f32 %v512, %v600
        %v602 = vand.u32 %v601, 4294901760
        %v603 = vsub.f32 %v601, %v602
        %v604 = vand.u32 %v603, 4294901760
        %605 = vmatpush1.msra.mxu0 %v604
        %606 = vmatprep.subr.mxu0 0.0
        %607 = vmatpush1.msra.mxu0 0.0
        %608 = vmatprep.subr.mxu0 0.0
        %609 = vmatpush1.msra.mxu0 0.0
        %610 = vmatprep.subr.mxu0 0.0
        %611 = vmatpush1.msra.mxu0 0.0
        %612 = vmatprep.subr.mxu0 0.0
        %613 = vmatpush1.msra.mxu0 0.0
        %614 = vmatprep.subr.mxu0 0.0
        %615 = vmatpush1.msra.mxu0 0.0
        %616 = vmatprep.subr.mxu0 0.0
        %617 = vmatpush1.msra.mxu0 0.0
        %618 = vmatprep.subr.mxu0 0.0
        %619 = vmatpush1.msra.mxu0 0.0
        %620 = vmatprep.subr.mxu0 0.0
        %621 = vmatpush1.msra.mxu0 0.0
        %622 = vmatprep.subr.mxu0 0.0
        %623 = vmatpush1.msra.mxu0 0.0
        %624 = vmatprep.subr.mxu0 0.0
        %625 = vmatpush1.msra.mxu0 0.0
        %626 = vmatprep.subr.mxu0 0.0
        %627 = vmatpush1.msra.mxu0 0.0
        %628 = vmatprep.subr.mxu0 0.0
        %629 = vmatpush1.msra.mxu0 0.0
        %630 = vmatprep.subr.mxu0 0.0
        %631 = vmatpush1.msra.mxu0 0.0
        %632 = vmatprep.subr.mxu0 0.0
        %633 = vmatpush1.msra.mxu0 0.0
        %634 = vmatprep.subr.mxu0 0.0
        %635 = vmatpush1.msra.mxu0 0.0
        %636 = vmatprep.subr.mxu0 0.0
        %637 = vmatpush1.msra.mxu0 0.0
        %638 = vmatprep.subr.mxu0 0.0
        %639 = vmatpush1.msra.mxu0 0.0
        %640 = vmatprep.subr.mxu0 0.0
        %641 = vmatpush1.msra.mxu0 0.0
        %642 = vmatprep.subr.mxu0 0.0
        %643 = vmatpush1.msra.mxu0 0.0
        %644 = vmatprep.subr.mxu0 0.0
        %645 = vmatpush1.msra.mxu0 0.0
        %646 = vmatprep.subr.mxu0 0.0
        %647 = vmatpush1.msra.mxu0 0.0
        %648 = vmatprep.subr.mxu0 0.0
        %649 = vmatpush1.msra.mxu0 0.0
        %650 = vmatprep.subr.mxu0 0.0
        %651 = vmatpush1.msra.mxu0 0.0
        %652 = vmatprep.subr.mxu0 0.0
        %653 = vmatpush1.msra.mxu0 0.0
        %654 = vmatprep.subr.mxu0 0.0
        %655 = vmatpush1.msra.mxu0 0.0
        %656 = vmatprep.subr.mxu0 0.0
        %657 = vmatpush1.msra.mxu0 0.0
        %658 = vmatprep.subr.mxu0 0.0
        %659 = vmatpush1.msra.mxu0 0.0
        %660 = vmatprep.subr.mxu0 0.0
        %661 = vmatpush1.msra.mxu0 0.0
        %662 = vmatprep.subr.mxu0 0.0
        %663 = vmatpush1.msra.mxu0 0.0
        %664 = vmatprep.subr.mxu0 0.0
        %665 = vmatpush1.msra.mxu0 0.0
        %666 = vmatprep.subr.mxu0 0.0
        %667 = vmatpush1.msra.mxu0 0.0
        %668 = vmatprep.mubr.f32.mxu0 0.0
        %v669 = vand.u32 %v509, 4294901760
        %670 = vmatmul.mubr.f32.gmra.mrb[0].mxu0 %v669
        %v671 = vpop.f32.mrb[0].mxu0
        %v672 = vadd.f32 %v590, %v671
        %v673 = vpop.f32.mrb[0].mxu0
        %v674 = vadd.f32 %v592, %v673
        %675 = vdwg.mxu0
        %v676 = vand.u32 %v514, 4294901760
        %v677 = vsub.f32 %v514, %v676
        %678 = vmatprep.subr.mxu0 %v677
        %v679 = vand.u32 %v512, 4294901760
        %v680 = vsub.f32 %v512, %v679
        %681 = vmatpush1.msra.mxu0 %v680
        %682 = vmatprep.subr.mxu0 0.0
        %683 = vmatpush1.msra.mxu0 0.0
        %684 = vmatprep.subr.mxu0 0.0
        %685 = vmatpush1.msra.mxu0 0.0
        %686 = vmatprep.subr.mxu0 0.0
        %687 = vmatpush1.msra.mxu0 0.0
        %688 = vmatprep.subr.mxu0 0.0
        %689 = vmatpush1.msra.mxu0 0.0
        %690 = vmatprep.subr.mxu0 0.0
        %691 = vmatpush1.msra.mxu0 0.0
        %692 = vmatprep.subr.mxu0 0.0
        %693 = vmatpush1.msra.mxu0 0.0
        %694 = vmatprep.subr.mxu0 0.0
        %695 = vmatpush1.msra.mxu0 0.0
        %696 = vmatprep.subr.mxu0 0.0
        %697 = vmatpush1.msra.mxu0 0.0
        %698 = vmatprep.subr.mxu0 0.0
        %699 = vmatpush1.msra.mxu0 0.0
        %700 = vmatprep.subr.mxu0 0.0
        %701 = vmatpush1.msra.mxu0 0.0
        %702 = vmatprep.subr.mxu0 0.0
        %703 = vmatpush1.msra.mxu0 0.0
        %704 = vmatprep.subr.mxu0 0.0
        %705 = vmatpush1.msra.mxu0 0.0
        %706 = vmatprep.subr.mxu0 0.0
        %707 = vmatpush1.msra.mxu0 0.0
        %708 = vmatprep.subr.mxu0 0.0
        %709 = vmatpush1.msra.mxu0 0.0
        %710 = vmatprep.subr.mxu0 0.0
        %711 = vmatpush1.msra.mxu0 0.0
        %712 = vmatprep.subr.mxu0 0.0
        %713 = vmatpush1.msra.mxu0 0.0
        %714 = vmatprep.subr.mxu0 0.0
        %715 = vmatpush1.msra.mxu0 0.0
        %716 = vmatprep.subr.mxu0 0.0
        %717 = vmatpush1.msra.mxu0 0.0
        %718 = vmatprep.subr.mxu0 0.0
        %719 = vmatpush1.msra.mxu0 0.0
        %720 = vmatprep.subr.mxu0 0.0
        %721 = vmatpush1.msra.mxu0 0.0
        %722 = vmatprep.subr.mxu0 0.0
        %723 = vmatpush1.msra.mxu0 0.0
        %724 = vmatprep.subr.mxu0 0.0
        %725 = vmatpush1.msra.mxu0 0.0
        %726 = vmatprep.subr.mxu0 0.0
        %727 = vmatpush1.msra.mxu0 0.0
        %728 = vmatprep.subr.mxu0 0.0
        %729 = vmatpush1.msra.mxu0 0.0
        %730 = vmatprep.subr.mxu0 0.0
        %731 = vmatpush1.msra.mxu0 0.0
        %732 = vmatprep.subr.mxu0 0.0
        %733 = vmatpush1.msra.mxu0 0.0
        %734 = vmatprep.subr.mxu0 0.0
        %735 = vmatpush1.msra.mxu0 0.0
        %736 = vmatprep.subr.mxu0 0.0
        %737 = vmatpush1.msra.mxu0 0.0
        %738 = vmatprep.subr.mxu0 0.0
        %739 = vmatpush1.msra.mxu0 0.0
        %740 = vmatprep.subr.mxu0 0.0
        %741 = vmatpush1.msra.mxu0 0.0
        %742 = vmatprep.subr.mxu0 0.0
        %743 = vmatpush1.msra.mxu0 0.0
        %744 = vmatprep.mubr.f32.mxu0 0.0
        %v745 = vand.u32 %v509, 4294901760
        %v746 = vsub.f32 %v509, %v745
        %747 = vmatmul.mubr.f32.gmra.mrb[0].mxu0 %v746
        %v748 = vpop.f32.mrb[0].mxu0
        %v749 = vadd.f32 %v672, %v748
        %v750 = vpop.f32.mrb[0].mxu0
        %v751 = vadd.f32 %v674, %v750
        %752 = vdwg.mxu0
        %v753 = vand.u32 %v514, 4294901760
        %754 = vmatprep.subr.mxu0 %v753
        %v755 = vand.u32 %v512, 4294901760
        %756 = vmatpush1.msra.mxu0 %v755
        %757 = vmatprep.subr.mxu0 0.0
        %758 = vmatpush1.msra.mxu0 0.0
        %759 = vmatprep.subr.mxu0 0.0
        %760 = vmatpush1.msra.mxu0 0.0
        %761 = vmatprep.subr.mxu0 0.0
        %762 = vmatpush1.msra.mxu0 0.0
        %763 = vmatprep.subr.mxu0 0.0
        %764 = vmatpush1.msra.mxu0 0.0
        %765 = vmatprep.subr.mxu0 0.0
        %766 = vmatpush1.msra.mxu0 0.0
        %767 = vmatprep.subr.mxu0 0.0
        %768 = vmatpush1.msra.mxu0 0.0
        %769 = vmatprep.subr.mxu0 0.0
        %770 = vmatpush1.msra.mxu0 0.0
        %771 = vmatprep.subr.mxu0 0.0
        %772 = vmatpush1.msra.mxu0 0.0
        %773 = vmatprep.subr.mxu0 0.0
        %774 = vmatpush1.msra.mxu0 0.0
        %775 = vmatprep.subr.mxu0 0.0
        %776 = vmatpush1.msra.mxu0 0.0
        %777 = vmatprep.subr.mxu0 0.0
        %778 = vmatpush1.msra.mxu0 0.0
        %779 = vmatprep.subr.mxu0 0.0
        %780 = vmatpush1.msra.mxu0 0.0
        %781 = vmatprep.subr.mxu0 0.0
        %782 = vmatpush1.msra.mxu0 0.0
        %783 = vmatprep.subr.mxu0 0.0
        %784 = vmatpush1.msra.mxu0 0.0
        %785 = vmatprep.subr.mxu0 0.0
        %786 = vmatpush1.msra.mxu0 0.0
        %787 = vmatprep.subr.mxu0 0.0
        %788 = vmatpush1.msra.mxu0 0.0
        %789 = vmatprep.subr.mxu0 0.0
        %790 = vmatpush1.msra.mxu0 0.0
        %791 = vmatprep.subr.mxu0 0.0
        %792 = vmatpush1.msra.mxu0 0.0
        %793 = vmatprep.subr.mxu0 0.0
        %794 = vmatpush1.msra.mxu0 0.0
        %795 = vmatprep.subr.mxu0 0.0
        %796 = vmatpush1.msra.mxu0 0.0
        %797 = vmatprep.subr.mxu0 0.0
        %798 = vmatpush1.msra.mxu0 0.0
        %799 = vmatprep.subr.mxu0 0.0
        %800 = vmatpush1.msra.mxu0 0.0
        %801 = vmatprep.subr.mxu0 0.0
        %802 = vmatpush1.msra.mxu0 0.0
        %803 = vmatprep.subr.mxu0 0.0
        %804 = vmatpush1.msra.mxu0 0.0
        %805 = vmatprep.subr.mxu0 0.0
        %806 = vmatpush1.msra.mxu0 0.0
        %807 = vmatprep.subr.mxu0 0.0
        %808 = vmatpush1.msra.mxu0 0.0
        %809 = vmatprep.subr.mxu0 0.0
        %810 = vmatpush1.msra.mxu0 0.0
        %811 = vmatprep.subr.mxu0 0.0
        %812 = vmatpush1.msra.mxu0 0.0
        %813 = vmatprep.subr.mxu0 0.0
        %814 = vmatpush1.msra.mxu0 0.0
        %815 = vmatprep.subr.mxu0 0.0
        %816 = vmatpush1.msra.mxu0 0.0
        %817 = vmatprep.subr.mxu0 0.0
        %818 = vmatpush1.msra.mxu0 0.0
        %819 = vmatprep.mubr.f32.mxu0 0.0
        %v820 = vand.u32 %v509, 4294901760
        %v821 = vsub.f32 %v509, %v820
        %v822 = vand.u32 %v821, 4294901760
        %823 = vmatmul.mubr.f32.gmra.mrb[0].mxu0 %v822
        %v824 = vpop.f32.mrb[0].mxu0
        %v825 = vadd.f32 %v749, %v824
        %v826 = vpop.f32.mrb[0].mxu0
        %v827 = vadd.f32 %v751, %v826
        %828 = vdwg.mxu0
        %v829 = vand.u32 %v514, 4294901760
        %v830 = vsub.f32 %v514, %v829
        %v831 = vand.u32 %v830, 4294901760
        %832 = vmatprep.subr.mxu0 %v831
        %v833 = vand.u32 %v512, 4294901760
        %v834 = vsub.f32 %v512, %v833
        %v835 = vand.u32 %v834, 4294901760
        %836 = vmatpush1.msra.mxu0 %v835
        %837 = vmatprep.subr.mxu0 0.0
        %838 = vmatpush1.msra.mxu0 0.0
        %839 = vmatprep.subr.mxu0 0.0
        %840 = vmatpush1.msra.mxu0 0.0
        %841 = vmatprep.subr.mxu0 0.0
        %842 = vmatpush1.msra.mxu0 0.0
        %843 = vmatprep.subr.mxu0 0.0
        %844 = vmatpush1.msra.mxu0 0.0
        %845 = vmatprep.subr.mxu0 0.0
        %846 = vmatpush1.msra.mxu0 0.0
        %847 = vmatprep.subr.mxu0 0.0
        %848 = vmatpush1.msra.mxu0 0.0
        %849 = vmatprep.subr.mxu0 0.0
        %850 = vmatpush1.msra.mxu0 0.0
        %851 = vmatprep.subr.mxu0 0.0
        %852 = vmatpush1.msra.mxu0 0.0
        %853 = vmatprep.subr.mxu0 0.0
        %854 = vmatpush1.msra.mxu0 0.0
        %855 = vmatprep.subr.mxu0 0.0
        %856 = vmatpush1.msra.mxu0 0.0
        %857 = vmatprep.subr.mxu0 0.0
        %858 = vmatpush1.msra.mxu0 0.0
        %859 = vmatprep.subr.mxu0 0.0
        %860 = vmatpush1.msra.mxu0 0.0
        %861 = vmatprep.subr.mxu0 0.0
        %862 = vmatpush1.msra.mxu0 0.0
        %863 = vmatprep.subr.mxu0 0.0
        %864 = vmatpush1.msra.mxu0 0.0
        %865 = vmatprep.subr.mxu0 0.0
        %866 = vmatpush1.msra.mxu0 0.0
        %867 = vmatprep.subr.mxu0 0.0
        %868 = vmatpush1.msra.mxu0 0.0
        %869 = vmatprep.subr.mxu0 0.0
        %870 = vmatpush1.msra.mxu0 0.0
        %871 = vmatprep.subr.mxu0 0.0
        %872 = vmatpush1.msra.mxu0 0.0
        %873 = vmatprep.subr.mxu0 0.0
        %874 = vmatpush1.msra.mxu0 0.0
        %875 = vmatprep.subr.mxu0 0.0
        %876 = vmatpush1.msra.mxu0 0.0
        %877 = vmatprep.subr.mxu0 0.0
        %878 = vmatpush1.msra.mxu0 0.0
        %879 = vmatprep.subr.mxu0 0.0
        %880 = vmatpush1.msra.mxu0 0.0
        %881 = vmatprep.subr.mxu0 0.0
        %882 = vmatpush1.msra.mxu0 0.0
        %883 = vmatprep.subr.mxu0 0.0
        %884 = vmatpush1.msra.mxu0 0.0
        %885 = vmatprep.subr.mxu0 0.0
        %886 = vmatpush1.msra.mxu0 0.0
        %887 = vmatprep.subr.mxu0 0.0
        %888 = vmatpush1.msra.mxu0 0.0
        %889 = vmatprep.subr.mxu0 0.0
        %890 = vmatpush1.msra.mxu0 0.0
        %891 = vmatprep.subr.mxu0 0.0
        %892 = vmatpush1.msra.mxu0 0.0
        %893 = vmatprep.subr.mxu0 0.0
        %894 = vmatpush1.msra.mxu0 0.0
        %895 = vmatprep.subr.mxu0 0.0
        %896 = vmatpush1.msra.mxu0 0.0
        %897 = vmatprep.subr.mxu0 0.0
        %898 = vmatpush1.msra.mxu0 0.0
        %899 = vmatprep.mubr.f32.mxu0 0.0
        %v900 = vand.u32 %v509, 4294901760
        %901 = vmatmul.mubr.f32.gmra.mrb[0].mxu0 %v900
        %v902 = vpop.f32.mrb[0].mxu0
        %v903 = vadd.f32 %v825, %v902
        %v904 = vpop.f32.mrb[0].mxu0
        %v905 = vadd.f32 %v827, %v904
        %906 = vdwg.mxu0
        %v907 = vand.u32 %v514, 4294901760
        %908 = vmatprep.subr.mxu0 %v907
        %v909 = vand.u32 %v512, 4294901760
        %910 = vmatpush1.msra.mxu0 %v909
        %911 = vmatprep.subr.mxu0 0.0
        %912 = vmatpush1.msra.mxu0 0.0
        %913 = vmatprep.subr.mxu0 0.0
        %914 = vmatpush1.msra.mxu0 0.0
        %915 = vmatprep.subr.mxu0 0.0
        %916 = vmatpush1.msra.mxu0 0.0
        %917 = vmatprep.subr.mxu0 0.0
        %918 = vmatpush1.msra.mxu0 0.0
        %919 = vmatprep.subr.mxu0 0.0
        %920 = vmatpush1.msra.mxu0 0.0
        %921 = vmatprep.subr.mxu0 0.0
        %922 = vmatpush1.msra.mxu0 0.0
        %923 = vmatprep.subr.mxu0 0.0
        %924 = vmatpush1.msra.mxu0 0.0
        %925 = vmatprep.subr.mxu0 0.0
        %926 = vmatpush1.msra.mxu0 0.0
        %927 = vmatprep.subr.mxu0 0.0
        %928 = vmatpush1.msra.mxu0 0.0
        %929 = vmatprep.subr.mxu0 0.0
        %930 = vmatpush1.msra.mxu0 0.0
        %931 = vmatprep.subr.mxu0 0.0
        %932 = vmatpush1.msra.mxu0 0.0
        %933 = vmatprep.subr.mxu0 0.0
        %934 = vmatpush1.msra.mxu0 0.0
        %935 = vmatprep.subr.mxu0 0.0
        %936 = vmatpush1.msra.mxu0 0.0
        %937 = vmatprep.subr.mxu0 0.0
        %938 = vmatpush1.msra.mxu0 0.0
        %939 = vmatprep.subr.mxu0 0.0
        %940 = vmatpush1.msra.mxu0 0.0
        %941 = vmatprep.subr.mxu0 0.0
        %942 = vmatpush1.msra.mxu0 0.0
        %943 = vmatprep.subr.mxu0 0.0
        %944 = vmatpush1.msra.mxu0 0.0
        %945 = vmatprep.subr.mxu0 0.0
        %946 = vmatpush1.msra.mxu0 0.0
        %947 = vmatprep.subr.mxu0 0.0
        %948 = vmatpush1.msra.mxu0 0.0
        %949 = vmatprep.subr.mxu0 0.0
        %950 = vmatpush1.msra.mxu0 0.0
        %951 = vmatprep.subr.mxu0 0.0
        %952 = vmatpush1.msra.mxu0 0.0
        %953 = vmatprep.subr.mxu0 0.0
        %954 = vmatpush1.msra.mxu0 0.0
        %955 = vmatprep.subr.mxu0 0.0
        %956 = vmatpush1.msra.mxu0 0.0
        %957 = vmatprep.subr.mxu0 0.0
        %958 = vmatpush1.msra.mxu0 0.0
        %959 = vmatprep.subr.mxu0 0.0
        %960 = vmatpush1.msra.mxu0 0.0
        %961 = vmatprep.subr.mxu0 0.0
        %962 = vmatpush1.msra.mxu0 0.0
        %963 = vmatprep.subr.mxu0 0.0
        %964 = vmatpush1.msra.mxu0 0.0
        %965 = vmatprep.subr.mxu0 0.0
        %966 = vmatpush1.msra.mxu0 0.0
        %967 = vmatprep.subr.mxu0 0.0
        %968 = vmatpush1.msra.mxu0 0.0
        %969 = vmatprep.subr.mxu0 0.0
        %970 = vmatpush1.msra.mxu0 0.0
        %971 = vmatprep.subr.mxu0 0.0
        %972 = vmatpush1.msra.mxu0 0.0
        %973 = vmatprep.mubr.f32.mxu0 0.0
        %v974 = vand.u32 %v509, 4294901760
        %975 = vmatmul.mubr.f32.gmra.mrb[0].mxu0 %v974
        %v976 = vpop.f32.mrb[0].mxu0
        %v977 = vadd.f32 %v903, %v976
        %v978 = vpop.f32.mrb[0].mxu0
        %v979 = vadd.f32 %v905, %v978
        %980 = vdwg.mxu0
        %v981 = vld [vmem:[%s5] sm:$0xff]
        %982 = vrot.lane.b32.xlu0 %v506, 17
        %v983 = vpop.permute.xlu0 %982
        %985 = vrot.lane.b32.xlu0 %v503, 17
        %v986 = vpop.permute.xlu0 %985
        %vm987 = vcmask 138240
        %v988 = vsel %vm987, %v986, %v983
        %v991 = vsel %vm987, %v983, %v986
        %v992 = vsel %vm407, 1, 0
        %v993 = vlaneseq
        %v994 = vshrl.u32 %v993, 7
        %v995 = vsub.s32 0, %v994
        %v996 = vrot.slane %v992, %v995
        %v997 = vlaneseq
        %v998 = vshrl.u32 %v997, 7
        %v999 = vsub.s32 1, %v998
        %v1000 = vrot.slane %v992, %v999
        %vm1001 = vcmp.eq.s32.totalorder %v996, 1
        %vm1002 = vcmp.eq.s32.totalorder %v1000, 1
        %v1003 = vsel %vm1001, %v991, 0.0
        %v1004 = vsel %vm1002, %v988, 0.0
        %1005 = vst [vmem:[#allocation2] sm:$0xf] %v1003
        %1006 = vst [vmem:[#allocation2 + $0x8] sm:$0xf] %v1004
        %1007 = vrot.lane.b32.xlu0 %v506, 16
        %v1008 = vpop.permute.xlu0 %1007
        %1010 = vrot.lane.b32.xlu0 %v503, 16
        %v1011 = vpop.permute.xlu0 %1010
        %vm1012 = vcmask 130048
        %v1013 = vsel %vm1012, %v1011, %v1008
        %v1016 = vsel %vm1012, %v1008, %v1011
        %v1017 = vsel %vm411, 1, 0
        %v1018 = vlaneseq
        %v1019 = vshrl.u32 %v1018, 7
        %v1020 = vsub.s32 0, %v1019
        %v1021 = vrot.slane %v1017, %v1020
        %v1022 = vlaneseq
        %v1023 = vshrl.u32 %v1022, 7
        %v1024 = vsub.s32 1, %v1023
        %v1025 = vrot.slane %v1017, %v1024
        %vm1026 = vcmp.eq.s32.totalorder %v1021, 1
        %vm1027 = vcmp.eq.s32.totalorder %v1025, 1
        %v1028 = vsel %vm1026, %v1016, 0.0
        %v1029 = vsel %vm1027, %v1013, 0.0
        %v1032 = vrot.slane %v1028, 4
        %v1033 = vrot.slane %v1029, 4
        %1036 = vst [vmem:[#allocation2] sm:$0xf0] %v1032
        %1037 = vst [vmem:[#allocation2 + $0x8] sm:$0xf0] %v1033
        %1038 = vrot.lane.b32.xlu0 %v506, 15
        %v1039 = vpop.permute.xlu0 %1038
        %1041 = vrot.lane.b32.xlu0 %v503, 15
        %v1042 = vpop.permute.xlu0 %1041
        %vm1043 = vcmask 121856
        %v1044 = vsel %vm1043, %v1042, %v1039
        %v1047 = vsel %vm1043, %v1039, %v1042
        %v1048 = vsel %vm415, 1, 0
        %v1049 = vlaneseq
        %v1050 = vshrl.u32 %v1049, 7
        %v1051 = vsub.s32 0, %v1050
        %v1052 = vrot.slane %v1048, %v1051
        %v1053 = vlaneseq
        %v1054 = vshrl.u32 %v1053, 7
        %v1055 = vsub.s32 1, %v1054
        %v1056 = vrot.slane %v1048, %v1055
        %vm1057 = vcmp.eq.s32.totalorder %v1052, 1
        %vm1058 = vcmp.eq.s32.totalorder %v1056, 1
        %v1059 = vsel %vm1057, %v1047, 0.0
        %v1060 = vsel %vm1058, %v1044, 0.0
        %1061 = vst [vmem:[#allocation2 + $0x10] sm:$0xf] %v1059
        %1062 = vst [vmem:[#allocation2 + $0x18] sm:$0xf] %v1060
        %1063 = vrot.lane.b32.xlu0 %v506, 1
        %v1064 = vpop.permute.xlu0 %1063
        %1066 = vrot.lane.b32.xlu0 %v503, 1
        %v1067 = vpop.permute.xlu0 %1066
        %vm1068 = vcmask 7168
        %v1069 = vsel %vm1068, %v1067, %v1064
        %v1072 = vsel %vm1068, %v1064, %v1067
        %v1073 = vsel %vm420, 1, 0
        %v1074 = vlaneseq
        %v1075 = vshrl.u32 %v1074, 7
        %v1076 = vsub.s32 0, %v1075
        %v1077 = vrot.slane %v1073, %v1076
        %v1078 = vlaneseq
        %v1079 = vshrl.u32 %v1078, 7
        %v1080 = vsub.s32 1, %v1079
        %v1081 = vrot.slane %v1073, %v1080
        %vm1082 = vcmp.eq.s32.totalorder %v1077, 1
        %vm1083 = vcmp.eq.s32.totalorder %v1081, 1
        %v1084 = vsel %vm1082, %v1072, 0.0
        %v1085 = vsel %vm1083, %v1069, 0.0
        %v1088 = vrot.slane %v1084, 4
        %v1089 = vrot.slane %v1085, 4
        %1092 = vst [vmem:[#allocation2 + $0x10] sm:$0xf0] %v1088
        %1093 = vst [vmem:[#allocation2 + $0x18] sm:$0xf0] %v1089
        %1095 = vst [vmem:[#allocation2 + $0x20] sm:$0xf] %v503
        %1096 = vst [vmem:[#allocation2 + $0x28] sm:$0xf] %v506
        %1097 = vrot.lane.b32.xlu0 %v503, 127
        %v1098 = vpop.permute.xlu0 %1097
        %1099 = vrot.lane.b32.xlu0 %v506, 127
        %v1100 = vpop.permute.xlu0 %1099
        %vm1101 = vcmask 1039360
        %v1102 = vsel %vm1101, %v1098, %v1100
        %v1106 = vsel %vm1101, %v1100, %v1098
        %v1107 = vsel %vm422, 1, 0
        %v1108 = vlaneseq
        %v1109 = vshrl.u32 %v1108, 7
        %v1110 = vsub.s32 0, %v1109
        %v1111 = vrot.slane %v1107, %v1110
        %v1112 = vlaneseq
        %v1113 = vshrl.u32 %v1112, 7
        %v1114 = vsub.s32 1, %v1113
        %v1115 = vrot.slane %v1107, %v1114
        %vm1116 = vcmp.eq.s32.totalorder %v1111, 1
        %vm1117 = vcmp.eq.s32.totalorder %v1115, 1
        %v1118 = vsel %vm1116, %v1102, 0.0
        %v1119 = vsel %vm1117, %v1106, 0.0
        %v1122 = vrot.slane %v1118, 4
        %v1123 = vrot.slane %v1119, 4
        %1126 = vst [vmem:[#allocation2 + $0x20] sm:$0xf0] %v1122
        %1127 = vst [vmem:[#allocation2 + $0x28] sm:$0xf0] %v1123
        %1128 = vrot.lane.b32.xlu0 %v503, 113
        %v1129 = vpop.permute.xlu0 %1128
        %1130 = vrot.lane.b32.xlu0 %v506, 113
        %v1131 = vpop.permute.xlu0 %1130
        %vm1132 = vcmask 924672
        %v1133 = vsel %vm1132, %v1129, %v1131
        %v1137 = vsel %vm1132, %v1131, %v1129
        %v1138 = vsel %vm427, 1, 0
        %v1139 = vlaneseq
        %v1140 = vshrl.u32 %v1139, 7
        %v1141 = vsub.s32 0, %v1140
        %v1142 = vrot.slane %v1138, %v1141
        %v1143 = vlaneseq
        %v1144 = vshrl.u32 %v1143, 7
        %v1145 = vsub.s32 1, %v1144
        %v1146 = vrot.slane %v1138, %v1145
        %vm1147 = vcmp.eq.s32.totalorder %v1142, 1
        %vm1148 = vcmp.eq.s32.totalorder %v1146, 1
        %v1149 = vsel %vm1147, %v1133, 0.0
        %v1150 = vsel %vm1148, %v1137, 0.0
        %1151 = vst [vmem:[#allocation2 + $0x30] sm:$0xf] %v1149
        %1152 = vst [vmem:[#allocation2 + $0x38] sm:$0xf] %v1150
        %1153 = vrot.lane.b32.xlu0 %v503, 112
        %v1154 = vpop.permute.xlu0 %1153
        %1155 = vrot.lane.b32.xlu0 %v506, 112
        %v1156 = vpop.permute.xlu0 %1155
        %vm1157 = vcmask 916480
        %v1158 = vsel %vm1157, %v1154, %v1156
        %v1162 = vsel %vm1157, %v1156, %v1154
        %v1163 = vsel %vm429, 1, 0
        %v1164 = vlaneseq
        %v1165 = vshrl.u32 %v1164, 7
        %v1166 = vsub.s32 0, %v1165
        %v1167 = vrot.slane %v1163, %v1166
        %v1168 = vlaneseq
        %v1169 = vshrl.u32 %v1168, 7
        %v1170 = vsub.s32 1, %v1169
        %v1171 = vrot.slane %v1163, %v1170
        %vm1172 = vcmp.eq.s32.totalorder %v1167, 1
        %vm1173 = vcmp.eq.s32.totalorder %v1171, 1
        %v1174 = vsel %vm1172, %v1158, 0.0
        %v1175 = vsel %vm1173, %v1162, 0.0
        %v1178 = vrot.slane %v1174, 4
        %v1179 = vrot.slane %v1175, 4
        %1182 = vst [vmem:[#allocation2 + $0x30] sm:$0xf0] %v1178
        %1183 = vst [vmem:[#allocation2 + $0x38] sm:$0xf0] %v1179
        %1184 = vrot.lane.b32.xlu0 %v503, 111
        %v1185 = vpop.permute.xlu0 %1184
        %1186 = vrot.lane.b32.xlu0 %v506, 111
        %v1187 = vpop.permute.xlu0 %1186
        %vm1188 = vcmask 908288
        %v1189 = vsel %vm1188, %v1185, %v1187
        %v1193 = vsel %vm1188, %v1187, %v1185
        %v1194 = vsel %vm431, 1, 0
        %v1195 = vlaneseq
        %v1196 = vshrl.u32 %v1195, 7
        %v1197 = vsub.s32 0, %v1196
        %v1198 = vrot.slane %v1194, %v1197
        %v1199 = vlaneseq
        %v1200 = vshrl.u32 %v1199, 7
        %v1201 = vsub.s32 1, %v1200
        %v1202 = vrot.slane %v1194, %v1201
        %vm1203 = vcmp.eq.s32.totalorder %v1198, 1
        %vm1204 = vcmp.eq.s32.totalorder %v1202, 1
        %v1205 = vsel %vm1203, %v1189, 0.0
        %v1206 = vsel %vm1204, %v1193, 0.0
        %1207 = vst [vmem:[#allocation2 + $0x40] sm:$0xf] %v1205
        %1208 = vst [vmem:[#allocation2 + $0x48] sm:$0xf] %v1206
        %v1209 = vld [vmem:[#allocation2] sm:$0xff]
        %v1210 = vld [vmem:[#allocation2 + $0x8] sm:$0xff]
        %v1211 = vld [vmem:[#allocation2 + $0x10] sm:$0xff]
        %v1212 = vld [vmem:[#allocation2 + $0x18] sm:$0xff]
        %v1213 = vld [vmem:[#allocation2 + $0x20] sm:$0xff]
        %v1214 = vld [vmem:[#allocation2 + $0x28] sm:$0xff]
        %v1215 = vld [vmem:[#allocation2 + $0x30] sm:$0xff]
        %v1216 = vld [vmem:[#allocation2 + $0x38] sm:$0xff]
        %v1217 = vld [vmem:[#allocation2 + $0x40] sm:$0xf]
        %v1218 = vld [vmem:[#allocation2 + $0x48] sm:$0xf]
        %vm1219 = vcmask 293888
        %v1221 = vsel %vm1219, %v981, 0
        %v1224 = vsel %vm511, %v1217, 0
        %v1227 = vsel %vm511, %v1218, 0
        %v1229 = vand.u32 %v1210, 4294901760
        %1230 = vmatprep.subr.mxu0 %v1229
        %v1231 = vand.u32 %v1209, 4294901760
        %1232 = vmatpush1.msra.mxu0 %v1231
        %v1233 = vand.u32 %v1212, 4294901760
        %1234 = vmatprep.subr.mxu0 %v1233
        %v1235 = vand.u32 %v1211, 4294901760
        %1236 = vmatpush1.msra.mxu0 %v1235
        %v1237 = vand.u32 %v1214, 4294901760
        %1238 = vmatprep.subr.mxu0 %v1237
        %v1239 = vand.u32 %v1213, 4294901760
        %1240 = vmatpush1.msra.mxu0 %v1239
        %v1241 = vand.u32 %v1216, 4294901760
        %1242 = vmatprep.subr.mxu0 %v1241
        %v1243 = vand.u32 %v1215, 4294901760
        %1244 = vmatpush1.msra.mxu0 %v1243
        %v1245 = vand.u32 %v1227, 4294901760
        %1246 = vmatprep.subr.mxu0 %v1245
        %v1247 = vand.u32 %v1224, 4294901760
        %1248 = vmatpush1.msra.mxu0 %v1247
        %1249 = vmatprep.subr.mxu0 0.0
        %1250 = vmatpush1.msra.mxu0 0.0
        %1251 = vmatprep.subr.mxu0 0.0
        %1252 = vmatpush1.msra.mxu0 0.0
        %1253 = vmatprep.subr.mxu0 0.0
        %1254 = vmatpush1.msra.mxu0 0.0
        %1255 = vmatprep.subr.mxu0 0.0
        %1256 = vmatpush1.msra.mxu0 0.0
        %1257 = vmatprep.subr.mxu0 0.0
        %1258 = vmatpush1.msra.mxu0 0.0
        %1259 = vmatprep.subr.mxu0 0.0
        %1260 = vmatpush1.msra.mxu0 0.0
        %1261 = vmatprep.subr.mxu0 0.0
        %1262 = vmatpush1.msra.mxu0 0.0
        %1263 = vmatprep.subr.mxu0 0.0
        %1264 = vmatpush1.msra.mxu0 0.0
        %1265 = vmatprep.subr.mxu0 0.0
        %1266 = vmatpush1.msra.mxu0 0.0
        %1267 = vmatprep.subr.mxu0 0.0
        %1268 = vmatpush1.msra.mxu0 0.0
        %1269 = vmatprep.subr.mxu0 0.0
        %1270 = vmatpush1.msra.mxu0 0.0
        %1271 = vmatprep.subr.mxu0 0.0
        %1272 = vmatpush1.msra.mxu0 0.0
        %1273 = vmatprep.subr.mxu0 0.0
        %1274 = vmatpush1.msra.mxu0 0.0
        %1275 = vmatprep.subr.mxu0 0.0
        %1276 = vmatpush1.msra.mxu0 0.0
        %1277 = vmatprep.subr.mxu0 0.0
        %1278 = vmatpush1.msra.mxu0 0.0
        %1279 = vmatprep.subr.mxu0 0.0
        %1280 = vmatpush1.msra.mxu0 0.0
        %1281 = vmatprep.subr.mxu0 0.0
        %1282 = vmatpush1.msra.mxu0 0.0
        %1283 = vmatprep.subr.mxu0 0.0
        %1284 = vmatpush1.msra.mxu0 0.0
        %1285 = vmatprep.subr.mxu0 0.0
        %1286 = vmatpush1.msra.mxu0 0.0
        %1287 = vmatprep.subr.mxu0 0.0
        %1288 = vmatpush1.msra.mxu0 0.0
        %1289 = vmatprep.subr.mxu0 0.0
        %1290 = vmatpush1.msra.mxu0 0.0
        %1291 = vmatprep.subr.mxu0 0.0
        %1292 = vmatpush1.msra.mxu0 0.0
        %1293 = vmatprep.subr.mxu0 0.0
        %1294 = vmatpush1.msra.mxu0 0.0
        %1295 = vmatprep.subr.mxu0 0.0
        %1296 = vmatpush1.msra.mxu0 0.0
        %1297 = vmatprep.subr.mxu0 0.0
        %1298 = vmatpush1.msra.mxu0 0.0
        %1299 = vmatprep.subr.mxu0 0.0
        %1300 = vmatpush1.msra.mxu0 0.0
        %1301 = vmatprep.subr.mxu0 0.0
        %1302 = vmatpush1.msra.mxu0 0.0
        %1303 = vmatprep.mubr.f32.mxu0 0.0
        %v1304 = vand.u32 %v1221, 4294901760
        %v1305 = vsub.f32 %v1221, %v1304
        %v1306 = vand.u32 %v1305, 4294901760
        %v1307 = vsub.f32 %v1305, %v1306
        %v1308 = vand.u32 %v1307, 4294901760
        %1309 = vmatmul.mubr.f32.gmra.mrb[0].mxu0 %v1308
        %v1310 = vpop.f32.mrb[0].mxu0
        %v1311 = vadd.f32 0.0, %v1310
        %v1312 = vpop.f32.mrb[0].mxu0
        %v1313 = vadd.f32 0.0, %v1312
        %1314 = vdwg.mxu0
        %v1315 = vand.u32 %v1210, 4294901760
        %v1316 = vsub.f32 %v1210, %v1315
        %v1317 = vand.u32 %v1316, 4294901760
        %v1318 = vsub.f32 %v1316, %v1317
        %v1319 = vand.u32 %v1318, 4294901760
        %1320 = vmatprep.subr.mxu0 %v1319
        %v1321 = vand.u32 %v1209, 4294901760
        %v1322 = vsub.f32 %v1209, %v1321
        %v1323 = vand.u32 %v1322, 4294901760
        %v1324 = vsub.f32 %v1322, %v1323
        %v1325 = vand.u32 %v1324, 4294901760
        %1326 = vmatpush1.msra.mxu0 %v1325
        %v1327 = vand.u32 %v1212, 4294901760
        %v1328 = vsub.f32 %v1212, %v1327
        %v1329 = vand.u32 %v1328, 4294901760
        %v1330 = vsub.f32 %v1328, %v1329
        %v1331 = vand.u32 %v1330, 4294901760
        %1332 = vmatprep.subr.mxu0 %v1331
        %v1333 = vand.u32 %v1211, 4294901760
        %v1334 = vsub.f32 %v1211, %v1333
        %v1335 = vand.u32 %v1334, 4294901760
        %v1336 = vsub.f32 %v1334, %v1335
        %v1337 = vand.u32 %v1336, 4294901760
        %1338 = vmatpush1.msra.mxu0 %v1337
        %v1339 = vand.u32 %v1214, 4294901760
        %v1340 = vsub.f32 %v1214, %v1339
        %v1341 = vand.u32 %v1340, 4294901760
        %v1342 = vsub.f32 %v1340, %v1341
        %v1343 = vand.u32 %v1342, 4294901760
        %1344 = vmatprep.subr.mxu0 %v1343
        %v1345 = vand.u32 %v1213, 4294901760
        %v1346 = vsub.f32 %v1213, %v1345
        %v1347 = vand.u32 %v1346, 4294901760
        %v1348 = vsub.f32 %v1346, %v1347
        %v1349 = vand.u32 %v1348, 4294901760
        %1350 = vmatpush1.msra.mxu0 %v1349
        %v1351 = vand.u32 %v1216, 4294901760
        %v1352 = vsub.f32 %v1216, %v1351
        %v1353 = vand.u32 %v1352, 4294901760
        %v1354 = vsub.f32 %v1352, %v1353
        %v1355 = vand.u32 %v1354, 4294901760
        %1356 = vmatprep.subr.mxu0 %v1355
        %v1357 = vand.u32 %v1215, 4294901760
        %v1358 = vsub.f32 %v1215, %v1357
        %v1359 = vand.u32 %v1358, 4294901760
        %v1360 = vsub.f32 %v1358, %v1359
        %v1361 = vand.u32 %v1360, 4294901760
        %1362 = vmatpush1.msra.mxu0 %v1361
        %v1363 = vand.u32 %v1227, 4294901760
        %v1364 = vsub.f32 %v1227, %v1363
        %v1365 = vand.u32 %v1364, 4294901760
        %v1366 = vsub.f32 %v1364, %v1365
        %v1367 = vand.u32 %v1366, 4294901760
        %1368 = vmatprep.subr.mxu0 %v1367
        %v1369 = vand.u32 %v1224, 4294901760
        %v1370 = vsub.f32 %v1224, %v1369
        %v1371 = vand.u32 %v1370, 4294901760
        %v1372 = vsub.f32 %v1370, %v1371
        %v1373 = vand.u32 %v1372, 4294901760
        %1374 = vmatpush1.msra.mxu0 %v1373
        %1375 = vmatprep.subr.mxu0 0.0
        %1376 = vmatpush1.msra.mxu0 0.0
        %1377 = vmatprep.subr.mxu0 0.0
        %1378 = vmatpush1.msra.mxu0 0.0
        %1379 = vmatprep.subr.mxu0 0.0
        %1380 = vmatpush1.msra.mxu0 0.0
        %1381 = vmatprep.subr.mxu0 0.0
        %1382 = vmatpush1.msra.mxu0 0.0
        %1383 = vmatprep.subr.mxu0 0.0
        %1384 = vmatpush1.msra.mxu0 0.0
        %1385 = vmatprep.subr.mxu0 0.0
        %1386 = vmatpush1.msra.mxu0 0.0
        %1387 = vmatprep.subr.mxu0 0.0
        %1388 = vmatpush1.msra.mxu0 0.0
        %1389 = vmatprep.subr.mxu0 0.0
        %1390 = vmatpush1.msra.mxu0 0.0
        %1391 = vmatprep.subr.mxu0 0.0
        %1392 = vmatpush1.msra.mxu0 0.0
        %1393 = vmatprep.subr.mxu0 0.0
        %1394 = vmatpush1.msra.mxu0 0.0
        %1395 = vmatprep.subr.mxu0 0.0
        %1396 = vmatpush1.msra.mxu0 0.0
        %1397 = vmatprep.subr.mxu0 0.0
        %1398 = vmatpush1.msra.mxu0 0.0
        %1399 = vmatprep.subr.mxu0 0.0
        %1400 = vmatpush1.msra.mxu0 0.0
        %1401 = vmatprep.subr.mxu0 0.0
        %1402 = vmatpush1.msra.mxu0 0.0
        %1403 = vmatprep.subr.mxu0 0.0
        %1404 = vmatpush1.msra.mxu0 0.0
        %1405 = vmatprep.subr.mxu0 0.0
        %1406 = vmatpush1.msra.mxu0 0.0
        %1407 = vmatprep.subr.mxu0 0.0
        %1408 = vmatpush1.msra.mxu0 0.0
        %1409 = vmatprep.subr.mxu0 0.0
        %1410 = vmatpush1.msra.mxu0 0.0
        %1411 = vmatprep.subr.mxu0 0.0
        %1412 = vmatpush1.msra.mxu0 0.0
        %1413 = vmatprep.subr.mxu0 0.0
        %1414 = vmatpush1.msra.mxu0 0.0
        %1415 = vmatprep.subr.mxu0 0.0
        %1416 = vmatpush1.msra.mxu0 0.0
        %1417 = vmatprep.subr.mxu0 0.0
        %1418 = vmatpush1.msra.mxu0 0.0
        %1419 = vmatprep.subr.mxu0 0.0
        %1420 = vmatpush1.msra.mxu0 0.0
        %1421 = vmatprep.subr.mxu0 0.0
        %1422 = vmatpush1.msra.mxu0 0.0
        %1423 = vmatprep.subr.mxu0 0.0
        %1424 = vmatpush1.msra.mxu0 0.0
        %1425 = vmatprep.subr.mxu0 0.0
        %1426 = vmatpush1.msra.mxu0 0.0
        %1427 = vmatprep.subr.mxu0 0.0
        %1428 = vmatpush1.msra.mxu0 0.0
        %1429 = vmatprep.mubr.f32.mxu0 0.0
        %v1430 = vand.u32 %v1221, 4294901760
        %1431 = vmatmul.mubr.f32.gmra.mrb[0].mxu0 %v1430
        %v1432 = vpop.f32.mrb[0].mxu0
        %v1433 = vadd.f32 %v1311, %v1432
        %v1434 = vpop.f32.mrb[0].mxu0
        %v1435 = vadd.f32 %v1313, %v1434
        %1436 = vdwg.mxu0
        %v1437 = vand.u32 %v1210, 4294901760
        %v1438 = vsub.f32 %v1210, %v1437
        %1439 = vmatprep.subr.mxu0 %v1438
        %v1440 = vand.u32 %v1209, 4294901760
        %v1441 = vsub.f32 %v1209, %v1440
        %1442 = vmatpush1.msra.mxu0 %v1441
        %v1443 = vand.u32 %v1212, 4294901760
        %v1444 = vsub.f32 %v1212, %v1443
        %1445 = vmatprep.subr.mxu0 %v1444
        %v1446 = vand.u32 %v1211, 4294901760
        %v1447 = vsub.f32 %v1211, %v1446
        %1448 = vmatpush1.msra.mxu0 %v1447
        %v1449 = vand.u32 %v1214, 4294901760
        %v1450 = vsub.f32 %v1214, %v1449
        %1451 = vmatprep.subr.mxu0 %v1450
        %v1452 = vand.u32 %v1213, 4294901760
        %v1453 = vsub.f32 %v1213, %v1452
        %1454 = vmatpush1.msra.mxu0 %v1453
        %v1455 = vand.u32 %v1216, 4294901760
        %v1456 = vsub.f32 %v1216, %v1455
        %1457 = vmatprep.subr.mxu0 %v1456
        %v1458 = vand.u32 %v1215, 4294901760
        %v1459 = vsub.f32 %v1215, %v1458
        %1460 = vmatpush1.msra.mxu0 %v1459
        %v1461 = vand.u32 %v1227, 4294901760
        %v1462 = vsub.f32 %v1227, %v1461
        %1463 = vmatprep.subr.mxu0 %v1462
        %v1464 = vand.u32 %v1224, 4294901760
        %v1465 = vsub.f32 %v1224, %v1464
        %1466 = vmatpush1.msra.mxu0 %v1465
        %1467 = vmatprep.subr.mxu0 0.0
        %1468 = vmatpush1.msra.mxu0 0.0
        %1469 = vmatprep.subr.mxu0 0.0
        %1470 = vmatpush1.msra.mxu0 0.0
        %1471 = vmatprep.subr.mxu0 0.0
        %1472 = vmatpush1.msra.mxu0 0.0
        %1473 = vmatprep.subr.mxu0 0.0
        %1474 = vmatpush1.msra.mxu0 0.0
        %1475 = vmatprep.subr.mxu0 0.0
        %1476 = vmatpush1.msra.mxu0 0.0
        %1477 = vmatprep.subr.mxu0 0.0
        %1478 = vmatpush1.msra.mxu0 0.0
        %1479 = vmatprep.subr.mxu0 0.0
        %1480 = vmatpush1.msra.mxu0 0.0
        %1481 = vmatprep.subr.mxu0 0.0
        %1482 = vmatpush1.msra.mxu0 0.0
        %1483 = vmatprep.subr.mxu0 0.0
        %1484 = vmatpush1.msra.mxu0 0.0
        %1485 = vmatprep.subr.mxu0 0.0
        %1486 = vmatpush1.msra.mxu0 0.0
        %1487 = vmatprep.subr.mxu0 0.0
        %1488 = vmatpush1.msra.mxu0 0.0
        %1489 = vmatprep.subr.mxu0 0.0
        %1490 = vmatpush1.msra.mxu0 0.0
        %1491 = vmatprep.subr.mxu0 0.0
        %1492 = vmatpush1.msra.mxu0 0.0
        %1493 = vmatprep.subr.mxu0 0.0
        %1494 = vmatpush1.msra.mxu0 0.0
        %1495 = vmatprep.subr.mxu0 0.0
        %1496 = vmatpush1.msra.mxu0 0.0
        %1497 = vmatprep.subr.mxu0 0.0
        %1498 = vmatpush1.msra.mxu0 0.0
        %1499 = vmatprep.subr.mxu0 0.0
        %1500 = vmatpush1.msra.mxu0 0.0
        %1501 = vmatprep.subr.mxu0 0.0
        %1502 = vmatpush1.msra.mxu0 0.0
        %1503 = vmatprep.subr.mxu0 0.0
        %1504 = vmatpush1.msra.mxu0 0.0
        %1505 = vmatprep.subr.mxu0 0.0
        %1506 = vmatpush1.msra.mxu0 0.0
        %1507 = vmatprep.subr.mxu0 0.0
        %1508 = vmatpush1.msra.mxu0 0.0
        %1509 = vmatprep.subr.mxu0 0.0
        %1510 = vmatpush1.msra.mxu0 0.0
        %1511 = vmatprep.subr.mxu0 0.0
        %1512 = vmatpush1.msra.mxu0 0.0
        %1513 = vmatprep.subr.mxu0 0.0
        %1514 = vmatpush1.msra.mxu0 0.0
        %1515 = vmatprep.subr.mxu0 0.0
        %1516 = vmatpush1.msra.mxu0 0.0
        %1517 = vmatprep.subr.mxu0 0.0
        %1518 = vmatpush1.msra.mxu0 0.0
        %1519 = vmatprep.subr.mxu0 0.0
        %1520 = vmatpush1.msra.mxu0 0.0
        %1521 = vmatprep.mubr.f32.mxu0 0.0
        %v1522 = vand.u32 %v1221, 4294901760
        %v1523 = vsub.f32 %v1221, %v1522
        %1524 = vmatmul.mubr.f32.gmra.mrb[0].mxu0 %v1523
        %v1525 = vpop.f32.mrb[0].mxu0
        %v1526 = vadd.f32 %v1433, %v1525
        %v1527 = vpop.f32.mrb[0].mxu0
        %v1528 = vadd.f32 %v1435, %v1527
        %1529 = vdwg.mxu0
        %v1530 = vand.u32 %v1210, 4294901760
        %1531 = vmatprep.subr.mxu0 %v1530
        %v1532 = vand.u32 %v1209, 4294901760
        %1533 = vmatpush1.msra.mxu0 %v1532
        %v1534 = vand.u32 %v1212, 4294901760
        %1535 = vmatprep.subr.mxu0 %v1534
        %v1536 = vand.u32 %v1211, 4294901760
        %1537 = vmatpush1.msra.mxu0 %v1536
        %v1538 = vand.u32 %v1214, 4294901760
        %1539 = vmatprep.subr.mxu0 %v1538
        %v1540 = vand.u32 %v1213, 4294901760
        %1541 = vmatpush1.msra.mxu0 %v1540
        %v1542 = vand.u32 %v1216, 4294901760
        %1543 = vmatprep.subr.mxu0 %v1542
        %v1544 = vand.u32 %v1215, 4294901760
        %1545 = vmatpush1.msra.mxu0 %v1544
        %v1546 = vand.u32 %v1227, 4294901760
        %1547 = vmatprep.subr.mxu0 %v1546
        %v1548 = vand.u32 %v1224, 4294901760
        %1549 = vmatpush1.msra.mxu0 %v1548
        %1550 = vmatprep.subr.mxu0 0.0
        %1551 = vmatpush1.msra.mxu0 0.0
        %1552 = vmatprep.subr.mxu0 0.0
        %1553 = vmatpush1.msra.mxu0 0.0
        %1554 = vmatprep.subr.mxu0 0.0
        %1555 = vmatpush1.msra.mxu0 0.0
        %1556 = vmatprep.subr.mxu0 0.0
        %1557 = vmatpush1.msra.mxu0 0.0
        %1558 = vmatprep.subr.mxu0 0.0
        %1559 = vmatpush1.msra.mxu0 0.0
        %1560 = vmatprep.subr.mxu0 0.0
        %1561 = vmatpush1.msra.mxu0 0.0
        %1562 = vmatprep.subr.mxu0 0.0
        %1563 = vmatpush1.msra.mxu0 0.0
        %1564 = vmatprep.subr.mxu0 0.0
        %1565 = vmatpush1.msra.mxu0 0.0
        %1566 = vmatprep.subr.mxu0 0.0
        %1567 = vmatpush1.msra.mxu0 0.0
        %1568 = vmatprep.subr.mxu0 0.0
        %1569 = vmatpush1.msra.mxu0 0.0
        %1570 = vmatprep.subr.mxu0 0.0
        %1571 = vmatpush1.msra.mxu0 0.0
        %1572 = vmatprep.subr.mxu0 0.0
        %1573 = vmatpush1.msra.mxu0 0.0
        %1574 = vmatprep.subr.mxu0 0.0
        %1575 = vmatpush1.msra.mxu0 0.0
        %1576 = vmatprep.subr.mxu0 0.0
        %1577 = vmatpush1.msra.mxu0 0.0
        %1578 = vmatprep.subr.mxu0 0.0
        %1579 = vmatpush1.msra.mxu0 0.0
        %1580 = vmatprep.subr.mxu0 0.0
        %1581 = vmatpush1.msra.mxu0 0.0
        %1582 = vmatprep.subr.mxu0 0.0
        %1583 = vmatpush1.msra.mxu0 0.0
        %1584 = vmatprep.subr.mxu0 0.0
        %1585 = vmatpush1.msra.mxu0 0.0
        %1586 = vmatprep.subr.mxu0 0.0
        %1587 = vmatpush1.msra.mxu0 0.0
        %1588 = vmatprep.subr.mxu0 0.0
        %1589 = vmatpush1.msra.mxu0 0.0
        %1590 = vmatprep.subr.mxu0 0.0
        %1591 = vmatpush1.msra.mxu0 0.0
        %1592 = vmatprep.subr.mxu0 0.0
        %1593 = vmatpush1.msra.mxu0 0.0
        %1594 = vmatprep.subr.mxu0 0.0
        %1595 = vmatpush1.msra.mxu0 0.0
        %1596 = vmatprep.subr.mxu0 0.0
        %1597 = vmatpush1.msra.mxu0 0.0
        %1598 = vmatprep.subr.mxu0 0.0
        %1599 = vmatpush1.msra.mxu0 0.0
        %1600 = vmatprep.subr.mxu0 0.0
        %1601 = vmatpush1.msra.mxu0 0.0
        %1602 = vmatprep.subr.mxu0 0.0
        %1603 = vmatpush1.msra.mxu0 0.0
        %1604 = vmatprep.mubr.f32.mxu0 0.0
        %v1605 = vand.u32 %v1221, 4294901760
        %v1606 = vsub.f32 %v1221, %v1605
        %v1607 = vand.u32 %v1606, 4294901760
        %1608 = vmatmul.mubr.f32.gmra.mrb[0].mxu0 %v1607
        %v1609 = vpop.f32.mrb[0].mxu0
        %v1610 = vadd.f32 %v1526, %v1609
        %v1611 = vpop.f32.mrb[0].mxu0
        %v1612 = vadd.f32 %v1528, %v1611
        %1613 = vdwg.mxu0
        %v1614 = vand.u32 %v1210, 4294901760
        %v1615 = vsub.f32 %v1210, %v1614
        %v1616 = vand.u32 %v1615, 4294901760
        %1617 = vmatprep.subr.mxu0 %v1616
        %v1618 = vand.u32 %v1209, 4294901760
        %v1619 = vsub.f32 %v1209, %v1618
        %v1620 = vand.u32 %v1619, 4294901760
        %1621 = vmatpush1.msra.mxu0 %v1620
        %v1622 = vand.u32 %v1212, 4294901760
        %v1623 = vsub.f32 %v1212, %v1622
        %v1624 = vand.u32 %v1623, 4294901760
        %1625 = vmatprep.subr.mxu0 %v1624
        %v1626 = vand.u32 %v1211, 4294901760
        %v1627 = vsub.f32 %v1211, %v1626
        %v1628 = vand.u32 %v1627, 4294901760
        %1629 = vmatpush1.msra.mxu0 %v1628
        %v1630 = vand.u32 %v1214, 4294901760
        %v1631 = vsub.f32 %v1214, %v1630
        %v1632 = vand.u32 %v1631, 4294901760
        %1633 = vmatprep.subr.mxu0 %v1632
        %v1634 = vand.u32 %v1213, 4294901760
        %v1635 = vsub.f32 %v1213, %v1634
        %v1636 = vand.u32 %v1635, 4294901760
        %1637 = vmatpush1.msra.mxu0 %v1636
        %v1638 = vand.u32 %v1216, 4294901760
        %v1639 = vsub.f32 %v1216, %v1638
        %v1640 = vand.u32 %v1639, 4294901760
        %1641 = vmatprep.subr.mxu0 %v1640
        %v1642 = vand.u32 %v1215, 4294901760
        %v1643 = vsub.f32 %v1215, %v1642
        %v1644 = vand.u32 %v1643, 4294901760
        %1645 = vmatpush1.msra.mxu0 %v1644
        %v1646 = vand.u32 %v1227, 4294901760
        %v1647 = vsub.f32 %v1227, %v1646
        %v1648 = vand.u32 %v1647, 4294901760
        %1649 = vmatprep.subr.mxu0 %v1648
        %v1650 = vand.u32 %v1224, 4294901760
        %v1651 = vsub.f32 %v1224, %v1650
        %v1652 = vand.u32 %v1651, 4294901760
        %1653 = vmatpush1.msra.mxu0 %v1652
        %1654 = vmatprep.subr.mxu0 0.0
        %1655 = vmatpush1.msra.mxu0 0.0
        %1656 = vmatprep.subr.mxu0 0.0
        %1657 = vmatpush1.msra.mxu0 0.0
        %1658 = vmatprep.subr.mxu0 0.0
        %1659 = vmatpush1.msra.mxu0 0.0
        %1660 = vmatprep.subr.mxu0 0.0
        %1661 = vmatpush1.msra.mxu0 0.0
        %1662 = vmatprep.subr.mxu0 0.0
        %1663 = vmatpush1.msra.mxu0 0.0
        %1664 = vmatprep.subr.mxu0 0.0
        %1665 = vmatpush1.msra.mxu0 0.0
        %1666 = vmatprep.subr.mxu0 0.0
        %1667 = vmatpush1.msra.mxu0 0.0
        %1668 = vmatprep.subr.mxu0 0.0
        %1669 = vmatpush1.msra.mxu0 0.0
        %1670 = vmatprep.subr.mxu0 0.0
        %1671 = vmatpush1.msra.mxu0 0.0
        %1672 = vmatprep.subr.mxu0 0.0
        %1673 = vmatpush1.msra.mxu0 0.0
        %1674 = vmatprep.subr.mxu0 0.0
        %1675 = vmatpush1.msra.mxu0 0.0
        %1676 = vmatprep.subr.mxu0 0.0
        %1677 = vmatpush1.msra.mxu0 0.0
        %1678 = vmatprep.subr.mxu0 0.0
        %1679 = vmatpush1.msra.mxu0 0.0
        %1680 = vmatprep.subr.mxu0 0.0
        %1681 = vmatpush1.msra.mxu0 0.0
        %1682 = vmatprep.subr.mxu0 0.0
        %1683 = vmatpush1.msra.mxu0 0.0
        %1684 = vmatprep.subr.mxu0 0.0
        %1685 = vmatpush1.msra.mxu0 0.0
        %1686 = vmatprep.subr.mxu0 0.0
        %1687 = vmatpush1.msra.mxu0 0.0
        %1688 = vmatprep.subr.mxu0 0.0
        %1689 = vmatpush1.msra.mxu0 0.0
        %1690 = vmatprep.subr.mxu0 0.0
        %1691 = vmatpush1.msra.mxu0 0.0
        %1692 = vmatprep.subr.mxu0 0.0
        %1693 = vmatpush1.msra.mxu0 0.0
        %1694 = vmatprep.subr.mxu0 0.0
        %1695 = vmatpush1.msra.mxu0 0.0
        %1696 = vmatprep.subr.mxu0 0.0
        %1697 = vmatpush1.msra.mxu0 0.0
        %1698 = vmatprep.subr.mxu0 0.0
        %1699 = vmatpush1.msra.mxu0 0.0
        %1700 = vmatprep.subr.mxu0 0.0
        %1701 = vmatpush1.msra.mxu0 0.0
        %1702 = vmatprep.subr.mxu0 0.0
        %1703 = vmatpush1.msra.mxu0 0.0
        %1704 = vmatprep.subr.mxu0 0.0
        %1705 = vmatpush1.msra.mxu0 0.0
        %1706 = vmatprep.subr.mxu0 0.0
        %1707 = vmatpush1.msra.mxu0 0.0
        %1708 = vmatprep.mubr.f32.mxu0 0.0
        %v1709 = vand.u32 %v1221, 4294901760
        %1710 = vmatmul.mubr.f32.gmra.mrb[0].mxu0 %v1709
        %v1711 = vpop.f32.mrb[0].mxu0
        %v1712 = vadd.f32 %v1610, %v1711
        %v1713 = vpop.f32.mrb[0].mxu0
        %v1714 = vadd.f32 %v1612, %v1713
        %1715 = vdwg.mxu0
        %v1716 = vand.u32 %v1210, 4294901760
        %1717 = vmatprep.subr.mxu0 %v1716
        %v1718 = vand.u32 %v1209, 4294901760
        %1719 = vmatpush1.msra.mxu0 %v1718
        %v1720 = vand.u32 %v1212, 4294901760
        %1721 = vmatprep.subr.mxu0 %v1720
        %v1722 = vand.u32 %v1211, 4294901760
        %1723 = vmatpush1.msra.mxu0 %v1722
        %v1724 = vand.u32 %v1214, 4294901760
        %1725 = vmatprep.subr.mxu0 %v1724
        %v1726 = vand.u32 %v1213, 4294901760
        %1727 = vmatpush1.msra.mxu0 %v1726
        %v1728 = vand.u32 %v1216, 4294901760
        %1729 = vmatprep.subr.mxu0 %v1728
        %v1730 = vand.u32 %v1215, 4294901760
        %1731 = vmatpush1.msra.mxu0 %v1730
        %v1732 = vand.u32 %v1227, 4294901760
        %1733 = vmatprep.subr.mxu0 %v1732
        %v1734 = vand.u32 %v1224, 4294901760
        %1735 = vmatpush1.msra.mxu0 %v1734
        %1736 = vmatprep.subr.mxu0 0.0
        %1737 = vmatpush1.msra.mxu0 0.0
        %1738 = vmatprep.subr.mxu0 0.0
        %1739 = vmatpush1.msra.mxu0 0.0
        %1740 = vmatprep.subr.mxu0 0.0
        %1741 = vmatpush1.msra.mxu0 0.0
        %1742 = vmatprep.subr.mxu0 0.0
        %1743 = vmatpush1.msra.mxu0 0.0
        %1744 = vmatprep.subr.mxu0 0.0
        %1745 = vmatpush1.msra.mxu0 0.0
        %1746 = vmatprep.subr.mxu0 0.0
        %1747 = vmatpush1.msra.mxu0 0.0
        %1748 = vmatprep.subr.mxu0 0.0
        %1749 = vmatpush1.msra.mxu0 0.0
        %1750 = vmatprep.subr.mxu0 0.0
        %1751 = vmatpush1.msra.mxu0 0.0
        %1752 = vmatprep.subr.mxu0 0.0
        %1753 = vmatpush1.msra.mxu0 0.0
        %1754 = vmatprep.subr.mxu0 0.0
        %1755 = vmatpush1.msra.mxu0 0.0
        %1756 = vmatprep.subr.mxu0 0.0
        %1757 = vmatpush1.msra.mxu0 0.0
        %1758 = vmatprep.subr.mxu0 0.0
        %1759 = vmatpush1.msra.mxu0 0.0
        %1760 = vmatprep.subr.mxu0 0.0
        %1761 = vmatpush1.msra.mxu0 0.0
        %1762 = vmatprep.subr.mxu0 0.0
        %1763 = vmatpush1.msra.mxu0 0.0
        %1764 = vmatprep.subr.mxu0 0.0
        %1765 = vmatpush1.msra.mxu0 0.0
        %1766 = vmatprep.subr.mxu0 0.0
        %1767 = vmatpush1.msra.mxu0 0.0
        %1768 = vmatprep.subr.mxu0 0.0
        %1769 = vmatpush1.msra.mxu0 0.0
        %1770 = vmatprep.subr.mxu0 0.0
        %1771 = vmatpush1.msra.mxu0 0.0
        %1772 = vmatprep.subr.mxu0 0.0
        %1773 = vmatpush1.msra.mxu0 0.0
        %1774 = vmatprep.subr.mxu0 0.0
        %1775 = vmatpush1.msra.mxu0 0.0
        %1776 = vmatprep.subr.mxu0 0.0
        %1777 = vmatpush1.msra.mxu0 0.0
        %1778 = vmatprep.subr.mxu0 0.0
        %1779 = vmatpush1.msra.mxu0 0.0
        %1780 = vmatprep.subr.mxu0 0.0
        %1781 = vmatpush1.msra.mxu0 0.0
        %1782 = vmatprep.subr.mxu0 0.0
        %1783 = vmatpush1.msra.mxu0 0.0
        %1784 = vmatprep.subr.mxu0 0.0
        %1785 = vmatpush1.msra.mxu0 0.0
        %1786 = vmatprep.subr.mxu0 0.0
        %1787 = vmatpush1.msra.mxu0 0.0
        %1788 = vmatprep.subr.mxu0 0.0
        %1789 = vmatpush1.msra.mxu0 0.0
        %1790 = vmatprep.mubr.f32.mxu0 0.0
        %v1791 = vand.u32 %v1221, 4294901760
        %1792 = vmatmul.mubr.f32.gmra.mrb[0].mxu0 %v1791
        %v1793 = vpop.f32.mrb[0].mxu0
        %v1794 = vadd.f32 %v1712, %v1793
        %v1795 = vpop.f32.mrb[0].mxu0
        %v1796 = vadd.f32 %v1714, %v1795
        %1797 = vdwg.mxu0
        %v1798 = vld [vmem:[%s7] sm:$0xff]
        %1800 = vset.pattern.permute.xlu0 0
        %1801 = vperm.xlu0 %1800, %v1798
        %v1802 = vpop.permute.xlu0 %1801
        %v1804 = vmul.f32 %v1794, %v1802
        %v1805 = vmul.f32 %v1796, %v1802
        %v1806 = vld [vmem:[%s8] sm:$0xff]
        %1808 = vset.pattern.permute.xlu0 0
        %1809 = vperm.xlu0 %1808, %v1806
        %v1810 = vpop.permute.xlu0 %1809
        %v1812 = vadd.f32 %v1804, %v1810
        %v1813 = vadd.f32 %v1805, %v1810
        %v1814 = vmax.f32 %v1812, 0.0
        %v1815 = vmax.f32 %v1813, 0.0
        %v1816 = vld [vmem:[%s9] sm:$0xff]
        %1818 = vrot.lane.b32.xlu0 %v1815, 17
        %v1819 = vpop.permute.xlu0 %1818
        %1822 = vrot.lane.b32.xlu0 %v1814, 17
        %v1823 = vpop.permute.xlu0 %1822
        %v1824 = vsel %vm987, %v1823, %v1819
        %v1827 = vsel %vm987, %v1819, %v1823
        %v1828 = vsel %vm1001, %v1827, 0.0
        %v1829 = vsel %vm1002, %v1824, 0.0
        %1830 = vst [vmem:[#allocation3] sm:$0xff] %v1828
        %1831 = vst [vmem:[#allocation3 + $0x8] sm:$0xff] %v1829
        %1832 = vrot.lane.b32.xlu0 %v1815, 16
        %v1833 = vpop.permute.xlu0 %1832
        %1835 = vrot.lane.b32.xlu0 %v1814, 16
        %v1836 = vpop.permute.xlu0 %1835
        %v1837 = vsel %vm1012, %v1836, %v1833
        %v1840 = vsel %vm1012, %v1833, %v1836
        %v1841 = vsel %vm1026, %v1840, 0.0
        %v1842 = vsel %vm1027, %v1837, 0.0
        %1843 = vst [vmem:[#allocation3 + $0x10] sm:$0xff] %v1841
        %1844 = vst [vmem:[#allocation3 + $0x18] sm:$0xff] %v1842
        %1845 = vrot.lane.b32.xlu0 %v1815, 15
        %v1846 = vpop.permute.xlu0 %1845
        %1848 = vrot.lane.b32.xlu0 %v1814, 15
        %v1849 = vpop.permute.xlu0 %1848
        %v1850 = vsel %vm1043, %v1849, %v1846
        %v1853 = vsel %vm1043, %v1846, %v1849
        %v1854 = vsel %vm1057, %v1853, 0.0
        %v1855 = vsel %vm1058, %v1850, 0.0
        %1856 = vst [vmem:[#allocation3 + $0x20] sm:$0xff] %v1854
        %1857 = vst [vmem:[#allocation3 + $0x28] sm:$0xff] %v1855
        %1858 = vrot.lane.b32.xlu0 %v1815, 1
        %v1859 = vpop.permute.xlu0 %1858
        %1861 = vrot.lane.b32.xlu0 %v1814, 1
        %v1862 = vpop.permute.xlu0 %1861
        %v1863 = vsel %vm1068, %v1862, %v1859
        %v1866 = vsel %vm1068, %v1859, %v1862
        %v1867 = vsel %vm1082, %v1866, 0.0
        %v1868 = vsel %vm1083, %v1863, 0.0
        %1869 = vst [vmem:[#allocation3 + $0x30] sm:$0xff] %v1867
        %1870 = vst [vmem:[#allocation3 + $0x38] sm:$0xff] %v1868
        %1871 = vst [vmem:[#allocation3 + $0x40] sm:$0xff] %v1814
        %1872 = vst [vmem:[#allocation3 + $0x48] sm:$0xff] %v1815
        %1873 = vrot.lane.b32.xlu0 %v1814, 127
        %v1874 = vpop.permute.xlu0 %1873
        %1875 = vrot.lane.b32.xlu0 %v1815, 127
        %v1876 = vpop.permute.xlu0 %1875
        %v1877 = vsel %vm1101, %v1874, %v1876
        %v1881 = vsel %vm1101, %v1876, %v1874
        %v1882 = vsel %vm1116, %v1877, 0.0
        %v1883 = vsel %vm1117, %v1881, 0.0
        %1884 = vst [vmem:[#allocation3 + $0x50] sm:$0xff] %v1882
        %1885 = vst [vmem:[#allocation3 + $0x58] sm:$0xff] %v1883
        %1886 = vrot.lane.b32.xlu0 %v1814, 113
        %v1887 = vpop.permute.xlu0 %1886
        %1888 = vrot.lane.b32.xlu0 %v1815, 113
        %v1889 = vpop.permute.xlu0 %1888
        %v1890 = vsel %vm1132, %v1887, %v1889
        %v1894 = vsel %vm1132, %v1889, %v1887
        %v1895 = vsel %vm1147, %v1890, 0.0
        %v1896 = vsel %vm1148, %v1894, 0.0
        %1897 = vst [vmem:[#allocation3 + $0x60] sm:$0xff] %v1895
        %1898 = vst [vmem:[#allocation3 + $0x68] sm:$0xff] %v1896
        %1899 = vrot.lane.b32.xlu0 %v1814, 112
        %v1900 = vpop.permute.xlu0 %1899
        %1901 = vrot.lane.b32.xlu0 %v1815, 112
        %v1902 = vpop.permute.xlu0 %1901
        %v1903 = vsel %vm1157, %v1900, %v1902
        %v1907 = vsel %vm1157, %v1902, %v1900
        %v1908 = vsel %vm1172, %v1903, 0.0
        %v1909 = vsel %vm1173, %v1907, 0.0
        %1910 = vst [vmem:[#allocation3 + $0x70] sm:$0xff] %v1908
        %1911 = vst [vmem:[#allocation3 + $0x78] sm:$0xff] %v1909
        %1912 = vrot.lane.b32.xlu0 %v1814, 111
        %v1913 = vpop.permute.xlu0 %1912
        %1914 = vrot.lane.b32.xlu0 %v1815, 111
        %v1915 = vpop.permute.xlu0 %1914
        %v1916 = vsel %vm1188, %v1913, %v1915
        %v1920 = vsel %vm1188, %v1915, %v1913
        %v1921 = vsel %vm1203, %v1916, 0.0
        %v1922 = vsel %vm1204, %v1920, 0.0
        %1923 = vst [vmem:[#allocation3 + $0x80] sm:$0xff] %v1921
        %1924 = vst [vmem:[#allocation3 + $0x88] sm:$0xff] %v1922
        %v1925 = vld [vmem:[#allocation3] sm:$0xff]
        %v1926 = vld [vmem:[#allocation3 + $0x8] sm:$0xff]
        %v1927 = vld [vmem:[#allocation3 + $0x10] sm:$0xff]
        %v1928 = vld [vmem:[#allocation3 + $0x18] sm:$0xff]
        %v1929 = vld [vmem:[#allocation3 + $0x20] sm:$0xff]
        %v1930 = vld [vmem:[#allocation3 + $0x28] sm:$0xff]
        %v1931 = vld [vmem:[#allocation3 + $0x30] sm:$0xff]
        %v1932 = vld [vmem:[#allocation3 + $0x38] sm:$0xff]
        %v1933 = vld [vmem:[#allocation3 + $0x40] sm:$0xff]
        %v1934 = vld [vmem:[#allocation3 + $0x48] sm:$0xff]
        %v1935 = vld [vmem:[#allocation3 + $0x50] sm:$0xff]
        %v1936 = vld [vmem:[#allocation3 + $0x58] sm:$0xff]
        %v1937 = vld [vmem:[#allocation3 + $0x60] sm:$0xff]
        %v1938 = vld [vmem:[#allocation3 + $0x68] sm:$0xff]
        %v1939 = vld [vmem:[#allocation3 + $0x70] sm:$0xff]
        %v1940 = vld [vmem:[#allocation3 + $0x78] sm:$0xff]
        %v1941 = vld [vmem:[#allocation3 + $0x80] sm:$0xff]
        %v1942 = vld [vmem:[#allocation3 + $0x88] sm:$0xff]
        %vm1943 = vcmask 588800
        %v1945 = vsel %vm1943, %v1816, 0
        %v1947 = vand.u32 %v1926, 4294901760
        %1948 = vmatprep.subr.mxu0 %v1947
        %v1949 = vand.u32 %v1925, 4294901760
        %1950 = vmatpush1.msra.mxu0 %v1949
        %v1951 = vand.u32 %v1928, 4294901760
        %1952 = vmatprep.subr.mxu0 %v1951
        %v1953 = vand.u32 %v1927, 4294901760
        %1954 = vmatpush1.msra.mxu0 %v1953
        %v1955 = vand.u32 %v1930, 4294901760
        %1956 = vmatprep.subr.mxu0 %v1955
        %v1957 = vand.u32 %v1929, 4294901760
        %1958 = vmatpush1.msra.mxu0 %v1957
        %v1959 = vand.u32 %v1932, 4294901760
        %1960 = vmatprep.subr.mxu0 %v1959
        %v1961 = vand.u32 %v1931, 4294901760
        %1962 = vmatpush1.msra.mxu0 %v1961
        %v1963 = vand.u32 %v1934, 4294901760
        %1964 = vmatprep.subr.mxu0 %v1963
        %v1965 = vand.u32 %v1933, 4294901760
        %1966 = vmatpush1.msra.mxu0 %v1965
        %v1967 = vand.u32 %v1936, 4294901760
        %1968 = vmatprep.subr.mxu0 %v1967
        %v1969 = vand.u32 %v1935, 4294901760
        %1970 = vmatpush1.msra.mxu0 %v1969
        %v1971 = vand.u32 %v1938, 4294901760
        %1972 = vmatprep.subr.mxu0 %v1971
        %v1973 = vand.u32 %v1937, 4294901760
        %1974 = vmatpush1.msra.mxu0 %v1973
        %v1975 = vand.u32 %v1940, 4294901760
        %1976 = vmatprep.subr.mxu0 %v1975
        %v1977 = vand.u32 %v1939, 4294901760
        %1978 = vmatpush1.msra.mxu0 %v1977
        %v1979 = vand.u32 %v1942, 4294901760
        %1980 = vmatprep.subr.mxu0 %v1979
        %v1981 = vand.u32 %v1941, 4294901760
        %1982 = vmatpush1.msra.mxu0 %v1981
        %1983 = vmatprep.subr.mxu0 0.0
        %1984 = vmatpush1.msra.mxu0 0.0
        %1985 = vmatprep.subr.mxu0 0.0
        %1986 = vmatpush1.msra.mxu0 0.0
        %1987 = vmatprep.subr.mxu0 0.0
        %1988 = vmatpush1.msra.mxu0 0.0
        %1989 = vmatprep.subr.mxu0 0.0
        %1990 = vmatpush1.msra.mxu0 0.0
        %1991 = vmatprep.subr.mxu0 0.0
        %1992 = vmatpush1.msra.mxu0 0.0
        %1993 = vmatprep.subr.mxu0 0.0
        %1994 = vmatpush1.msra.mxu0 0.0
        %1995 = vmatprep.subr.mxu0 0.0
        %1996 = vmatpush1.msra.mxu0 0.0
        %1997 = vmatprep.subr.mxu0 0.0
        %1998 = vmatpush1.msra.mxu0 0.0
        %1999 = vmatprep.subr.mxu0 0.0
        %2000 = vmatpush1.msra.mxu0 0.0
        %2001 = vmatprep.subr.mxu0 0.0
        %2002 = vmatpush1.msra.mxu0 0.0
        %2003 = vmatprep.subr.mxu0 0.0
        %2004 = vmatpush1.msra.mxu0 0.0
        %2005 = vmatprep.subr.mxu0 0.0
        %2006 = vmatpush1.msra.mxu0 0.0
        %2007 = vmatprep.subr.mxu0 0.0
        %2008 = vmatpush1.msra.mxu0 0.0
        %2009 = vmatprep.subr.mxu0 0.0
        %2010 = vmatpush1.msra.mxu0 0.0
        %2011 = vmatprep.subr.mxu0 0.0
        %2012 = vmatpush1.msra.mxu0 0.0
        %2013 = vmatprep.subr.mxu0 0.0
        %2014 = vmatpush1.msra.mxu0 0.0
        %2015 = vmatprep.subr.mxu0 0.0
        %2016 = vmatpush1.msra.mxu0 0.0
        %2017 = vmatprep.subr.mxu0 0.0
        %2018 = vmatpush1.msra.mxu0 0.0
        %2019 = vmatprep.subr.mxu0 0.0
        %2020 = vmatpush1.msra.mxu0 0.0
        %2021 = vmatprep.subr.mxu0 0.0
        %2022 = vmatpush1.msra.mxu0 0.0
        %2023 = vmatprep.subr.mxu0 0.0
        %2024 = vmatpush1.msra.mxu0 0.0
        %2025 = vmatprep.subr.mxu0 0.0
        %2026 = vmatpush1.msra.mxu0 0.0
        %2027 = vmatprep.subr.mxu0 0.0
        %2028 = vmatpush1.msra.mxu0 0.0
        %2029 = vmatprep.mubr.f32.mxu0 0.0
        %v2030 = vand.u32 %v1945, 4294901760
        %v2031 = vsub.f32 %v1945, %v2030
        %v2032 = vand.u32 %v2031, 4294901760
        %v2033 = vsub.f32 %v2031, %v2032
        %v2034 = vand.u32 %v2033, 4294901760
        %2035 = vmatmul.mubr.f32.gmra.mrb[0].mxu0 %v2034
        %v2036 = vpop.f32.mrb[0].mxu0
        %v2037 = vadd.f32 0.0, %v2036
        %v2038 = vpop.f32.mrb[0].mxu0
        %v2039 = vadd.f32 0.0, %v2038
        %2040 = vdwg.mxu0
        %v2041 = vand.u32 %v1926, 4294901760
        %v2042 = vsub.f32 %v1926, %v2041
        %v2043 = vand.u32 %v2042, 4294901760
        %v2044 = vsub.f32 %v2042, %v2043
        %v2045 = vand.u32 %v2044, 4294901760
        %2046 = vmatprep.subr.mxu0 %v2045
        %v2047 = vand.u32 %v1925, 4294901760
        %v2048 = vsub.f32 %v1925, %v2047
        %v2049 = vand.u32 %v2048, 4294901760
        %v2050 = vsub.f32 %v2048, %v2049
        %v2051 = vand.u32 %v2050, 4294901760
        %2052 = vmatpush1.msra.mxu0 %v2051
        %v2053 = vand.u32 %v1928, 4294901760
        %v2054 = vsub.f32 %v1928, %v2053
        %v2055 = vand.u32 %v2054, 4294901760
        %v2056 = vsub.f32 %v2054, %v2055
        %v2057 = vand.u32 %v2056, 4294901760
        %2058 = vmatprep.subr.mxu0 %v2057
        %v2059 = vand.u32 %v1927, 4294901760
        %v2060 = vsub.f32 %v1927, %v2059
        %v2061 = vand.u32 %v2060, 4294901760
        %v2062 = vsub.f32 %v2060, %v2061
        %v2063 = vand.u32 %v2062, 4294901760
        %2064 = vmatpush1.msra.mxu0 %v2063
        %v2065 = vand.u32 %v1930, 4294901760
        %v2066 = vsub.f32 %v1930, %v2065
        %v2067 = vand.u32 %v2066, 4294901760
        %v2068 = vsub.f32 %v2066, %v2067
        %v2069 = vand.u32 %v2068, 4294901760
        %2070 = vmatprep.subr.mxu0 %v2069
        %v2071 = vand.u32 %v1929, 4294901760
        %v2072 = vsub.f32 %v1929, %v2071
        %v2073 = vand.u32 %v2072, 4294901760
        %v2074 = vsub.f32 %v2072, %v2073
        %v2075 = vand.u32 %v2074, 4294901760
        %2076 = vmatpush1.msra.mxu0 %v2075
        %v2077 = vand.u32 %v1932, 4294901760
        %v2078 = vsub.f32 %v1932, %v2077
        %v2079 = vand.u32 %v2078, 4294901760
        %v2080 = vsub.f32 %v2078, %v2079
        %v2081 = vand.u32 %v2080, 4294901760
        %2082 = vmatprep.subr.mxu0 %v2081
        %v2083 = vand.u32 %v1931, 4294901760
        %v2084 = vsub.f32 %v1931, %v2083
        %v2085 = vand.u32 %v2084, 4294901760
        %v2086 = vsub.f32 %v2084, %v2085
        %v2087 = vand.u32 %v2086, 4294901760
        %2088 = vmatpush1.msra.mxu0 %v2087
        %v2089 = vand.u32 %v1934, 4294901760
        %v2090 = vsub.f32 %v1934, %v2089
        %v2091 = vand.u32 %v2090, 4294901760
        %v2092 = vsub.f32 %v2090, %v2091
        %v2093 = vand.u32 %v2092, 4294901760
        %2094 = vmatprep.subr.mxu0 %v2093
        %v2095 = vand.u32 %v1933, 4294901760
        %v2096 = vsub.f32 %v1933, %v2095
        %v2097 = vand.u32 %v2096, 4294901760
        %v2098 = vsub.f32 %v2096, %v2097
        %v2099 = vand.u32 %v2098, 4294901760
        %2100 = vmatpush1.msra.mxu0 %v2099
        %v2101 = vand.u32 %v1936, 4294901760
        %v2102 = vsub.f32 %v1936, %v2101
        %v2103 = vand.u32 %v2102, 4294901760
        %v2104 = vsub.f32 %v2102, %v2103
        %v2105 = vand.u32 %v2104, 4294901760
        %2106 = vmatprep.subr.mxu0 %v2105
        %v2107 = vand.u32 %v1935, 4294901760
        %v2108 = vsub.f32 %v1935, %v2107
        %v2109 = vand.u32 %v2108, 4294901760
        %v2110 = vsub.f32 %v2108, %v2109
        %v2111 = vand.u32 %v2110, 4294901760
        %2112 = vmatpush1.msra.mxu0 %v2111
        %v2113 = vand.u32 %v1938, 4294901760
        %v2114 = vsub.f32 %v1938, %v2113
        %v2115 = vand.u32 %v2114, 4294901760
        %v2116 = vsub.f32 %v2114, %v2115
        %v2117 = vand.u32 %v2116, 4294901760
        %2118 = vmatprep.subr.mxu0 %v2117
        %v2119 = vand.u32 %v1937, 4294901760
        %v2120 = vsub.f32 %v1937, %v2119
        %v2121 = vand.u32 %v2120, 4294901760
        %v2122 = vsub.f32 %v2120, %v2121
        %v2123 = vand.u32 %v2122, 4294901760
        %2124 = vmatpush1.msra.mxu0 %v2123
        %v2125 = vand.u32 %v1940, 4294901760
        %v2126 = vsub.f32 %v1940, %v2125
        %v2127 = vand.u32 %v2126, 4294901760
        %v2128 = vsub.f32 %v2126, %v2127
        %v2129 = vand.u32 %v2128, 4294901760
        %2130 = vmatprep.subr.mxu0 %v2129
        %v2131 = vand.u32 %v1939, 4294901760
        %v2132 = vsub.f32 %v1939, %v2131
        %v2133 = vand.u32 %v2132, 4294901760
        %v2134 = vsub.f32 %v2132, %v2133
        %v2135 = vand.u32 %v2134, 4294901760
        %2136 = vmatpush1.msra.mxu0 %v2135
        %v2137 = vand.u32 %v1942, 4294901760
        %v2138 = vsub.f32 %v1942, %v2137
        %v2139 = vand.u32 %v2138, 4294901760
        %v2140 = vsub.f32 %v2138, %v2139
        %v2141 = vand.u32 %v2140, 4294901760
        %2142 = vmatprep.subr.mxu0 %v2141
        %v2143 = vand.u32 %v1941, 4294901760
        %v2144 = vsub.f32 %v1941, %v2143
        %v2145 = vand.u32 %v2144, 4294901760
        %v2146 = vsub.f32 %v2144, %v2145
        %v2147 = vand.u32 %v2146, 4294901760
        %2148 = vmatpush1.msra.mxu0 %v2147
        %2149 = vmatprep.subr.mxu0 0.0
        %2150 = vmatpush1.msra.mxu0 0.0
        %2151 = vmatprep.subr.mxu0 0.0
        %2152 = vmatpush1.msra.mxu0 0.0
        %2153 = vmatprep.subr.mxu0 0.0
        %2154 = vmatpush1.msra.mxu0 0.0
        %2155 = vmatprep.subr.mxu0 0.0
        %2156 = vmatpush1.msra.mxu0 0.0
        %2157 = vmatprep.subr.mxu0 0.0
        %2158 = vmatpush1.msra.mxu0 0.0
        %2159 = vmatprep.subr.mxu0 0.0
        %2160 = vmatpush1.msra.mxu0 0.0
        %2161 = vmatprep.subr.mxu0 0.0
        %2162 = vmatpush1.msra.mxu0 0.0
        %2163 = vmatprep.subr.mxu0 0.0
        %2164 = vmatpush1.msra.mxu0 0.0
        %2165 = vmatprep.subr.mxu0 0.0
        %2166 = vmatpush1.msra.mxu0 0.0
        %2167 = vmatprep.subr.mxu0 0.0
        %2168 = vmatpush1.msra.mxu0 0.0
        %2169 = vmatprep.subr.mxu0 0.0
        %2170 = vmatpush1.msra.mxu0 0.0
        %2171 = vmatprep.subr.mxu0 0.0
        %2172 = vmatpush1.msra.mxu0 0.0
        %2173 = vmatprep.subr.mxu0 0.0
        %2174 = vmatpush1.msra.mxu0 0.0
        %2175 = vmatprep.subr.mxu0 0.0
        %2176 = vmatpush1.msra.mxu0 0.0
        %2177 = vmatprep.subr.mxu0 0.0
        %2178 = vmatpush1.msra.mxu0 0.0
        %2179 = vmatprep.subr.mxu0 0.0
        %2180 = vmatpush1.msra.mxu0 0.0
        %2181 = vmatprep.subr.mxu0 0.0
        %2182 = vmatpush1.msra.mxu0 0.0
        %2183 = vmatprep.subr.mxu0 0.0
        %2184 = vmatpush1.msra.mxu0 0.0
        %2185 = vmatprep.subr.mxu0 0.0
        %2186 = vmatpush1.msra.mxu0 0.0
        %2187 = vmatprep.subr.mxu0 0.0
        %2188 = vmatpush1.msra.mxu0 0.0
        %2189 = vmatprep.subr.mxu0 0.0
        %2190 = vmatpush1.msra.mxu0 0.0
        %2191 = vmatprep.subr.mxu0 0.0
        %2192 = vmatpush1.msra.mxu0 0.0
        %2193 = vmatprep.subr.mxu0 0.0
        %2194 = vmatpush1.msra.mxu0 0.0
        %2195 = vmatprep.mubr.f32.mxu0 0.0
        %v2196 = vand.u32 %v1945, 4294901760
        %2197 = vmatmul.mubr.f32.gmra.mrb[0].mxu0 %v2196
        %v2198 = vpop.f32.mrb[0].mxu0
        %v2199 = vadd.f32 %v2037, %v2198
        %v2200 = vpop.f32.mrb[0].mxu0
        %v2201 = vadd.f32 %v2039, %v2200
        %2202 = vdwg.mxu0
        %v2203 = vand.u32 %v1926, 4294901760
        %v2204 = vsub.f32 %v1926, %v2203
        %2205 = vmatprep.subr.mxu0 %v2204
        %v2206 = vand.u32 %v1925, 4294901760
        %v2207 = vsub.f32 %v1925, %v2206
        %2208 = vmatpush1.msra.mxu0 %v2207
        %v2209 = vand.u32 %v1928, 4294901760
        %v2210 = vsub.f32 %v1928, %v2209
        %2211 = vmatprep.subr.mxu0 %v2210
        %v2212 = vand.u32 %v1927, 4294901760
        %v2213 = vsub.f32 %v1927, %v2212
        %2214 = vmatpush1.msra.mxu0 %v2213
        %v2215 = vand.u32 %v1930, 4294901760
        %v2216 = vsub.f32 %v1930, %v2215
        %2217 = vmatprep.subr.mxu0 %v2216
        %v2218 = vand.u32 %v1929, 4294901760
        %v2219 = vsub.f32 %v1929, %v2218
        %2220 = vmatpush1.msra.mxu0 %v2219
        %v2221 = vand.u32 %v1932, 4294901760
        %v2222 = vsub.f32 %v1932, %v2221
        %2223 = vmatprep.subr.mxu0 %v2222
        %v2224 = vand.u32 %v1931, 4294901760
        %v2225 = vsub.f32 %v1931, %v2224
        %2226 = vmatpush1.msra.mxu0 %v2225
        %v2227 = vand.u32 %v1934, 4294901760
        %v2228 = vsub.f32 %v1934, %v2227
        %2229 = vmatprep.subr.mxu0 %v2228
        %v2230 = vand.u32 %v1933, 4294901760
        %v2231 = vsub.f32 %v1933, %v2230
        %2232 = vmatpush1.msra.mxu0 %v2231
        %v2233 = vand.u32 %v1936, 4294901760
        %v2234 = vsub.f32 %v1936, %v2233
        %2235 = vmatprep.subr.mxu0 %v2234
        %v2236 = vand.u32 %v1935, 4294901760
        %v2237 = vsub.f32 %v1935, %v2236
        %2238 = vmatpush1.msra.mxu0 %v2237
        %v2239 = vand.u32 %v1938, 4294901760
        %v2240 = vsub.f32 %v1938, %v2239
        %2241 = vmatprep.subr.mxu0 %v2240
        %v2242 = vand.u32 %v1937, 4294901760
        %v2243 = vsub.f32 %v1937, %v2242
        %2244 = vmatpush1.msra.mxu0 %v2243
        %v2245 = vand.u32 %v1940, 4294901760
        %v2246 = vsub.f32 %v1940, %v2245
        %2247 = vmatprep.subr.mxu0 %v2246
        %v2248 = vand.u32 %v1939, 4294901760
        %v2249 = vsub.f32 %v1939, %v2248
        %2250 = vmatpush1.msra.mxu0 %v2249
        %v2251 = vand.u32 %v1942, 4294901760
        %v2252 = vsub.f32 %v1942, %v2251
        %2253 = vmatprep.subr.mxu0 %v2252
        %v2254 = vand.u32 %v1941, 4294901760
        %v2255 = vsub.f32 %v1941, %v2254
        %2256 = vmatpush1.msra.mxu0 %v2255
        %2257 = vmatprep.subr.mxu0 0.0
        %2258 = vmatpush1.msra.mxu0 0.0
        %2259 = vmatprep.subr.mxu0 0.0
        %2260 = vmatpush1.msra.mxu0 0.0
        %2261 = vmatprep.subr.mxu0 0.0
        %2262 = vmatpush1.msra.mxu0 0.0
        %2263 = vmatprep.subr.mxu0 0.0
        %2264 = vmatpush1.msra.mxu0 0.0
        %2265 = vmatprep.subr.mxu0 0.0
        %2266 = vmatpush1.msra.mxu0 0.0
        %2267 = vmatprep.subr.mxu0 0.0
        %2268 = vmatpush1.msra.mxu0 0.0
        %2269 = vmatprep.subr.mxu0 0.0
        %2270 = vmatpush1.msra.mxu0 0.0
        %2271 = vmatprep.subr.mxu0 0.0
        %2272 = vmatpush1.msra.mxu0 0.0
        %2273 = vmatprep.subr.mxu0 0.0
        %2274 = vmatpush1.msra.mxu0 0.0
        %2275 = vmatprep.subr.mxu0 0.0
        %2276 = vmatpush1.msra.mxu0 0.0
        %2277 = vmatprep.subr.mxu0 0.0
        %2278 = vmatpush1.msra.mxu0 0.0
        %2279 = vmatprep.subr.mxu0 0.0
        %2280 = vmatpush1.msra.mxu0 0.0
        %2281 = vmatprep.subr.mxu0 0.0
        %2282 = vmatpush1.msra.mxu0 0.0
        %2283 = vmatprep.subr.mxu0 0.0
        %2284 = vmatpush1.msra.mxu0 0.0
        %2285 = vmatprep.subr.mxu0 0.0
        %2286 = vmatpush1.msra.mxu0 0.0
        %2287 = vmatprep.subr.mxu0 0.0
        %2288 = vmatpush1.msra.mxu0 0.0
        %2289 = vmatprep.subr.mxu0 0.0
        %2290 = vmatpush1.msra.mxu0 0.0
        %2291 = vmatprep.subr.mxu0 0.0
        %2292 = vmatpush1.msra.mxu0 0.0
        %2293 = vmatprep.subr.mxu0 0.0
        %2294 = vmatpush1.msra.mxu0 0.0
        %2295 = vmatprep.subr.mxu0 0.0
        %2296 = vmatpush1.msra.mxu0 0.0
        %2297 = vmatprep.subr.mxu0 0.0
        %2298 = vmatpush1.msra.mxu0 0.0
        %2299 = vmatprep.subr.mxu0 0.0
        %2300 = vmatpush1.msra.mxu0 0.0
        %2301 = vmatprep.subr.mxu0 0.0
        %2302 = vmatpush1.msra.mxu0 0.0
        %2303 = vmatprep.mubr.f32.mxu0 0.0
        %v2304 = vand.u32 %v1945, 4294901760
        %v2305 = vsub.f32 %v1945, %v2304
        %2306 = vmatmul.mubr.f32.gmra.mrb[0].mxu0 %v2305
        %v2307 = vpop.f32.mrb[0].mxu0
        %v2308 = vadd.f32 %v2199, %v2307
        %v2309 = vpop.f32.mrb[0].mxu0
        %v2310 = vadd.f32 %v2201, %v2309
        %2311 = vdwg.mxu0
        %v2312 = vand.u32 %v1926, 4294901760
        %2313 = vmatprep.subr.mxu0 %v2312
        %v2314 = vand.u32 %v1925, 4294901760
        %2315 = vmatpush1.msra.mxu0 %v2314
        %v2316 = vand.u32 %v1928, 4294901760
        %2317 = vmatprep.subr.mxu0 %v2316
        %v2318 = vand.u32 %v1927, 4294901760
        %2319 = vmatpush1.msra.mxu0 %v2318
        %v2320 = vand.u32 %v1930, 4294901760
        %2321 = vmatprep.subr.mxu0 %v2320
        %v2322 = vand.u32 %v1929, 4294901760
        %2323 = vmatpush1.msra.mxu0 %v2322
        %v2324 = vand.u32 %v1932, 4294901760
        %2325 = vmatprep.subr.mxu0 %v2324
        %v2326 = vand.u32 %v1931, 4294901760
        %2327 = vmatpush1.msra.mxu0 %v2326
        %v2328 = vand.u32 %v1934, 4294901760
        %2329 = vmatprep.subr.mxu0 %v2328
        %v2330 = vand.u32 %v1933, 4294901760
        %2331 = vmatpush1.msra.mxu0 %v2330
        %v2332 = vand.u32 %v1936, 4294901760
        %2333 = vmatprep.subr.mxu0 %v2332
        %v2334 = vand.u32 %v1935, 4294901760
        %2335 = vmatpush1.msra.mxu0 %v2334
        %v2336 = vand.u32 %v1938, 4294901760
        %2337 = vmatprep.subr.mxu0 %v2336
        %v2338 = vand.u32 %v1937, 4294901760
        %2339 = vmatpush1.msra.mxu0 %v2338
        %v2340 = vand.u32 %v1940, 4294901760
        %2341 = vmatprep.subr.mxu0 %v2340
        %v2342 = vand.u32 %v1939, 4294901760
        %2343 = vmatpush1.msra.mxu0 %v2342
        %v2344 = vand.u32 %v1942, 4294901760
        %2345 = vmatprep.subr.mxu0 %v2344
        %v2346 = vand.u32 %v1941, 4294901760
        %2347 = vmatpush1.msra.mxu0 %v2346
        %2348 = vmatprep.subr.mxu0 0.0
        %2349 = vmatpush1.msra.mxu0 0.0
        %2350 = vmatprep.subr.mxu0 0.0
        %2351 = vmatpush1.msra.mxu0 0.0
        %2352 = vmatprep.subr.mxu0 0.0
        %2353 = vmatpush1.msra.mxu0 0.0
        %2354 = vmatprep.subr.mxu0 0.0
        %2355 = vmatpush1.msra.mxu0 0.0
        %2356 = vmatprep.subr.mxu0 0.0
        %2357 = vmatpush1.msra.mxu0 0.0
        %2358 = vmatprep.subr.mxu0 0.0
        %2359 = vmatpush1.msra.mxu0 0.0
        %2360 = vmatprep.subr.mxu0 0.0
        %2361 = vmatpush1.msra.mxu0 0.0
        %2362 = vmatprep.subr.mxu0 0.0
        %2363 = vmatpush1.msra.mxu0 0.0
        %2364 = vmatprep.subr.mxu0 0.0
        %2365 = vmatpush1.msra.mxu0 0.0
        %2366 = vmatprep.subr.mxu0 0.0
        %2367 = vmatpush1.msra.mxu0 0.0
        %2368 = vmatprep.subr.mxu0 0.0
        %2369 = vmatpush1.msra.mxu0 0.0
        %2370 = vmatprep.subr.mxu0 0.0
        %2371 = vmatpush1.msra.mxu0 0.0
        %2372 = vmatprep.subr.mxu0 0.0
        %2373 = vmatpush1.msra.mxu0 0.0
        %2374 = vmatprep.subr.mxu0 0.0
        %2375 = vmatpush1.msra.mxu0 0.0
        %2376 = vmatprep.subr.mxu0 0.0
        %2377 = vmatpush1.msra.mxu0 0.0
        %2378 = vmatprep.subr.mxu0 0.0
        %2379 = vmatpush1.msra.mxu0 0.0
        %2380 = vmatprep.subr.mxu0 0.0
        %2381 = vmatpush1.msra.mxu0 0.0
        %2382 = vmatprep.subr.mxu0 0.0
        %2383 = vmatpush1.msra.mxu0 0.0
        %2384 = vmatprep.subr.mxu0 0.0
        %2385 = vmatpush1.msra.mxu0 0.0
        %2386 = vmatprep.subr.mxu0 0.0
        %2387 = vmatpush1.msra.mxu0 0.0
        %2388 = vmatprep.subr.mxu0 0.0
        %2389 = vmatpush1.msra.mxu0 0.0
        %2390 = vmatprep.subr.mxu0 0.0
        %2391 = vmatpush1.msra.mxu0 0.0
        %2392 = vmatprep.subr.mxu0 0.0
        %2393 = vmatpush1.msra.mxu0 0.0
        %2394 = vmatprep.mubr.f32.mxu0 0.0
        %v2395 = vand.u32 %v1945, 4294901760
        %v2396 = vsub.f32 %v1945, %v2395
        %v2397 = vand.u32 %v2396, 4294901760
        %2398 = vmatmul.mubr.f32.gmra.mrb[0].mxu0 %v2397
        %v2399 = vpop.f32.mrb[0].mxu0
        %v2400 = vadd.f32 %v2308, %v2399
        %v2401 = vpop.f32.mrb[0].mxu0
        %v2402 = vadd.f32 %v2310, %v2401
        %2403 = vdwg.mxu0
        %v2404 = vand.u32 %v1926, 4294901760
        %v2405 = vsub.f32 %v1926, %v2404
        %v2406 = vand.u32 %v2405, 4294901760
        %2407 = vmatprep.subr.mxu0 %v2406
        %v2408 = vand.u32 %v1925, 4294901760
        %v2409 = vsub.f32 %v1925, %v2408
        %v2410 = vand.u32 %v2409, 4294901760
        %2411 = vmatpush1.msra.mxu0 %v2410
        %v2412 = vand.u32 %v1928, 4294901760
        %v2413 = vsub.f32 %v1928, %v2412
        %v2414 = vand.u32 %v2413, 4294901760
        %2415 = vmatprep.subr.mxu0 %v2414
        %v2416 = vand.u32 %v1927, 4294901760
        %v2417 = vsub.f32 %v1927, %v2416
        %v2418 = vand.u32 %v2417, 4294901760
        %2419 = vmatpush1.msra.mxu0 %v2418
        %v2420 = vand.u32 %v1930, 4294901760
        %v2421 = vsub.f32 %v1930, %v2420
        %v2422 = vand.u32 %v2421, 4294901760
        %2423 = vmatprep.subr.mxu0 %v2422
        %v2424 = vand.u32 %v1929, 4294901760
        %v2425 = vsub.f32 %v1929, %v2424
        %v2426 = vand.u32 %v2425, 4294901760
        %2427 = vmatpush1.msra.mxu0 %v2426
        %v2428 = vand.u32 %v1932, 4294901760
        %v2429 = vsub.f32 %v1932, %v2428
        %v2430 = vand.u32 %v2429, 4294901760
        %2431 = vmatprep.subr.mxu0 %v2430
        %v2432 = vand.u32 %v1931, 4294901760
        %v2433 = vsub.f32 %v1931, %v2432
        %v2434 = vand.u32 %v2433, 4294901760
        %2435 = vmatpush1.msra.mxu0 %v2434
        %v2436 = vand.u32 %v1934, 4294901760
        %v2437 = vsub.f32 %v1934, %v2436
        %v2438 = vand.u32 %v2437, 4294901760
        %2439 = vmatprep.subr.mxu0 %v2438
        %v2440 = vand.u32 %v1933, 4294901760
        %v2441 = vsub.f32 %v1933, %v2440
        %v2442 = vand.u32 %v2441, 4294901760
        %2443 = vmatpush1.msra.mxu0 %v2442
        %v2444 = vand.u32 %v1936, 4294901760
        %v2445 = vsub.f32 %v1936, %v2444
        %v2446 = vand.u32 %v2445, 4294901760
        %2447 = vmatprep.subr.mxu0 %v2446
        %v2448 = vand.u32 %v1935, 4294901760
        %v2449 = vsub.f32 %v1935, %v2448
        %v2450 = vand.u32 %v2449, 4294901760
        %2451 = vmatpush1.msra.mxu0 %v2450
        %v2452 = vand.u32 %v1938, 4294901760
        %v2453 = vsub.f32 %v1938, %v2452
        %v2454 = vand.u32 %v2453, 4294901760
        %2455 = vmatprep.subr.mxu0 %v2454
        %v2456 = vand.u32 %v1937, 4294901760
        %v2457 = vsub.f32 %v1937, %v2456
        %v2458 = vand.u32 %v2457, 4294901760
        %2459 = vmatpush1.msra.mxu0 %v2458
        %v2460 = vand.u32 %v1940, 4294901760
        %v2461 = vsub.f32 %v1940, %v2460
        %v2462 = vand.u32 %v2461, 4294901760
        %2463 = vmatprep.subr.mxu0 %v2462
        %v2464 = vand.u32 %v1939, 4294901760
        %v2465 = vsub.f32 %v1939, %v2464
        %v2466 = vand.u32 %v2465, 4294901760
        %2467 = vmatpush1.msra.mxu0 %v2466
        %v2468 = vand.u32 %v1942, 4294901760
        %v2469 = vsub.f32 %v1942, %v2468
        %v2470 = vand.u32 %v2469, 4294901760
        %2471 = vmatprep.subr.mxu0 %v2470
        %v2472 = vand.u32 %v1941, 4294901760
        %v2473 = vsub.f32 %v1941, %v2472
        %v2474 = vand.u32 %v2473, 4294901760
        %2475 = vmatpush1.msra.mxu0 %v2474
        %2476 = vmatprep.subr.mxu0 0.0
        %2477 = vmatpush1.msra.mxu0 0.0
        %2478 = vmatprep.subr.mxu0 0.0
        %2479 = vmatpush1.msra.mxu0 0.0
        %2480 = vmatprep.subr.mxu0 0.0
        %2481 = vmatpush1.msra.mxu0 0.0
        %2482 = vmatprep.subr.mxu0 0.0
        %2483 = vmatpush1.msra.mxu0 0.0
        %2484 = vmatprep.subr.mxu0 0.0
        %2485 = vmatpush1.msra.mxu0 0.0
        %2486 = vmatprep.subr.mxu0 0.0
        %2487 = vmatpush1.msra.mxu0 0.0
        %2488 = vmatprep.subr.mxu0 0.0
        %2489 = vmatpush1.msra.mxu0 0.0
        %2490 = vmatprep.subr.mxu0 0.0
        %2491 = vmatpush1.msra.mxu0 0.0
        %2492 = vmatprep.subr.mxu0 0.0
        %2493 = vmatpush1.msra.mxu0 0.0
        %2494 = vmatprep.subr.mxu0 0.0
        %2495 = vmatpush1.msra.mxu0 0.0
        %2496 = vmatprep.subr.mxu0 0.0
        %2497 = vmatpush1.msra.mxu0 0.0
        %2498 = vmatprep.subr.mxu0 0.0
        %2499 = vmatpush1.msra.mxu0 0.0
        %2500 = vmatprep.subr.mxu0 0.0
        %2501 = vmatpush1.msra.mxu0 0.0
        %2502 = vmatprep.subr.mxu0 0.0
        %2503 = vmatpush1.msra.mxu0 0.0
        %2504 = vmatprep.subr.mxu0 0.0
        %2505 = vmatpush1.msra.mxu0 0.0
        %2506 = vmatprep.subr.mxu0 0.0
        %2507 = vmatpush1.msra.mxu0 0.0
        %2508 = vmatprep.subr.mxu0 0.0
        %2509 = vmatpush1.msra.mxu0 0.0
        %2510 = vmatprep.subr.mxu0 0.0
        %2511 = vmatpush1.msra.mxu0 0.0
        %2512 = vmatprep.subr.mxu0 0.0
        %2513 = vmatpush1.msra.mxu0 0.0
        %2514 = vmatprep.subr.mxu0 0.0
        %2515 = vmatpush1.msra.mxu0 0.0
        %2516 = vmatprep.subr.mxu0 0.0
        %2517 = vmatpush1.msra.mxu0 0.0
        %2518 = vmatprep.subr.mxu0 0.0
        %2519 = vmatpush1.msra.mxu0 0.0
        %2520 = vmatprep.subr.mxu0 0.0
        %2521 = vmatpush1.msra.mxu0 0.0
        %2522 = vmatprep.mubr.f32.mxu0 0.0
        %v2523 = vand.u32 %v1945, 4294901760
        %2524 = vmatmul.mubr.f32.gmra.mrb[0].mxu0 %v2523
        %v2525 = vpop.f32.mrb[0].mxu0
        %v2526 = vadd.f32 %v2400, %v2525
        %v2527 = vpop.f32.mrb[0].mxu0
        %v2528 = vadd.f32 %v2402, %v2527
        %2529 = vdwg.mxu0
        %v2530 = vand.u32 %v1926, 4294901760
        %2531 = vmatprep.subr.mxu0 %v2530
        %v2532 = vand.u32 %v1925, 4294901760
        %2533 = vmatpush1.msra.mxu0 %v2532
        %v2534 = vand.u32 %v1928, 4294901760
        %2535 = vmatprep.subr.mxu0 %v2534
        %v2536 = vand.u32 %v1927, 4294901760
        %2537 = vmatpush1.msra.mxu0 %v2536
        %v2538 = vand.u32 %v1930, 4294901760
        %2539 = vmatprep.subr.mxu0 %v2538
        %v2540 = vand.u32 %v1929, 4294901760
        %2541 = vmatpush1.msra.mxu0 %v2540
        %v2542 = vand.u32 %v1932, 4294901760
        %2543 = vmatprep.subr.mxu0 %v2542
        %v2544 = vand.u32 %v1931, 4294901760
        %2545 = vmatpush1.msra.mxu0 %v2544
        %v2546 = vand.u32 %v1934, 4294901760
        %2547 = vmatprep.subr.mxu0 %v2546
        %v2548 = vand.u32 %v1933, 4294901760
        %2549 = vmatpush1.msra.mxu0 %v2548
        %v2550 = vand.u32 %v1936, 4294901760
        %2551 = vmatprep.subr.mxu0 %v2550
        %v2552 = vand.u32 %v1935, 4294901760
        %2553 = vmatpush1.msra.mxu0 %v2552
        %v2554 = vand.u32 %v1938, 4294901760
        %2555 = vmatprep.subr.mxu0 %v2554
        %v2556 = vand.u32 %v1937, 4294901760
        %2557 = vmatpush1.msra.mxu0 %v2556
        %v2558 = vand.u32 %v1940, 4294901760
        %2559 = vmatprep.subr.mxu0 %v2558
        %v2560 = vand.u32 %v1939, 4294901760
        %2561 = vmatpush1.msra.mxu0 %v2560
        %v2562 = vand.u32 %v1942, 4294901760
        %2563 = vmatprep.subr.mxu0 %v2562
        %v2564 = vand.u32 %v1941, 4294901760
        %2565 = vmatpush1.msra.mxu0 %v2564
        %2566 = vmatprep.subr.mxu0 0.0
        %2567 = vmatpush1.msra.mxu0 0.0
        %2568 = vmatprep.subr.mxu0 0.0
        %2569 = vmatpush1.msra.mxu0 0.0
        %2570 = vmatprep.subr.mxu0 0.0
        %2571 = vmatpush1.msra.mxu0 0.0
        %2572 = vmatprep.subr.mxu0 0.0
        %2573 = vmatpush1.msra.mxu0 0.0
        %2574 = vmatprep.subr.mxu0 0.0
        %2575 = vmatpush1.msra.mxu0 0.0
        %2576 = vmatprep.subr.mxu0 0.0
        %2577 = vmatpush1.msra.mxu0 0.0
        %2578 = vmatprep.subr.mxu0 0.0
        %2579 = vmatpush1.msra.mxu0 0.0
        %2580 = vmatprep.subr.mxu0 0.0
        %2581 = vmatpush1.msra.mxu0 0.0
        %2582 = vmatprep.subr.mxu0 0.0
        %2583 = vmatpush1.msra.mxu0 0.0
        %2584 = vmatprep.subr.mxu0 0.0
        %2585 = vmatpush1.msra.mxu0 0.0
        %2586 = vmatprep.subr.mxu0 0.0
        %2587 = vmatpush1.msra.mxu0 0.0
        %2588 = vmatprep.subr.mxu0 0.0
        %2589 = vmatpush1.msra.mxu0 0.0
        %2590 = vmatprep.subr.mxu0 0.0
        %2591 = vmatpush1.msra.mxu0 0.0
        %2592 = vmatprep.subr.mxu0 0.0
        %2593 = vmatpush1.msra.mxu0 0.0
        %2594 = vmatprep.subr.mxu0 0.0
        %2595 = vmatpush1.msra.mxu0 0.0
        %2596 = vmatprep.subr.mxu0 0.0
        %2597 = vmatpush1.msra.mxu0 0.0
        %2598 = vmatprep.subr.mxu0 0.0
        %2599 = vmatpush1.msra.mxu0 0.0
        %2600 = vmatprep.subr.mxu0 0.0
        %2601 = vmatpush1.msra.mxu0 0.0
        %2602 = vmatprep.subr.mxu0 0.0
        %2603 = vmatpush1.msra.mxu0 0.0
        %2604 = vmatprep.subr.mxu0 0.0
        %2605 = vmatpush1.msra.mxu0 0.0
        %2606 = vmatprep.subr.mxu0 0.0
        %2607 = vmatpush1.msra.mxu0 0.0
        %2608 = vmatprep.subr.mxu0 0.0
        %2609 = vmatpush1.msra.mxu0 0.0
        %2610 = vmatprep.subr.mxu0 0.0
        %2611 = vmatpush1.msra.mxu0 0.0
        %2612 = vmatprep.mubr.f32.mxu0 0.0
        %v2613 = vand.u32 %v1945, 4294901760
        %2614 = vmatmul.mubr.f32.gmra.mrb[0].mxu0 %v2613
        %v2615 = vpop.f32.mrb[0].mxu0
        %v2616 = vadd.f32 %v2526, %v2615
        %v2617 = vpop.f32.mrb[0].mxu0
        %v2618 = vadd.f32 %v2528, %v2617
        %2619 = vdwg.mxu0
        %v2620 = vrot.slane %v2616, 4
        %v2621 = vmax.f32 %v2616, %v2620
        %v2622 = vrot.slane %v2621, 2
        %v2623 = vmax.f32 %v2621, %v2622
        %v2624 = vrot.slane %v2623, 1
        %v2625 = vmax.f32 %v2623, %v2624
        %v2626 = vrot.slane %v2618, 4
        %v2627 = vmax.f32 %v2618, %v2626
        %v2628 = vrot.slane %v2627, 2
        %v2629 = vmax.f32 %v2627, %v2628
        %v2630 = vrot.slane %v2629, 1
        %v2631 = vmax.f32 %v2629, %v2630
        %v2632 = vrot.slane %v2616, 4
        %v2633 = vadd.f32 %v2616, %v2632
        %v2634 = vrot.slane %v2633, 2
        %v2635 = vadd.f32 %v2633, %v2634
        %v2636 = vrot.slane %v2635, 1
        %v2637 = vadd.f32 %v2635, %v2636
        %v2638 = vrot.slane %v2618, 4
        %v2639 = vadd.f32 %v2618, %v2638
        %v2640 = vrot.slane %v2639, 2
        %v2641 = vadd.f32 %v2639, %v2640
        %v2642 = vrot.slane %v2641, 1
        %v2643 = vadd.f32 %v2641, %v2642
        %v2644 = vrcp.pop 8.0
        %v2645 = vmul.f32 %v2637, %v2644
        %v2646 = vmul.f32 %v2643, %v2644
        %s2647 = sld [smem:[#allocation4]]
        %2649 = vrot.lane.b32.xlu0 %v2631, 34
        %v2650 = vpop.permute.xlu0 %2649
        %2653 = vrot.lane.b32.xlu0 %v2625, 34
        %v2654 = vpop.permute.xlu0 %2653
        %vm2655 = vcmask 277504
        %v2656 = vsel %vm2655, %v2654, %v2650
        %v2658 = vsel %vm2655, %v2650, %v2654
        %v2660 = vcombine.low %v2658, %v2656
        %v2662 = vunpack.c.l.s4 1966171168
        %v2663 = vunpack.c.0.s8 %v2662
        %v2664 = vlaneseq
        %v2665 = vshrl.u32 %v2664, 7
        %v2666 = vsub.s32 %v2663, %v2665
        %v2667 = vrot.slane %v2660, %v2666
        %v2669 = vunpack.c.l.s4 1966171168
        %v2670 = vunpack.c.0.s8 %v2669
        %v2671 = vlaneseq
        %v2672 = vshrl.u32 %v2671, 7
        %v2673 = vsub.s32 %v2670, %v2672
        %v2674 = vrot.slane %v2667, %v2673
        %v2676 = vsel %vm438, %v2674, 0.0
        %v2677 = vstv %s2647
        %v2678 = vmul.f32 %v2677, %v2676
        %v2679 = vadd.f32 %v2678, 0.0
        %s2680 = sld [smem:[#allocation4 + $0x19]]
        %2682 = vrot.lane.b32.xlu0 %v2646, 34
        %v2683 = vpop.permute.xlu0 %2682
        %2686 = vrot.lane.b32.xlu0 %v2645, 34
        %v2687 = vpop.permute.xlu0 %2686
        %v2688 = vsel %vm2655, %v2687, %v2683
        %v2690 = vsel %vm2655, %v2683, %v2687
        %v2692 = vcombine.low %v2690, %v2688
        %v2694 = vunpack.c.l.s4 1966171168
        %v2695 = vunpack.c.0.s8 %v2694
        %v2696 = vlaneseq
        %v2697 = vshrl.u32 %v2696, 7
        %v2698 = vsub.s32 %v2695, %v2697
        %v2699 = vrot.slane %v2692, %v2698
        %v2701 = vunpack.c.l.s4 1966171168
        %v2702 = vunpack.c.0.s8 %v2701
        %v2703 = vlaneseq
        %v2704 = vshrl.u32 %v2703, 7
        %v2705 = vsub.s32 %v2702, %v2704
        %v2706 = vrot.slane %v2699, %v2705
        %v2708 = vsel %vm438, %v2706, 0.0
        %v2709 = vstv %s2680
        %v2710 = vmul.f32 %v2709, %v2708
        %v2711 = vadd.f32 %v2679, %v2710
        %s2712 = sld [smem:[#allocation4 + $0x1]]
        %2713 = vrot.lane.b32.xlu0 %v2631, 33
        %v2714 = vpop.permute.xlu0 %2713
        %2716 = vrot.lane.b32.xlu0 %v2625, 33
        %v2717 = vpop.permute.xlu0 %2716
        %vm2718 = vcmask 269312
        %v2719 = vsel %vm2718, %v2717, %v2714
        %v2721 = vsel %vm2718, %v2714, %v2717
        %v2723 = vcombine.low %v2721, %v2719
        %v2725 = vunpack.c.l.s4 1966171168
        %v2726 = vunpack.c.0.s8 %v2725
        %v2727 = vlaneseq
        %v2728 = vshrl.u32 %v2727, 7
        %v2729 = vsub.s32 %v2726, %v2728
        %v2730 = vrot.slane %v2723, %v2729
        %v2732 = vunpack.c.l.s4 1966171168
        %v2733 = vunpack.c.0.s8 %v2732
        %v2734 = vlaneseq
        %v2735 = vshrl.u32 %v2734, 7
        %v2736 = vsub.s32 %v2733, %v2735
        %v2737 = vrot.slane %v2730, %v2736
        %v2739 = vsel %vm440, %v2737, 0.0
        %v2740 = vstv %s2712
        %v2741 = vmul.f32 %v2740, %v2739
        %v2742 = vadd.f32 %v2711, %v2741
        %s2743 = sld [smem:[#allocation4 + $0x1a]]
        %2744 = vrot.lane.b32.xlu0 %v2646, 33
        %v2745 = vpop.permute.xlu0 %2744
        %2747 = vrot.lane.b32.xlu0 %v2645, 33
        %v2748 = vpop.permute.xlu0 %2747
        %v2749 = vsel %vm2718, %v2748, %v2745
        %v2751 = vsel %vm2718, %v2745, %v2748
        %v2753 = vcombine.low %v2751, %v2749
        %v2755 = vunpack.c.l.s4 1966171168
        %v2756 = vunpack.c.0.s8 %v2755
        %v2757 = vlaneseq
        %v2758 = vshrl.u32 %v2757, 7
        %v2759 = vsub.s32 %v2756, %v2758
        %v2760 = vrot.slane %v2753, %v2759
        %v2762 = vunpack.c.l.s4 1966171168
        %v2763 = vunpack.c.0.s8 %v2762
        %v2764 = vlaneseq
        %v2765 = vshrl.u32 %v2764, 7
        %v2766 = vsub.s32 %v2763, %v2765
        %v2767 = vrot.slane %v2760, %v2766
        %v2769 = vsel %vm440, %v2767, 0.0
        %v2770 = vstv %s2743
        %v2771 = vmul.f32 %v2770, %v2769
        %v2772 = vadd.f32 %v2742, %v2771
        %s2773 = sld [smem:[#allocation4 + $0x2]]
        %2774 = vrot.lane.b32.xlu0 %v2631, 32
        %v2775 = vpop.permute.xlu0 %2774
        %2777 = vrot.lane.b32.xlu0 %v2625, 32
        %v2778 = vpop.permute.xlu0 %2777
        %vm2779 = vcmask 261120
        %v2780 = vsel %vm2779, %v2778, %v2775
        %v2782 = vsel %vm2779, %v2775, %v2778
        %v2784 = vcombine.low %v2782, %v2780
        %v2786 = vunpack.c.l.s4 1966171168
        %v2787 = vunpack.c.0.s8 %v2786
        %v2788 = vlaneseq
        %v2789 = vshrl.u32 %v2788, 7
        %v2790 = vsub.s32 %v2787, %v2789
        %v2791 = vrot.slane %v2784, %v2790
        %v2793 = vunpack.c.l.s4 1966171168
        %v2794 = vunpack.c.0.s8 %v2793
        %v2795 = vlaneseq
        %v2796 = vshrl.u32 %v2795, 7
        %v2797 = vsub.s32 %v2794, %v2796
        %v2798 = vrot.slane %v2791, %v2797
        %v2800 = vsel %vm442, %v2798, 0.0
        %v2801 = vstv %s2773
        %v2802 = vmul.f32 %v2801, %v2800
        %v2803 = vadd.f32 %v2772, %v2802
        %s2804 = sld [smem:[#allocation4 + $0x1b]]
        %2805 = vrot.lane.b32.xlu0 %v2646, 32
        %v2806 = vpop.permute.xlu0 %2805
        %2808 = vrot.lane.b32.xlu0 %v2645, 32
        %v2809 = vpop.permute.xlu0 %2808
        %v2810 = vsel %vm2779, %v2809, %v2806
        %v2812 = vsel %vm2779, %v2806, %v2809
        %v2814 = vcombine.low %v2812, %v2810
        %v2816 = vunpack.c.l.s4 1966171168
        %v2817 = vunpack.c.0.s8 %v2816
        %v2818 = vlaneseq
        %v2819 = vshrl.u32 %v2818, 7
        %v2820 = vsub.s32 %v2817, %v2819
        %v2821 = vrot.slane %v2814, %v2820
        %v2823 = vunpack.c.l.s4 1966171168
        %v2824 = vunpack.c.0.s8 %v2823
        %v2825 = vlaneseq
        %v2826 = vshrl.u32 %v2825, 7
        %v2827 = vsub.s32 %v2824, %v2826
        %v2828 = vrot.slane %v2821, %v2827
        %v2830 = vsel %vm442, %v2828, 0.0
        %v2831 = vstv %s2804
        %v2832 = vmul.f32 %v2831, %v2830
        %v2833 = vadd.f32 %v2803, %v2832
        %s2834 = sld [smem:[#allocation4 + $0x3]]
        %2835 = vrot.lane.b32.xlu0 %v2631, 31
        %v2836 = vpop.permute.xlu0 %2835
        %2838 = vrot.lane.b32.xlu0 %v2625, 31
        %v2839 = vpop.permute.xlu0 %2838
        %vm2840 = vcmask 252928
        %v2841 = vsel %vm2840, %v2839, %v2836
        %v2843 = vsel %vm2840, %v2836, %v2839
        %v2845 = vcombine.low %v2843, %v2841
        %v2847 = vunpack.c.l.s4 1966171168
        %v2848 = vunpack.c.0.s8 %v2847
        %v2849 = vlaneseq
        %v2850 = vshrl.u32 %v2849, 7
        %v2851 = vsub.s32 %v2848, %v2850
        %v2852 = vrot.slane %v2845, %v2851
        %v2854 = vunpack.c.l.s4 1966171168
        %v2855 = vunpack.c.0.s8 %v2854
        %v2856 = vlaneseq
        %v2857 = vshrl.u32 %v2856, 7
        %v2858 = vsub.s32 %v2855, %v2857
        %v2859 = vrot.slane %v2852, %v2858
        %v2861 = vsel %vm444, %v2859, 0.0
        %v2862 = vstv %s2834
        %v2863 = vmul.f32 %v2862, %v2861
        %v2864 = vadd.f32 %v2833, %v2863
        %s2865 = sld [smem:[#allocation4 + $0x1c]]
        %2866 = vrot.lane.b32.xlu0 %v2646, 31
        %v2867 = vpop.permute.xlu0 %2866
        %2869 = vrot.lane.b32.xlu0 %v2645, 31
        %v2870 = vpop.permute.xlu0 %2869
        %v2871 = vsel %vm2840, %v2870, %v2867
        %v2873 = vsel %vm2840, %v2867, %v2870
        %v2875 = vcombine.low %v2873, %v2871
        %v2877 = vunpack.c.l.s4 1966171168
        %v2878 = vunpack.c.0.s8 %v2877
        %v2879 = vlaneseq
        %v2880 = vshrl.u32 %v2879, 7
        %v2881 = vsub.s32 %v2878, %v2880
        %v2882 = vrot.slane %v2875, %v2881
        %v2884 = vunpack.c.l.s4 1966171168
        %v2885 = vunpack.c.0.s8 %v2884
        %v2886 = vlaneseq
        %v2887 = vshrl.u32 %v2886, 7
        %v2888 = vsub.s32 %v2885, %v2887
        %v2889 = vrot.slane %v2882, %v2888
        %v2891 = vsel %vm444, %v2889, 0.0
        %v2892 = vstv %s2865
        %v2893 = vmul.f32 %v2892, %v2891
        %v2894 = vadd.f32 %v2864, %v2893
        %s2895 = sld [smem:[#allocation4 + $0x4]]
        %2896 = vrot.lane.b32.xlu0 %v2631, 30
        %v2897 = vpop.permute.xlu0 %2896
        %2899 = vrot.lane.b32.xlu0 %v2625, 30
        %v2900 = vpop.permute.xlu0 %2899
        %vm2901 = vcmask 244736
        %v2902 = vsel %vm2901, %v2900, %v2897
        %v2904 = vsel %vm2901, %v2897, %v2900
        %v2906 = vcombine.low %v2904, %v2902
        %v2908 = vunpack.c.l.s4 1966171168
        %v2909 = vunpack.c.0.s8 %v2908
        %v2910 = vlaneseq
        %v2911 = vshrl.u32 %v2910, 7
        %v2912 = vsub.s32 %v2909, %v2911
        %v2913 = vrot.slane %v2906, %v2912
        %v2915 = vunpack.c.l.s4 1966171168
        %v2916 = vunpack.c.0.s8 %v2915
        %v2917 = vlaneseq
        %v2918 = vshrl.u32 %v2917, 7
        %v2919 = vsub.s32 %v2916, %v2918
        %v2920 = vrot.slane %v2913, %v2919
        %v2922 = vsel %vm448, %v2920, 0.0
        %v2923 = vstv %s2895
        %v2924 = vmul.f32 %v2923, %v2922
        %v2925 = vadd.f32 %v2894, %v2924
        %s2926 = sld [smem:[#allocation4 + $0x1d]]
        %2927 = vrot.lane.b32.xlu0 %v2646, 30
        %v2928 = vpop.permute.xlu0 %2927
        %2930 = vrot.lane.b32.xlu0 %v2645, 30
        %v2931 = vpop.permute.xlu0 %2930
        %v2932 = vsel %vm2901, %v2931, %v2928
        %v2934 = vsel %vm2901, %v2928, %v2931
        %v2936 = vcombine.low %v2934, %v2932
        %v2938 = vunpack.c.l.s4 1966171168
        %v2939 = vunpack.c.0.s8 %v2938
        %v2940 = vlaneseq
        %v2941 = vshrl.u32 %v2940, 7
        %v2942 = vsub.s32 %v2939, %v2941
        %v2943 = vrot.slane %v2936, %v2942
        %v2945 = vunpack.c.l.s4 1966171168
        %v2946 = vunpack.c.0.s8 %v2945
        %v2947 = vlaneseq
        %v2948 = vshrl.u32 %v2947, 7
        %v2949 = vsub.s32 %v2946, %v2948
        %v2950 = vrot.slane %v2943, %v2949
        %v2952 = vsel %vm448, %v2950, 0.0
        %v2953 = vstv %s2926
        %v2954 = vmul.f32 %v2953, %v2952
        %v2955 = vadd.f32 %v2925, %v2954
        %s2956 = sld [smem:[#allocation4 + $0x5]]
        %2957 = vrot.lane.b32.xlu0 %v2631, 18
        %v2958 = vpop.permute.xlu0 %2957
        %2960 = vrot.lane.b32.xlu0 %v2625, 18
        %v2961 = vpop.permute.xlu0 %2960
        %vm2962 = vcmask 146432
        %v2963 = vsel %vm2962, %v2961, %v2958
        %v2965 = vsel %vm2962, %v2958, %v2961
        %v2967 = vcombine.low %v2965, %v2963
        %v2969 = vunpack.c.l.s4 1966171168
        %v2970 = vunpack.c.0.s8 %v2969
        %v2971 = vlaneseq
        %v2972 = vshrl.u32 %v2971, 7
        %v2973 = vsub.s32 %v2970, %v2972
        %v2974 = vrot.slane %v2967, %v2973
        %v2976 = vunpack.c.l.s4 1966171168
        %v2977 = vunpack.c.0.s8 %v2976
        %v2978 = vlaneseq
        %v2979 = vshrl.u32 %v2978, 7
        %v2980 = vsub.s32 %v2977, %v2979
        %v2981 = vrot.slane %v2974, %v2980
        %v2983 = vsel %vm450, %v2981, 0.0
        %v2984 = vstv %s2956
        %v2985 = vmul.f32 %v2984, %v2983
        %v2986 = vadd.f32 %v2955, %v2985
        %s2987 = sld [smem:[#allocation4 + $0x1e]]
        %2988 = vrot.lane.b32.xlu0 %v2646, 18
        %v2989 = vpop.permute.xlu0 %2988
        %2991 = vrot.lane.b32.xlu0 %v2645, 18
        %v2992 = vpop.permute.xlu0 %2991
        %v2993 = vsel %vm2962, %v2992, %v2989
        %v2995 = vsel %vm2962, %v2989, %v2992
        %v2997 = vcombine.low %v2995, %v2993
        %v2999 = vunpack.c.l.s4 1966171168
        %v3000 = vunpack.c.0.s8 %v2999
        %v3001 = vlaneseq
        %v3002 = vshrl.u32 %v3001, 7
        %v3003 = vsub.s32 %v3000, %v3002
        %v3004 = vrot.slane %v2997, %v3003
        %v3006 = vunpack.c.l.s4 1966171168
        %v3007 = vunpack.c.0.s8 %v3006
        %v3008 = vlaneseq
        %v3009 = vshrl.u32 %v3008, 7
        %v3010 = vsub.s32 %v3007, %v3009
        %v3011 = vrot.slane %v3004, %v3010
        %v3013 = vsel %vm450, %v3011, 0.0
        %v3014 = vstv %s2987
        %v3015 = vmul.f32 %v3014, %v3013
        %v3016 = vadd.f32 %v2986, %v3015
        %s3017 = sld [smem:[#allocation4 + $0x6]]
        %3018 = vrot.lane.b32.xlu0 %v2631, 17
        %v3019 = vpop.permute.xlu0 %3018
        %3021 = vrot.lane.b32.xlu0 %v2625, 17
        %v3022 = vpop.permute.xlu0 %3021
        %v3023 = vsel %vm987, %v3022, %v3019
        %v3025 = vsel %vm987, %v3019, %v3022
        %v3027 = vcombine.low %v3025, %v3023
        %v3029 = vunpack.c.l.s4 1966171168
        %v3030 = vunpack.c.0.s8 %v3029
        %v3031 = vlaneseq
        %v3032 = vshrl.u32 %v3031, 7
        %v3033 = vsub.s32 %v3030, %v3032
        %v3034 = vrot.slane %v3027, %v3033
        %v3036 = vunpack.c.l.s4 1966171168
        %v3037 = vunpack.c.0.s8 %v3036
        %v3038 = vlaneseq
        %v3039 = vshrl.u32 %v3038, 7
        %v3040 = vsub.s32 %v3037, %v3039
        %v3041 = vrot.slane %v3034, %v3040
        %v3043 = vsel %vm407, %v3041, 0.0
        %v3044 = vstv %s3017
        %v3045 = vmul.f32 %v3044, %v3043
        %v3046 = vadd.f32 %v3016, %v3045
        %s3047 = sld [smem:[#allocation4 + $0x1f]]
        %3048 = vrot.lane.b32.xlu0 %v2646, 17
        %v3049 = vpop.permute.xlu0 %3048
        %3051 = vrot.lane.b32.xlu0 %v2645, 17
        %v3052 = vpop.permute.xlu0 %3051
        %v3053 = vsel %vm987, %v3052, %v3049
        %v3055 = vsel %vm987, %v3049, %v3052
        %v3057 = vcombine.low %v3055, %v3053
        %v3059 = vunpack.c.l.s4 1966171168
        %v3060 = vunpack.c.0.s8 %v3059
        %v3061 = vlaneseq
        %v3062 = vshrl.u32 %v3061, 7
        %v3063 = vsub.s32 %v3060, %v3062
        %v3064 = vrot.slane %v3057, %v3063
        %v3066 = vunpack.c.l.s4 1966171168
        %v3067 = vunpack.c.0.s8 %v3066
        %v3068 = vlaneseq
        %v3069 = vshrl.u32 %v3068, 7
        %v3070 = vsub.s32 %v3067, %v3069
        %v3071 = vrot.slane %v3064, %v3070
        %v3073 = vsel %vm407, %v3071, 0.0
        %v3074 = vstv %s3047
        %v3075 = vmul.f32 %v3074, %v3073
        %v3076 = vadd.f32 %v3046, %v3075
        %s3077 = sld [smem:[#allocation4 + $0x7]]
        %3078 = vrot.lane.b32.xlu0 %v2631, 16
        %v3079 = vpop.permute.xlu0 %3078
        %3081 = vrot.lane.b32.xlu0 %v2625, 16
        %v3082 = vpop.permute.xlu0 %3081
        %v3083 = vsel %vm1012, %v3082, %v3079
        %v3085 = vsel %vm1012, %v3079, %v3082
        %v3087 = vcombine.low %v3085, %v3083
        %v3089 = vunpack.c.l.s4 1966171168
        %v3090 = vunpack.c.0.s8 %v3089
        %v3091 = vlaneseq
        %v3092 = vshrl.u32 %v3091, 7
        %v3093 = vsub.s32 %v3090, %v3092
        %v3094 = vrot.slane %v3087, %v3093
        %v3096 = vunpack.c.l.s4 1966171168
        %v3097 = vunpack.c.0.s8 %v3096
        %v3098 = vlaneseq
        %v3099 = vshrl.u32 %v3098, 7
        %v3100 = vsub.s32 %v3097, %v3099
        %v3101 = vrot.slane %v3094, %v3100
        %v3103 = vsel %vm411, %v3101, 0.0
        %v3104 = vstv %s3077
        %v3105 = vmul.f32 %v3104, %v3103
        %v3106 = vadd.f32 %v3076, %v3105
        %s3107 = sld [smem:[#allocation4 + $0x20]]
        %3108 = vrot.lane.b32.xlu0 %v2646, 16
        %v3109 = vpop.permute.xlu0 %3108
        %3111 = vrot.lane.b32.xlu0 %v2645, 16
        %v3112 = vpop.permute.xlu0 %3111
        %v3113 = vsel %vm1012, %v3112, %v3109
        %v3115 = vsel %vm1012, %v3109, %v3112
        %v3117 = vcombine.low %v3115, %v3113
        %v3119 = vunpack.c.l.s4 1966171168
        %v3120 = vunpack.c.0.s8 %v3119
        %v3121 = vlaneseq
        %v3122 = vshrl.u32 %v3121, 7
        %v3123 = vsub.s32 %v3120, %v3122
        %v3124 = vrot.slane %v3117, %v3123
        %v3126 = vunpack.c.l.s4 1966171168
        %v3127 = vunpack.c.0.s8 %v3126
        %v3128 = vlaneseq
        %v3129 = vshrl.u32 %v3128, 7
        %v3130 = vsub.s32 %v3127, %v3129
        %v3131 = vrot.slane %v3124, %v3130
        %v3133 = vsel %vm411, %v3131, 0.0
        %v3134 = vstv %s3107
        %v3135 = vmul.f32 %v3134, %v3133
        %v3136 = vadd.f32 %v3106, %v3135
        %s3137 = sld [smem:[#allocation4 + $0x8]]
        %3138 = vrot.lane.b32.xlu0 %v2631, 15
        %v3139 = vpop.permute.xlu0 %3138
        %3141 = vrot.lane.b32.xlu0 %v2625, 15
        %v3142 = vpop.permute.xlu0 %3141
        %v3143 = vsel %vm1043, %v3142, %v3139
        %v3145 = vsel %vm1043, %v3139, %v3142
        %v3147 = vcombine.low %v3145, %v3143
        %v3149 = vunpack.c.l.s4 1966171168
        %v3150 = vunpack.c.0.s8 %v3149
        %v3151 = vlaneseq
        %v3152 = vshrl.u32 %v3151, 7
        %v3153 = vsub.s32 %v3150, %v3152
        %v3154 = vrot.slane %v3147, %v3153
        %v3156 = vunpack.c.l.s4 1966171168
        %v3157 = vunpack.c.0.s8 %v3156
        %v3158 = vlaneseq
        %v3159 = vshrl.u32 %v3158, 7
        %v3160 = vsub.s32 %v3157, %v3159
        %v3161 = vrot.slane %v3154, %v3160
        %v3163 = vsel %vm415, %v3161, 0.0
        %v3164 = vstv %s3137
        %v3165 = vmul.f32 %v3164, %v3163
        %v3166 = vadd.f32 %v3136, %v3165
        %s3167 = sld [smem:[#allocation4 + $0x21]]
        %3168 = vrot.lane.b32.xlu0 %v2646, 15
        %v3169 = vpop.permute.xlu0 %3168
        %3171 = vrot.lane.b32.xlu0 %v2645, 15
        %v3172 = vpop.permute.xlu0 %3171
        %v3173 = vsel %vm1043, %v3172, %v3169
        %v3175 = vsel %vm1043, %v3169, %v3172
        %v3177 = vcombine.low %v3175, %v3173
        %v3179 = vunpack.c.l.s4 1966171168
        %v3180 = vunpack.c.0.s8 %v3179
        %v3181 = vlaneseq
        %v3182 = vshrl.u32 %v3181, 7
        %v3183 = vsub.s32 %v3180, %v3182
        %v3184 = vrot.slane %v3177, %v3183
        %v3186 = vunpack.c.l.s4 1966171168
        %v3187 = vunpack.c.0.s8 %v3186
        %v3188 = vlaneseq
        %v3189 = vshrl.u32 %v3188, 7
        %v3190 = vsub.s32 %v3187, %v3189
        %v3191 = vrot.slane %v3184, %v3190
        %v3193 = vsel %vm415, %v3191, 0.0
        %v3194 = vstv %s3167
        %v3195 = vmul.f32 %v3194, %v3193
        %v3196 = vadd.f32 %v3166, %v3195
        %s3197 = sld [smem:[#allocation4 + $0x9]]
        %3198 = vrot.lane.b32.xlu0 %v2631, 14
        %v3199 = vpop.permute.xlu0 %3198
        %3201 = vrot.lane.b32.xlu0 %v2625, 14
        %v3202 = vpop.permute.xlu0 %3201
        %vm3203 = vcmask 113664
        %v3204 = vsel %vm3203, %v3202, %v3199
        %v3206 = vsel %vm3203, %v3199, %v3202
        %v3208 = vcombine.low %v3206, %v3204
        %v3210 = vunpack.c.l.s4 1966171168
        %v3211 = vunpack.c.0.s8 %v3210
        %v3212 = vlaneseq
        %v3213 = vshrl.u32 %v3212, 7
        %v3214 = vsub.s32 %v3211, %v3213
        %v3215 = vrot.slane %v3208, %v3214
        %v3217 = vunpack.c.l.s4 1966171168
        %v3218 = vunpack.c.0.s8 %v3217
        %v3219 = vlaneseq
        %v3220 = vshrl.u32 %v3219, 7
        %v3221 = vsub.s32 %v3218, %v3220
        %v3222 = vrot.slane %v3215, %v3221
        %v3224 = vsel %vm452, %v3222, 0.0
        %v3225 = vstv %s3197
        %v3226 = vmul.f32 %v3225, %v3224
        %v3227 = vadd.f32 %v3196, %v3226
        %s3228 = sld [smem:[#allocation4 + $0x22]]
        %3229 = vrot.lane.b32.xlu0 %v2646, 14
        %v3230 = vpop.permute.xlu0 %3229
        %3232 = vrot.lane.b32.xlu0 %v2645, 14
        %v3233 = vpop.permute.xlu0 %3232
        %v3234 = vsel %vm3203, %v3233, %v3230
        %v3236 = vsel %vm3203, %v3230, %v3233
        %v3238 = vcombine.low %v3236, %v3234
        %v3240 = vunpack.c.l.s4 1966171168
        %v3241 = vunpack.c.0.s8 %v3240
        %v3242 = vlaneseq
        %v3243 = vshrl.u32 %v3242, 7
        %v3244 = vsub.s32 %v3241, %v3243
        %v3245 = vrot.slane %v3238, %v3244
        %v3247 = vunpack.c.l.s4 1966171168
        %v3248 = vunpack.c.0.s8 %v3247
        %v3249 = vlaneseq
        %v3250 = vshrl.u32 %v3249, 7
        %v3251 = vsub.s32 %v3248, %v3250
        %v3252 = vrot.slane %v3245, %v3251
        %v3254 = vsel %vm452, %v3252, 0.0
        %v3255 = vstv %s3228
        %v3256 = vmul.f32 %v3255, %v3254
        %v3257 = vadd.f32 %v3227, %v3256
        %s3258 = sld [smem:[#allocation4 + $0xa]]
        %3259 = vrot.lane.b32.xlu0 %v2631, 2
        %v3260 = vpop.permute.xlu0 %3259
        %3262 = vrot.lane.b32.xlu0 %v2625, 2
        %v3263 = vpop.permute.xlu0 %3262
        %vm3264 = vcmask 15360
        %v3265 = vsel %vm3264, %v3263, %v3260
        %v3267 = vsel %vm3264, %v3260, %v3263
        %v3269 = vcombine.low %v3267, %v3265
        %v3271 = vunpack.c.l.s4 1966171168
        %v3272 = vunpack.c.0.s8 %v3271
        %v3273 = vlaneseq
        %v3274 = vshrl.u32 %v3273, 7
        %v3275 = vsub.s32 %v3272, %v3274
        %v3276 = vrot.slane %v3269, %v3275
        %v3278 = vunpack.c.l.s4 1966171168
        %v3279 = vunpack.c.0.s8 %v3278
        %v3280 = vlaneseq
        %v3281 = vshrl.u32 %v3280, 7
        %v3282 = vsub.s32 %v3279, %v3281
        %v3283 = vrot.slane %v3276, %v3282
        %v3285 = vsel %vm454, %v3283, 0.0
        %v3286 = vstv %s3258
        %v3287 = vmul.f32 %v3286, %v3285
        %v3288 = vadd.f32 %v3257, %v3287
        %s3289 = sld [smem:[#allocation4 + $0x23]]
        %3290 = vrot.lane.b32.xlu0 %v2646, 2
        %v3291 = vpop.permute.xlu0 %3290
        %3293 = vrot.lane.b32.xlu0 %v2645, 2
        %v3294 = vpop.permute.xlu0 %3293
        %v3295 = vsel %vm3264, %v3294, %v3291
        %v3297 = vsel %vm3264, %v3291, %v3294
        %v3299 = vcombine.low %v3297, %v3295
        %v3301 = vunpack.c.l.s4 1966171168
        %v3302 = vunpack.c.0.s8 %v3301
        %v3303 = vlaneseq
        %v3304 = vshrl.u32 %v3303, 7
        %v3305 = vsub.s32 %v3302, %v3304
        %v3306 = vrot.slane %v3299, %v3305
        %v3308 = vunpack.c.l.s4 1966171168
        %v3309 = vunpack.c.0.s8 %v3308
        %v3310 = vlaneseq
        %v3311 = vshrl.u32 %v3310, 7
        %v3312 = vsub.s32 %v3309, %v3311
        %v3313 = vrot.slane %v3306, %v3312
        %v3315 = vsel %vm454, %v3313, 0.0
        %v3316 = vstv %s3289
        %v3317 = vmul.f32 %v3316, %v3315
        %v3318 = vadd.f32 %v3288, %v3317
        %s3319 = sld [smem:[#allocation4 + $0xb]]
        %3320 = vrot.lane.b32.xlu0 %v2631, 1
        %v3321 = vpop.permute.xlu0 %3320
        %3323 = vrot.lane.b32.xlu0 %v2625, 1
        %v3324 = vpop.permute.xlu0 %3323
        %v3325 = vsel %vm1068, %v3324, %v3321
        %v3327 = vsel %vm1068, %v3321, %v3324
        %v3329 = vcombine.low %v3327, %v3325
        %v3331 = vunpack.c.l.s4 1966171168
        %v3332 = vunpack.c.0.s8 %v3331
        %v3333 = vlaneseq
        %v3334 = vshrl.u32 %v3333, 7
        %v3335 = vsub.s32 %v3332, %v3334
        %v3336 = vrot.slane %v3329, %v3335
        %v3338 = vunpack.c.l.s4 1966171168
        %v3339 = vunpack.c.0.s8 %v3338
        %v3340 = vlaneseq
        %v3341 = vshrl.u32 %v3340, 7
        %v3342 = vsub.s32 %v3339, %v3341
        %v3343 = vrot.slane %v3336, %v3342
        %v3345 = vsel %vm420, %v3343, 0.0
        %v3346 = vstv %s3319
        %v3347 = vmul.f32 %v3346, %v3345
        %v3348 = vadd.f32 %v3318, %v3347
        %s3349 = sld [smem:[#allocation4 + $0x24]]
        %3350 = vrot.lane.b32.xlu0 %v2646, 1
        %v3351 = vpop.permute.xlu0 %3350
        %3353 = vrot.lane.b32.xlu0 %v2645, 1
        %v3354 = vpop.permute.xlu0 %3353
        %v3355 = vsel %vm1068, %v3354, %v3351
        %v3357 = vsel %vm1068, %v3351, %v3354
        %v3359 = vcombine.low %v3357, %v3355
        %v3361 = vunpack.c.l.s4 1966171168
        %v3362 = vunpack.c.0.s8 %v3361
        %v3363 = vlaneseq
        %v3364 = vshrl.u32 %v3363, 7
        %v3365 = vsub.s32 %v3362, %v3364
        %v3366 = vrot.slane %v3359, %v3365
        %v3368 = vunpack.c.l.s4 1966171168
        %v3369 = vunpack.c.0.s8 %v3368
        %v3370 = vlaneseq
        %v3371 = vshrl.u32 %v3370, 7
        %v3372 = vsub.s32 %v3369, %v3371
        %v3373 = vrot.slane %v3366, %v3372
        %v3375 = vsel %vm420, %v3373, 0.0
        %v3376 = vstv %s3349
        %v3377 = vmul.f32 %v3376, %v3375
        %v3378 = vadd.f32 %v3348, %v3377
        %s3379 = sld [smem:[#allocation4 + $0xc]]
        %v3380 = vstv %s3379
        %v3381 = vmul.f32 %v3380, %v2625
        %v3382 = vmul.f32 %v3380, %v2631
        %v3385 = vcombine.low %v3381, %v3382
        %v3387 = vunpack.c.l.s4 1966171168
        %v3388 = vunpack.c.0.s8 %v3387
        %v3389 = vlaneseq
        %v3390 = vshrl.u32 %v3389, 7
        %v3391 = vsub.s32 %v3388, %v3390
        %v3392 = vrot.slane %v3385, %v3391
        %v3394 = vunpack.c.l.s4 1966171168
        %v3395 = vunpack.c.0.s8 %v3394
        %v3396 = vlaneseq
        %v3397 = vshrl.u32 %v3396, 7
        %v3398 = vsub.s32 %v3395, %v3397
        %v3399 = vrot.slane %v3392, %v3398
        %v3401 = vadd.f32 %v3378, %v3399
        %s3402 = sld [smem:[#allocation4 + $0x25]]
        %v3403 = vstv %s3402
        %v3404 = vmul.f32 %v3403, %v2645
        %v3405 = vmul.f32 %v3403, %v2646
        %v3408 = vcombine.low %v3404, %v3405
        %v3410 = vunpack.c.l.s4 1966171168
        %v3411 = vunpack.c.0.s8 %v3410
        %v3412 = vlaneseq
        %v3413 = vshrl.u32 %v3412, 7
        %v3414 = vsub.s32 %v3411, %v3413
        %v3415 = vrot.slane %v3408, %v3414
        %v3417 = vunpack.c.l.s4 1966171168
        %v3418 = vunpack.c.0.s8 %v3417
        %v3419 = vlaneseq
        %v3420 = vshrl.u32 %v3419, 7
        %v3421 = vsub.s32 %v3418, %v3420
        %v3422 = vrot.slane %v3415, %v3421
        %v3424 = vadd.f32 %v3401, %v3422
        %s3425 = sld [smem:[#allocation4 + $0xd]]
        %3426 = vrot.lane.b32.xlu0 %v2625, 127
        %v3427 = vpop.permute.xlu0 %3426
        %3428 = vrot.lane.b32.xlu0 %v2631, 127
        %v3429 = vpop.permute.xlu0 %3428
        %v3430 = vsel %vm1101, %v3427, %v3429
        %v3433 = vsel %vm1101, %v3429, %v3427
        %v3435 = vcombine.low %v3430, %v3433
        %v3437 = vunpack.c.l.s4 1966171168
        %v3438 = vunpack.c.0.s8 %v3437
        %v3439 = vlaneseq
        %v3440 = vshrl.u32 %v3439, 7
        %v3441 = vsub.s32 %v3438, %v3440
        %v3442 = vrot.slane %v3435, %v3441
        %v3444 = vunpack.c.l.s4 1966171168
        %v3445 = vunpack.c.0.s8 %v3444
        %v3446 = vlaneseq
        %v3447 = vshrl.u32 %v3446, 7
        %v3448 = vsub.s32 %v3445, %v3447
        %v3449 = vrot.slane %v3442, %v3448
        %v3451 = vsel %vm422, %v3449, 0.0
        %v3452 = vstv %s3425
        %v3453 = vmul.f32 %v3452, %v3451
        %v3454 = vadd.f32 %v3424, %v3453
        %s3455 = sld [smem:[#allocation4 + $0x26]]
        %3456 = vrot.lane.b32.xlu0 %v2645, 127
        %v3457 = vpop.permute.xlu0 %3456
        %3458 = vrot.lane.b32.xlu0 %v2646, 127
        %v3459 = vpop.permute.xlu0 %3458
        %v3460 = vsel %vm1101, %v3457, %v3459
        %v3463 = vsel %vm1101, %v3459, %v3457
        %v3465 = vcombine.low %v3460, %v3463
        %v3467 = vunpack.c.l.s4 1966171168
        %v3468 = vunpack.c.0.s8 %v3467
        %v3469 = vlaneseq
        %v3470 = vshrl.u32 %v3469, 7
        %v3471 = vsub.s32 %v3468, %v3470
        %v3472 = vrot.slane %v3465, %v3471
        %v3474 = vunpack.c.l.s4 1966171168
        %v3475 = vunpack.c.0.s8 %v3474
        %v3476 = vlaneseq
        %v3477 = vshrl.u32 %v3476, 7
        %v3478 = vsub.s32 %v3475, %v3477
        %v3479 = vrot.slane %v3472, %v3478
        %v3481 = vsel %vm422, %v3479, 0.0
        %v3482 = vstv %s3455
        %v3483 = vmul.f32 %v3482, %v3481
        %v3484 = vadd.f32 %v3454, %v3483
        %s3485 = sld [smem:[#allocation4 + $0xe]]
        %3486 = vrot.lane.b32.xlu0 %v2625, 126
        %v3487 = vpop.permute.xlu0 %3486
        %3488 = vrot.lane.b32.xlu0 %v2631, 126
        %v3489 = vpop.permute.xlu0 %3488
        %vm3490 = vcmask 1031168
        %v3491 = vsel %vm3490, %v3487, %v3489
        %v3494 = vsel %vm3490, %v3489, %v3487
        %v3496 = vcombine.low %v3491, %v3494
        %v3498 = vunpack.c.l.s4 1966171168
        %v3499 = vunpack.c.0.s8 %v3498
        %v3500 = vlaneseq
        %v3501 = vshrl.u32 %v3500, 7
        %v3502 = vsub.s32 %v3499, %v3501
        %v3503 = vrot.slane %v3496, %v3502
        %v3505 = vunpack.c.l.s4 1966171168
        %v3506 = vunpack.c.0.s8 %v3505
        %v3507 = vlaneseq
        %v3508 = vshrl.u32 %v3507, 7
        %v3509 = vsub.s32 %v3506, %v3508
        %v3510 = vrot.slane %v3503, %v3509
        %v3512 = vsel %vm456, %v3510, 0.0
        %v3513 = vstv %s3485
        %v3514 = vmul.f32 %v3513, %v3512
        %v3515 = vadd.f32 %v3484, %v3514
        %s3516 = sld [smem:[#allocation4 + $0x27]]
        %3517 = vrot.lane.b32.xlu0 %v2645, 126
        %v3518 = vpop.permute.xlu0 %3517
        %3519 = vrot.lane.b32.xlu0 %v2646, 126
        %v3520 = vpop.permute.xlu0 %3519
        %v3521 = vsel %vm3490, %v3518, %v3520
        %v3524 = vsel %vm3490, %v3520, %v3518
        %v3526 = vcombine.low %v3521, %v3524
        %v3528 = vunpack.c.l.s4 1966171168
        %v3529 = vunpack.c.0.s8 %v3528
        %v3530 = vlaneseq
        %v3531 = vshrl.u32 %v3530, 7
        %v3532 = vsub.s32 %v3529, %v3531
        %v3533 = vrot.slane %v3526, %v3532
        %v3535 = vunpack.c.l.s4 1966171168
        %v3536 = vunpack.c.0.s8 %v3535
        %v3537 = vlaneseq
        %v3538 = vshrl.u32 %v3537, 7
        %v3539 = vsub.s32 %v3536, %v3538
        %v3540 = vrot.slane %v3533, %v3539
        %v3542 = vsel %vm456, %v3540, 0.0
        %v3543 = vstv %s3516
        %v3544 = vmul.f32 %v3543, %v3542
        %v3545 = vadd.f32 %v3515, %v3544
        %s3546 = sld [smem:[#allocation4 + $0xf]]
        %3547 = vrot.lane.b32.xlu0 %v2625, 114
        %v3548 = vpop.permute.xlu0 %3547
        %3549 = vrot.lane.b32.xlu0 %v2631, 114
        %v3550 = vpop.permute.xlu0 %3549
        %vm3551 = vcmask 932864
        %v3552 = vsel %vm3551, %v3548, %v3550
        %v3555 = vsel %vm3551, %v3550, %v3548
        %v3557 = vcombine.low %v3552, %v3555
        %v3559 = vunpack.c.l.s4 1966171168
        %v3560 = vunpack.c.0.s8 %v3559
        %v3561 = vlaneseq
        %v3562 = vshrl.u32 %v3561, 7
        %v3563 = vsub.s32 %v3560, %v3562
        %v3564 = vrot.slane %v3557, %v3563
        %v3566 = vunpack.c.l.s4 1966171168
        %v3567 = vunpack.c.0.s8 %v3566
        %v3568 = vlaneseq
        %v3569 = vshrl.u32 %v3568, 7
        %v3570 = vsub.s32 %v3567, %v3569
        %v3571 = vrot.slane %v3564, %v3570
        %v3573 = vsel %vm458, %v3571, 0.0
        %v3574 = vstv %s3546
        %v3575 = vmul.f32 %v3574, %v3573
        %v3576 = vadd.f32 %v3545, %v3575
        %s3577 = sld [smem:[#allocation4 + $0x28]]
        %3578 = vrot.lane.b32.xlu0 %v2645, 114
        %v3579 = vpop.permute.xlu0 %3578
        %3580 = vrot.lane.b32.xlu0 %v2646, 114
        %v3581 = vpop.permute.xlu0 %3580
        %v3582 = vsel %vm3551, %v3579, %v3581
        %v3585 = vsel %vm3551, %v3581, %v3579
        %v3587 = vcombine.low %v3582, %v3585
        %v3589 = vunpack.c.l.s4 1966171168
        %v3590 = vunpack.c.0.s8 %v3589
        %v3591 = vlaneseq
        %v3592 = vshrl.u32 %v3591, 7
        %v3593 = vsub.s32 %v3590, %v3592
        %v3594 = vrot.slane %v3587, %v3593
        %v3596 = vunpack.c.l.s4 1966171168
        %v3597 = vunpack.c.0.s8 %v3596
        %v3598 = vlaneseq
        %v3599 = vshrl.u32 %v3598, 7
        %v3600 = vsub.s32 %v3597, %v3599
        %v3601 = vrot.slane %v3594, %v3600
        %v3603 = vsel %vm458, %v3601, 0.0
        %v3604 = vstv %s3577
        %v3605 = vmul.f32 %v3604, %v3603
        %v3606 = vadd.f32 %v3576, %v3605
        %s3607 = sld [smem:[#allocation4 + $0x10]]
        %3608 = vrot.lane.b32.xlu0 %v2625, 113
        %v3609 = vpop.permute.xlu0 %3608
        %3610 = vrot.lane.b32.xlu0 %v2631, 113
        %v3611 = vpop.permute.xlu0 %3610
        %v3612 = vsel %vm1132, %v3609, %v3611
        %v3615 = vsel %vm1132, %v3611, %v3609
        %v3617 = vcombine.low %v3612, %v3615
        %v3619 = vunpack.c.l.s4 1966171168
        %v3620 = vunpack.c.0.s8 %v3619
        %v3621 = vlaneseq
        %v3622 = vshrl.u32 %v3621, 7
        %v3623 = vsub.s32 %v3620, %v3622
        %v3624 = vrot.slane %v3617, %v3623
        %v3626 = vunpack.c.l.s4 1966171168
        %v3627 = vunpack.c.0.s8 %v3626
        %v3628 = vlaneseq
        %v3629 = vshrl.u32 %v3628, 7
        %v3630 = vsub.s32 %v3627, %v3629
        %v3631 = vrot.slane %v3624, %v3630
        %v3633 = vsel %vm427, %v3631, 0.0
        %v3634 = vstv %s3607
        %v3635 = vmul.f32 %v3634, %v3633
        %v3636 = vadd.f32 %v3606, %v3635
        %s3637 = sld [smem:[#allocation4 + $0x29]]
        %3638 = vrot.lane.b32.xlu0 %v2645, 113
        %v3639 = vpop.permute.xlu0 %3638
        %3640 = vrot.lane.b32.xlu0 %v2646, 113
        %v3641 = vpop.permute.xlu0 %3640
        %v3642 = vsel %vm1132, %v3639, %v3641
        %v3645 = vsel %vm1132, %v3641, %v3639
        %v3647 = vcombine.low %v3642, %v3645
        %v3649 = vunpack.c.l.s4 1966171168
        %v3650 = vunpack.c.0.s8 %v3649
        %v3651 = vlaneseq
        %v3652 = vshrl.u32 %v3651, 7
        %v3653 = vsub.s32 %v3650, %v3652
        %v3654 = vrot.slane %v3647, %v3653
        %v3656 = vunpack.c.l.s4 1966171168
        %v3657 = vunpack.c.0.s8 %v3656
        %v3658 = vlaneseq
        %v3659 = vshrl.u32 %v3658, 7
        %v3660 = vsub.s32 %v3657, %v3659
        %v3661 = vrot.slane %v3654, %v3660
        %v3663 = vsel %vm427, %v3661, 0.0
        %v3664 = vstv %s3637
        %v3665 = vmul.f32 %v3664, %v3663
        %v3666 = vadd.f32 %v3636, %v3665
        %s3667 = sld [smem:[#allocation4 + $0x11]]
        %3668 = vrot.lane.b32.xlu0 %v2625, 112
        %v3669 = vpop.permute.xlu0 %3668
        %3670 = vrot.lane.b32.xlu0 %v2631, 112
        %v3671 = vpop.permute.xlu0 %3670
        %v3672 = vsel %vm1157, %v3669, %v3671
        %v3675 = vsel %vm1157, %v3671, %v3669
        %v3677 = vcombine.low %v3672, %v3675
        %v3679 = vunpack.c.l.s4 1966171168
        %v3680 = vunpack.c.0.s8 %v3679
        %v3681 = vlaneseq
        %v3682 = vshrl.u32 %v3681, 7
        %v3683 = vsub.s32 %v3680, %v3682
        %v3684 = vrot.slane %v3677, %v3683
        %v3686 = vunpack.c.l.s4 1966171168
        %v3687 = vunpack.c.0.s8 %v3686
        %v3688 = vlaneseq
        %v3689 = vshrl.u32 %v3688, 7
        %v3690 = vsub.s32 %v3687, %v3689
        %v3691 = vrot.slane %v3684, %v3690
        %v3693 = vsel %vm429, %v3691, 0.0
        %v3694 = vstv %s3667
        %v3695 = vmul.f32 %v3694, %v3693
        %v3696 = vadd.f32 %v3666, %v3695
        %s3697 = sld [smem:[#allocation4 + $0x2a]]
        %3698 = vrot.lane.b32.xlu0 %v2645, 112
        %v3699 = vpop.permute.xlu0 %3698
        %3700 = vrot.lane.b32.xlu0 %v2646, 112
        %v3701 = vpop.permute.xlu0 %3700
        %v3702 = vsel %vm1157, %v3699, %v3701
        %v3705 = vsel %vm1157, %v3701, %v3699
        %v3707 = vcombine.low %v3702, %v3705
        %v3709 = vunpack.c.l.s4 1966171168
        %v3710 = vunpack.c.0.s8 %v3709
        %v3711 = vlaneseq
        %v3712 = vshrl.u32 %v3711, 7
        %v3713 = vsub.s32 %v3710, %v3712
        %v3714 = vrot.slane %v3707, %v3713
        %v3716 = vunpack.c.l.s4 1966171168
        %v3717 = vunpack.c.0.s8 %v3716
        %v3718 = vlaneseq
        %v3719 = vshrl.u32 %v3718, 7
        %v3720 = vsub.s32 %v3717, %v3719
        %v3721 = vrot.slane %v3714, %v3720
        %v3723 = vsel %vm429, %v3721, 0.0
        %v3724 = vstv %s3697
        %v3725 = vmul.f32 %v3724, %v3723
        %v3726 = vadd.f32 %v3696, %v3725
        %s3727 = sld [smem:[#allocation4 + $0x12]]
        %3728 = vrot.lane.b32.xlu0 %v2625, 111
        %v3729 = vpop.permute.xlu0 %3728
        %3730 = vrot.lane.b32.xlu0 %v2631, 111
        %v3731 = vpop.permute.xlu0 %3730
        %v3732 = vsel %vm1188, %v3729, %v3731
        %v3735 = vsel %vm1188, %v3731, %v3729
        %v3737 = vcombine.low %v3732, %v3735
        %v3739 = vunpack.c.l.s4 1966171168
        %v3740 = vunpack.c.0.s8 %v3739
        %v3741 = vlaneseq
        %v3742 = vshrl.u32 %v3741, 7
        %v3743 = vsub.s32 %v3740, %v3742
        %v3744 = vrot.slane %v3737, %v3743
        %v3746 = vunpack.c.l.s4 1966171168
        %v3747 = vunpack.c.0.s8 %v3746
        %v3748 = vlaneseq
        %v3749 = vshrl.u32 %v3748, 7
        %v3750 = vsub.s32 %v3747, %v3749
        %v3751 = vrot.slane %v3744, %v3750
        %v3753 = vsel %vm431, %v3751, 0.0
        %v3754 = vstv %s3727
        %v3755 = vmul.f32 %v3754, %v3753
        %v3756 = vadd.f32 %v3726, %v3755
        %s3757 = sld [smem:[#allocation4 + $0x2b]]
        %3758 = vrot.lane.b32.xlu0 %v2645, 111
        %v3759 = vpop.permute.xlu0 %3758
        %3760 = vrot.lane.b32.xlu0 %v2646, 111
        %v3761 = vpop.permute.xlu0 %3760
        %v3762 = vsel %vm1188, %v3759, %v3761
        %v3765 = vsel %vm1188, %v3761, %v3759
        %v3767 = vcombine.low %v3762, %v3765
        %v3769 = vunpack.c.l.s4 1966171168
        %v3770 = vunpack.c.0.s8 %v3769
        %v3771 = vlaneseq
        %v3772 = vshrl.u32 %v3771, 7
        %v3773 = vsub.s32 %v3770, %v3772
        %v3774 = vrot.slane %v3767, %v3773
        %v3776 = vunpack.c.l.s4 1966171168
        %v3777 = vunpack.c.0.s8 %v3776
        %v3778 = vlaneseq
        %v3779 = vshrl.u32 %v3778, 7
        %v3780 = vsub.s32 %v3777, %v3779
        %v3781 = vrot.slane %v3774, %v3780
        %v3783 = vsel %vm431, %v3781, 0.0
        %v3784 = vstv %s3757
        %v3785 = vmul.f32 %v3784, %v3783
        %v3786 = vadd.f32 %v3756, %v3785
        %s3787 = sld [smem:[#allocation4 + $0x13]]
        %3788 = vrot.lane.b32.xlu0 %v2625, 110
        %v3789 = vpop.permute.xlu0 %3788
        %3790 = vrot.lane.b32.xlu0 %v2631, 110
        %v3791 = vpop.permute.xlu0 %3790
        %vm3792 = vcmask 900096
        %v3793 = vsel %vm3792, %v3789, %v3791
        %v3796 = vsel %vm3792, %v3791, %v3789
        %v3798 = vcombine.low %v3793, %v3796
        %v3800 = vunpack.c.l.s4 1966171168
        %v3801 = vunpack.c.0.s8 %v3800
        %v3802 = vlaneseq
        %v3803 = vshrl.u32 %v3802, 7
        %v3804 = vsub.s32 %v3801, %v3803
        %v3805 = vrot.slane %v3798, %v3804
        %v3807 = vunpack.c.l.s4 1966171168
        %v3808 = vunpack.c.0.s8 %v3807
        %v3809 = vlaneseq
        %v3810 = vshrl.u32 %v3809, 7
        %v3811 = vsub.s32 %v3808, %v3810
        %v3812 = vrot.slane %v3805, %v3811
        %v3814 = vsel %vm460, %v3812, 0.0
        %v3815 = vstv %s3787
        %v3816 = vmul.f32 %v3815, %v3814
        %v3817 = vadd.f32 %v3786, %v3816
        %s3818 = sld [smem:[#allocation4 + $0x2c]]
        %3819 = vrot.lane.b32.xlu0 %v2645, 110
        %v3820 = vpop.permute.xlu0 %3819
        %3821 = vrot.lane.b32.xlu0 %v2646, 110
        %v3822 = vpop.permute.xlu0 %3821
        %v3823 = vsel %vm3792, %v3820, %v3822
        %v3826 = vsel %vm3792, %v3822, %v3820
        %v3828 = vcombine.low %v3823, %v3826
        %v3830 = vunpack.c.l.s4 1966171168
        %v3831 = vunpack.c.0.s8 %v3830
        %v3832 = vlaneseq
        %v3833 = vshrl.u32 %v3832, 7
        %v3834 = vsub.s32 %v3831, %v3833
        %v3835 = vrot.slane %v3828, %v3834
        %v3837 = vunpack.c.l.s4 1966171168
        %v3838 = vunpack.c.0.s8 %v3837
        %v3839 = vlaneseq
        %v3840 = vshrl.u32 %v3839, 7
        %v3841 = vsub.s32 %v3838, %v3840
        %v3842 = vrot.slane %v3835, %v3841
        %v3844 = vsel %vm460, %v3842, 0.0
        %v3845 = vstv %s3818
        %v3846 = vmul.f32 %v3845, %v3844
        %v3847 = vadd.f32 %v3817, %v3846
        %s3848 = sld [smem:[#allocation4 + $0x14]]
        %3849 = vrot.lane.b32.xlu0 %v2625, 98
        %v3850 = vpop.permute.xlu0 %3849
        %3851 = vrot.lane.b32.xlu0 %v2631, 98
        %v3852 = vpop.permute.xlu0 %3851
        %vm3853 = vcmask 801792
        %v3854 = vsel %vm3853, %v3850, %v3852
        %v3857 = vsel %vm3853, %v3852, %v3850
        %v3859 = vcombine.low %v3854, %v3857
        %v3861 = vunpack.c.l.s4 1966171168
        %v3862 = vunpack.c.0.s8 %v3861
        %v3863 = vlaneseq
        %v3864 = vshrl.u32 %v3863, 7
        %v3865 = vsub.s32 %v3862, %v3864
        %v3866 = vrot.slane %v3859, %v3865
        %v3868 = vunpack.c.l.s4 1966171168
        %v3869 = vunpack.c.0.s8 %v3868
        %v3870 = vlaneseq
        %v3871 = vshrl.u32 %v3870, 7
        %v3872 = vsub.s32 %v3869, %v3871
        %v3873 = vrot.slane %v3866, %v3872
        %v3875 = vsel %vm465, %v3873, 0.0
        %v3876 = vstv %s3848
        %v3877 = vmul.f32 %v3876, %v3875
        %v3878 = vadd.f32 %v3847, %v3877
        %s3879 = sld [smem:[#allocation4 + $0x2d]]
        %3880 = vrot.lane.b32.xlu0 %v2645, 98
        %v3881 = vpop.permute.xlu0 %3880
        %3882 = vrot.lane.b32.xlu0 %v2646, 98
        %v3883 = vpop.permute.xlu0 %3882
        %v3884 = vsel %vm3853, %v3881, %v3883
        %v3887 = vsel %vm3853, %v3883, %v3881
        %v3889 = vcombine.low %v3884, %v3887
        %v3891 = vunpack.c.l.s4 1966171168
        %v3892 = vunpack.c.0.s8 %v3891
        %v3893 = vlaneseq
        %v3894 = vshrl.u32 %v3893, 7
        %v3895 = vsub.s32 %v3892, %v3894
        %v3896 = vrot.slane %v3889, %v3895
        %v3898 = vunpack.c.l.s4 1966171168
        %v3899 = vunpack.c.0.s8 %v3898
        %v3900 = vlaneseq
        %v3901 = vshrl.u32 %v3900, 7
        %v3902 = vsub.s32 %v3899, %v3901
        %v3903 = vrot.slane %v3896, %v3902
        %v3905 = vsel %vm465, %v3903, 0.0
        %v3906 = vstv %s3879
        %v3907 = vmul.f32 %v3906, %v3905
        %v3908 = vadd.f32 %v3878, %v3907
        %s3909 = sld [smem:[#allocation4 + $0x15]]
        %3910 = vrot.lane.b32.xlu0 %v2625, 97
        %v3911 = vpop.permute.xlu0 %3910
        %3912 = vrot.lane.b32.xlu0 %v2631, 97
        %v3913 = vpop.permute.xlu0 %3912
        %vm3914 = vcmask 793600
        %v3915 = vsel %vm3914, %v3911, %v3913
        %v3918 = vsel %vm3914, %v3913, %v3911
        %v3920 = vcombine.low %v3915, %v3918
        %v3922 = vunpack.c.l.s4 1966171168
        %v3923 = vunpack.c.0.s8 %v3922
        %v3924 = vlaneseq
        %v3925 = vshrl.u32 %v3924, 7
        %v3926 = vsub.s32 %v3923, %v3925
        %v3927 = vrot.slane %v3920, %v3926
        %v3929 = vunpack.c.l.s4 1966171168
        %v3930 = vunpack.c.0.s8 %v3929
        %v3931 = vlaneseq
        %v3932 = vshrl.u32 %v3931, 7
        %v3933 = vsub.s32 %v3930, %v3932
        %v3934 = vrot.slane %v3927, %v3933
        %v3936 = vsel %vm467, %v3934, 0.0
        %v3937 = vstv %s3909
        %v3938 = vmul.f32 %v3937, %v3936
        %v3939 = vadd.f32 %v3908, %v3938
        %s3940 = sld [smem:[#allocation4 + $0x2e]]
        %3941 = vrot.lane.b32.xlu0 %v2645, 97
        %v3942 = vpop.permute.xlu0 %3941
        %3943 = vrot.lane.b32.xlu0 %v2646, 97
        %v3944 = vpop.permute.xlu0 %3943
        %v3945 = vsel %vm3914, %v3942, %v3944
        %v3948 = vsel %vm3914, %v3944, %v3942
        %v3950 = vcombine.low %v3945, %v3948
        %v3952 = vunpack.c.l.s4 1966171168
        %v3953 = vunpack.c.0.s8 %v3952
        %v3954 = vlaneseq
        %v3955 = vshrl.u32 %v3954, 7
        %v3956 = vsub.s32 %v3953, %v3955
        %v3957 = vrot.slane %v3950, %v3956
        %v3959 = vunpack.c.l.s4 1966171168
        %v3960 = vunpack.c.0.s8 %v3959
        %v3961 = vlaneseq
        %v3962 = vshrl.u32 %v3961, 7
        %v3963 = vsub.s32 %v3960, %v3962
        %v3964 = vrot.slane %v3957, %v3963
        %v3966 = vsel %vm467, %v3964, 0.0
        %v3967 = vstv %s3940
        %v3968 = vmul.f32 %v3967, %v3966
        %v3969 = vadd.f32 %v3939, %v3968
        %s3970 = sld [smem:[#allocation4 + $0x16]]
        %3971 = vrot.lane.b32.xlu0 %v2625, 96
        %v3972 = vpop.permute.xlu0 %3971
        %3973 = vrot.lane.b32.xlu0 %v2631, 96
        %v3974 = vpop.permute.xlu0 %3973
        %vm3975 = vcmask 785408
        %v3976 = vsel %vm3975, %v3972, %v3974
        %v3979 = vsel %vm3975, %v3974, %v3972
        %v3981 = vcombine.low %v3976, %v3979
        %v3983 = vunpack.c.l.s4 1966171168
        %v3984 = vunpack.c.0.s8 %v3983
        %v3985 = vlaneseq
        %v3986 = vshrl.u32 %v3985, 7
        %v3987 = vsub.s32 %v3984, %v3986
        %v3988 = vrot.slane %v3981, %v3987
        %v3990 = vunpack.c.l.s4 1966171168
        %v3991 = vunpack.c.0.s8 %v3990
        %v3992 = vlaneseq
        %v3993 = vshrl.u32 %v3992, 7
        %v3994 = vsub.s32 %v3991, %v3993
        %v3995 = vrot.slane %v3988, %v3994
        %v3997 = vsel %vm469, %v3995, 0.0
        %v3998 = vstv %s3970
        %v3999 = vmul.f32 %v3998, %v3997
        %v4000 = vadd.f32 %v3969, %v3999
        %s4001 = sld [smem:[#allocation4 + $0x2f]]
        %4002 = vrot.lane.b32.xlu0 %v2645, 96
        %v4003 = vpop.permute.xlu0 %4002
        %4004 = vrot.lane.b32.xlu0 %v2646, 96
        %v4005 = vpop.permute.xlu0 %4004
        %v4006 = vsel %vm3975, %v4003, %v4005
        %v4009 = vsel %vm3975, %v4005, %v4003
        %v4011 = vcombine.low %v4006, %v4009
        %v4013 = vunpack.c.l.s4 1966171168
        %v4014 = vunpack.c.0.s8 %v4013
        %v4015 = vlaneseq
        %v4016 = vshrl.u32 %v4015, 7
        %v4017 = vsub.s32 %v4014, %v4016
        %v4018 = vrot.slane %v4011, %v4017
        %v4020 = vunpack.c.l.s4 1966171168
        %v4021 = vunpack.c.0.s8 %v4020
        %v4022 = vlaneseq
        %v4023 = vshrl.u32 %v4022, 7
        %v4024 = vsub.s32 %v4021, %v4023
        %v4025 = vrot.slane %v4018, %v4024
        %v4027 = vsel %vm469, %v4025, 0.0
        %v4028 = vstv %s4001
        %v4029 = vmul.f32 %v4028, %v4027
        %v4030 = vadd.f32 %v4000, %v4029
        %s4031 = sld [smem:[#allocation4 + $0x17]]
        %4032 = vrot.lane.b32.xlu0 %v2625, 95
        %v4033 = vpop.permute.xlu0 %4032
        %4034 = vrot.lane.b32.xlu0 %v2631, 95
        %v4035 = vpop.permute.xlu0 %4034
        %vm4036 = vcmask 777216
        %v4037 = vsel %vm4036, %v4033, %v4035
        %v4040 = vsel %vm4036, %v4035, %v4033
        %v4042 = vcombine.low %v4037, %v4040
        %v4044 = vunpack.c.l.s4 1966171168
        %v4045 = vunpack.c.0.s8 %v4044
        %v4046 = vlaneseq
        %v4047 = vshrl.u32 %v4046, 7
        %v4048 = vsub.s32 %v4045, %v4047
        %v4049 = vrot.slane %v4042, %v4048
        %v4051 = vunpack.c.l.s4 1966171168
        %v4052 = vunpack.c.0.s8 %v4051
        %v4053 = vlaneseq
        %v4054 = vshrl.u32 %v4053, 7
        %v4055 = vsub.s32 %v4052, %v4054
        %v4056 = vrot.slane %v4049, %v4055
        %v4058 = vsel %vm471, %v4056, 0.0
        %v4059 = vstv %s4031
        %v4060 = vmul.f32 %v4059, %v4058
        %v4061 = vadd.f32 %v4030, %v4060
        %s4062 = sld [smem:[#allocation4 + $0x30]]
        %4063 = vrot.lane.b32.xlu0 %v2645, 95
        %v4064 = vpop.permute.xlu0 %4063
        %4065 = vrot.lane.b32.xlu0 %v2646, 95
        %v4066 = vpop.permute.xlu0 %4065
        %v4067 = vsel %vm4036, %v4064, %v4066
        %v4070 = vsel %vm4036, %v4066, %v4064
        %v4072 = vcombine.low %v4067, %v4070
        %v4074 = vunpack.c.l.s4 1966171168
        %v4075 = vunpack.c.0.s8 %v4074
        %v4076 = vlaneseq
        %v4077 = vshrl.u32 %v4076, 7
        %v4078 = vsub.s32 %v4075, %v4077
        %v4079 = vrot.slane %v4072, %v4078
        %v4081 = vunpack.c.l.s4 1966171168
        %v4082 = vunpack.c.0.s8 %v4081
        %v4083 = vlaneseq
        %v4084 = vshrl.u32 %v4083, 7
        %v4085 = vsub.s32 %v4082, %v4084
        %v4086 = vrot.slane %v4079, %v4085
        %v4088 = vsel %vm471, %v4086, 0.0
        %v4089 = vstv %s4062
        %v4090 = vmul.f32 %v4089, %v4088
        %v4091 = vadd.f32 %v4061, %v4090
        %s4092 = sld [smem:[#allocation4 + $0x18]]
        %4093 = vrot.lane.b32.xlu0 %v2625, 94
        %v4094 = vpop.permute.xlu0 %4093
        %4095 = vrot.lane.b32.xlu0 %v2631, 94
        %v4096 = vpop.permute.xlu0 %4095
        %vm4097 = vcmask 769024
        %v4098 = vsel %vm4097, %v4094, %v4096
        %v4101 = vsel %vm4097, %v4096, %v4094
        %v4103 = vcombine.low %v4098, %v4101
        %v4105 = vunpack.c.l.s4 1966171168
        %v4106 = vunpack.c.0.s8 %v4105
        %v4107 = vlaneseq
        %v4108 = vshrl.u32 %v4107, 7
        %v4109 = vsub.s32 %v4106, %v4108
        %v4110 = vrot.slane %v4103, %v4109
        %v4112 = vunpack.c.l.s4 1966171168
        %v4113 = vunpack.c.0.s8 %v4112
        %v4114 = vlaneseq
        %v4115 = vshrl.u32 %v4114, 7
        %v4116 = vsub.s32 %v4113, %v4115
        %v4117 = vrot.slane %v4110, %v4116
        %v4119 = vsel %vm473, %v4117, 0.0
        %v4120 = vstv %s4092
        %v4121 = vmul.f32 %v4120, %v4119
        %v4122 = vadd.f32 %v4091, %v4121
        %s4123 = sld [smem:[#allocation4 + $0x31]]
        %4124 = vrot.lane.b32.xlu0 %v2645, 94
        %v4125 = vpop.permute.xlu0 %4124
        %4126 = vrot.lane.b32.xlu0 %v2646, 94
        %v4127 = vpop.permute.xlu0 %4126
        %v4128 = vsel %vm4097, %v4125, %v4127
        %v4131 = vsel %vm4097, %v4127, %v4125
        %v4133 = vcombine.low %v4128, %v4131
        %v4135 = vunpack.c.l.s4 1966171168
        %v4136 = vunpack.c.0.s8 %v4135
        %v4137 = vlaneseq
        %v4138 = vshrl.u32 %v4137, 7
        %v4139 = vsub.s32 %v4136, %v4138
        %v4140 = vrot.slane %v4133, %v4139
        %v4142 = vunpack.c.l.s4 1966171168
        %v4143 = vunpack.c.0.s8 %v4142
        %v4144 = vlaneseq
        %v4145 = vshrl.u32 %v4144, 7
        %v4146 = vsub.s32 %v4143, %v4145
        %v4147 = vrot.slane %v4140, %v4146
        %v4149 = vsel %vm473, %v4147, 0.0
        %v4150 = vstv %s4123
        %v4151 = vmul.f32 %v4150, %v4149
        %v4152 = vadd.f32 %v4122, %v4151
        %s4153 = sld [smem:[#allocation4 + $0x32]]
        %v4154 = vstv %s4153
        %v4155 = vadd.f32 %v4152, %v4154
        %v4156 = vmul.f32 %v4155, 0.5
        %v4157 = vtanh.pop %v4156
        %v4158 = vmul.f32 %v4157, 0.5
        %v4159 = vadd.f32 %v4158, 0.5
        %v4160 = vmul.f32 %v4159, 0.5
        %v4161 = vtanh.pop %v4160
        %v4162 = vmul.f32 %v4161, 0.5
        %v4163 = vadd.f32 %v4162, 0.5
        %v4165 = vlaneseq
        %v4166 = vshrl.u32 %v4165, 7
        %v4167 = vsub.s32 0, %v4166
        %v4168 = vrot.slane %v4163, %v4167
        %v4169 = vlaneseq
        %v4170 = vshrl.u32 %v4169, 7
        %v4171 = vsub.s32 1, %v4170
        %v4172 = vrot.slane %v4163, %v4171
        %v4175 = vmul.f32 %v2616, %v4168
        %v4176 = vmul.f32 %v2618, %v4172
        %v4177 = vadd.f32 %v4175, %v977
        %v4178 = vadd.f32 %v4176, %v979
        %4179 = vst [vmem:[%s393] sm:$0xff] %v4177
        %4180 = vst [vmem:[%s393 + $0x8] sm:$0xff] %v4178
        %s4181 = sand.u32 %s270, 1
        %s4182 = scalar_lea.sflag [#allocation5], %s4181
        %s4183 = sand.u32 %s270, 1
        %s4184 = smul.addr %s4183, 16
        %s4185 = scalar_lea.vmem [#allocation7], %s4184
        // Predicated region
        $region69: #{tpu_custom_call.1} parent=63 // pred_check
          %p4186 = pneg %p280
        $region70: #{tpu_custom_call.1} parent=63 // pred_check_branch
          %4188 = sbr.rel (%p4186) target = $region72
        $region71: #{tpu_custom_call.1} parent=63 // pred_region
          %s4190 = ssub.s32 256, 256
          %4191 = vsyncadd %s4182, %s4190
          %s4192 = smul.addr %s26, 2
          %s4193 = smul.addr %s4192, 128
          %s4194 = scalar_lea.hbm %s11, %s4193
          %s4196 = sshll.u32 %s4185, 4
          %s4197 = int_to_ptr.vmem [resolvable:$true] %s4196
          %4199 = dma.vmem_to_hbm [thread:$0]  %s4197, 256, %s4194, %s4182
        $region72: #{tpu_custom_call.1} parent=63 // pred_fallthru
          _
      $region64: #{tpu_custom_call.1} parent=5 // pred_fallthru
        _
      %p4200 = scmp.le.s32.totalorder 2, %s21
      // Predicated region
      $region73: #{tpu_custom_call.1} parent=5 // pred_check
        %p4201 = pneg %p4200
      $region74: #{tpu_custom_call.1} parent=5 // pred_check_branch
        %4203 = sbr.rel (%p4201) target = $region76
      $region75: #{tpu_custom_call.1} parent=5 // pred_region
        %s4204 = ssub.s32 %s21, 2
        // Predicated region
        $region77: #{tpu_custom_call.1} parent=75 // pred_check
          %p4205 = pneg %p286
        $region78: #{tpu_custom_call.1} parent=75 // pred_check_branch
          %4207 = sbr.rel (%p4205) target = $region80
        $region79: #{tpu_custom_call.1} parent=75 // pred_region
          %s4208 = sand.u32 %s271, 1
          %s4209 = scalar_lea.sflag [#allocation5], %s4208
          %s4210 = sand.u32 %s271, 1
          %s4211 = smul.addr %s4210, 16
          %s4212 = scalar_lea.vmem [#allocation7], %s4211
          %4213 = dma.done %s4209, 256
        $region80: #{tpu_custom_call.1} parent=75 // pred_fallthru
          _
      $region76: #{tpu_custom_call.1} parent=5 // pred_fallthru
        _
    $region6: #{tpu_custom_call.1} parent=1 // loop_footer
      %s25 = sadd.s32 1, %s21
    $region7: #{tpu_custom_call.1} parent=1 // loop_footer_branch
      %20 = sbr.rel target = $region3
    $region8: #{tpu_custom_call.1} parent=1 // loop_exit
      _
    %4214 = vsyncpa [#allocation5], 1
    %s4215 = scalar_lea.sflag [#allocation5], 1
    %4216 = vsyncpa %s4215, 1
    %4217 = vsyncpa [#allocation6], 1
    %s4218 = scalar_lea.sflag [#allocation6], 1
    %4219 = vsyncpa %s4218, 1

</llo_original>
